<compile_context>
chip_gen: v7x
topology: tpu7x:2x2x1
jax: 0.10.0
libtpu: 0.0.40
codegen_flags: <defaults>
</compile_context>

<pallas_src>
import functools

import jax
import jax.numpy as jnp
import numpy as np
from jax.experimental import pallas as pl
from jax.experimental.pallas import tpu as pltpu


def _layer_norm(x, w, b, eps=1e-5):
    # x: (R, D) f32; w/b: (1, D) f32.  Biased variance, matching F.layer_norm.
    mu = jnp.mean(x, axis=-1, keepdims=True)
    var = jnp.mean((x - mu) ** 2, axis=-1, keepdims=True)
    return (x - mu) * jax.lax.rsqrt(var + eps) * w + b


def _rab_kernel(x_ref,
                ln1_w_ref, ln1_b_ref,
                wqkv_ref, bqkv_ref,
                wo_ref, bo_ref,
                ln2_w_ref, ln2_b_ref,
                wfc_ref, bfc_ref,
                wproj_ref, bproj_ref,
                o_ref, *, n_head):
    f32, bf16 = jnp.float32, jnp.bfloat16
    Nb, L, D = x_ref.shape
    H = n_head
    hd = D // H
    R = Nb * L                                       # token rows in this block

    x = x_ref[...].astype(f32).reshape(R, D)         # residual stream

    # ------------- attention branch: x + W_o @ MHA(ln_1(x)) -------------
    h = _layer_norm(x, ln1_w_ref[...], ln1_b_ref[...])
    qkv = jnp.dot(h.astype(bf16), wqkv_ref[...],
                  preferred_element_type=f32) + bqkv_ref[...]        # (R, 3D)

    def heads(t):                                    # (R, D) -> (Nb*H, L, hd)
        t = jnp.transpose(t.reshape(Nb, L, H, hd), (0, 2, 1, 3))
        return t.reshape(Nb * H, L, hd)

    q = heads(qkv[:, 0 * D:1 * D]).astype(bf16)      # q pre-scaled in weights
    k = heads(qkv[:, 1 * D:2 * D]).astype(bf16)
    v = heads(qkv[:, 2 * D:3 * D]).astype(bf16)

    # Batched QK^T / softmax / PV across (batch*head) — no per-head loop.
    s = jnp.einsum("bqd,bkd->bqk", q, k, preferred_element_type=f32)
    s = s - jnp.max(s, axis=-1, keepdims=True)
    p = jnp.exp(s)
    p = p * pl.reciprocal(jnp.sum(p, axis=-1, keepdims=True), approx=True)
    pv = jnp.einsum("bqk,bkd->bqd", p.astype(bf16), v,
                    preferred_element_type=f32)                      # (Nb*H,L,hd)

    attn = jnp.transpose(pv.reshape(Nb, H, L, hd), (0, 2, 1, 3)).reshape(R, D)
    # Single full-contraction (K = D) output projection.
    attn = jnp.dot(attn.astype(bf16), wo_ref[...],
                   preferred_element_type=f32) + bo_ref[...]
    x = x + attn

    # --------- MLP branch: x + c_proj(QuickGELU(c_fc(ln_2(x)))) ---------
    h2 = _layer_norm(x, ln2_w_ref[...], ln2_b_ref[...])
    f = jnp.dot(h2.astype(bf16), wfc_ref[...],
                preferred_element_type=f32) + bfc_ref[...]           # (R, 4D)
    fb = f.astype(bf16)                              # QuickGELU in bf16
    g = fb * jax.nn.sigmoid(1.702 * fb)
    x = x + (jnp.dot(g, wproj_ref[...], preferred_element_type=f32)
             + bproj_ref[...])

    o_ref[...] = x.reshape(Nb, L, D).astype(o_ref.dtype)


def prepare_params(params, n_head, matmul_dtype=jnp.bfloat16):
    """One-time conversion of torch-shaped weights into kernel-ready layout.

    Weights are transposed to `act @ W` layout and cast to bf16 (MXU inputs);
    LayerNorm affines and biases stay f32.  The attention 1/sqrt(hd) scale is
    folded into the q columns of the QKV projection here (free, done once).
    """
    D = int(params["ln1_weight"].shape[0])
    hd = D // n_head
    scale = 1.0 / float(hd) ** 0.5
    row = lambda a: jnp.asarray(a, jnp.float32).reshape(1, -1)

    wqkv = jnp.asarray(params["in_proj_weight"], jnp.float32).T      # (D, 3D)
    bqkv = jnp.asarray(params["in_proj_bias"], jnp.float32).reshape(1, -1)
    qscale = jnp.concatenate([jnp.full((D,), scale, jnp.float32),
                              jnp.ones((2 * D,), jnp.float32)])
    wqkv = wqkv * qscale[None, :]
    bqkv = bqkv * qscale[None, :]

    return dict(
        ln1_w=row(params["ln1_weight"]), ln1_b=row(params["ln1_bias"]),
        wqkv=wqkv.astype(matmul_dtype), bqkv=bqkv,
        wo=jnp.asarray(params["out_proj_weight"], jnp.float32).T.astype(matmul_dtype),
        bo=row(params["out_proj_bias"]),
        ln2_w=row(params["ln2_weight"]), ln2_b=row(params["ln2_bias"]),
        wfc=jnp.asarray(params["c_fc_weight"], jnp.float32).T.astype(matmul_dtype),
        bfc=row(params["c_fc_bias"]),
        wproj=jnp.asarray(params["c_proj_weight"], jnp.float32).T.astype(matmul_dtype),
        bproj=row(params["c_proj_bias"]),
    )


def _vmem_limit_bytes():
    # Generation-aware VMEM budget: ~96 MiB on v5e/v6e, ~48 MiB on v7x.
    try:
        cap = int(pltpu.get_tpu_info().vmem_capacity_bytes)
    except Exception:
        cap = 64 * 1024 * 1024                       # conservative fallback
    return min((cap * 3) // 4, 112 * 1024 * 1024)


def _call(xb, kp, n_head, nb, single_buffer_weights):
    N, L, D = xb.shape
    weights = (kp["ln1_w"], kp["ln1_b"], kp["wqkv"], kp["bqkv"],
               kp["wo"], kp["bo"], kp["ln2_w"], kp["ln2_b"],
               kp["wfc"], kp["bfc"], kp["wproj"], kp["bproj"])

    def const_spec(a):
        # Grid-invariant index_map -> DMA'd once; single-buffer to halve the
        # weight VMEM residency (double buffering buys nothing here).
        kwargs = {"pipeline_mode": pl.Buffered(1)} if single_buffer_weights else {}
        return pl.BlockSpec(a.shape, lambda n, _nd=a.ndim: (0,) * _nd, **kwargs)

    in_specs = [pl.BlockSpec((nb, L, D), lambda n: (n, 0, 0))]
    in_specs += [const_spec(a) for a in weights]

    return pl.pallas_call(
        functools.partial(_rab_kernel, n_head=n_head),
        out_shape=jax.ShapeDtypeStruct((N, L, D), xb.dtype),
        grid=(pl.cdiv(N, nb),),
        in_specs=in_specs,
        out_specs=pl.BlockSpec((nb, L, D), lambda n: (n, 0, 0)),
        compiler_params=pltpu.CompilerParams(
            dimension_semantics=("parallel",),
            vmem_limit_bytes=_vmem_limit_bytes()),
    )(xb, *weights)


def residual_attention_block_nld(xb, kparams, n_head, *, block_batch=1):
    """Batch-major forward: xb is (N, L, D).  Use this inside a transformer
    stack so the (L,N,D)<->(N,L,D) layout change is hoisted out of the layers."""
    N, L, D = xb.shape
    nb = block_batch if (block_batch > 0 and N % block_batch == 0) else 1
    try:
        return _call(xb, kparams, n_head, nb, single_buffer_weights=True)
    except Exception:
        # Some Pallas builds reject pl.Buffered(1); fall back to defaults.
        return _call(xb, kparams, n_head, nb, single_buffer_weights=False)


def residual_attention_block(x, kparams, n_head, *, block_batch=1):
    """Torch-layout forward: x is (L, N, D) like nn.MultiheadAttention."""
    xb = jnp.transpose(x, (1, 0, 2))
    out = residual_attention_block_nld(xb, kparams, n_head,
                                       block_batch=block_batch)
    return jnp.transpose(out, (1, 0, 2))


# ---------------------------- pure-JAX reference ----------------------------
def reference(x, p, n_head):
    def ln(v, w, b):
        v32 = v.astype(jnp.float32)
        mu = v32.mean(-1, keepdims=True)
        var = ((v32 - mu) ** 2).mean(-1, keepdims=True)
        return ((v32 - mu) / jnp.sqrt(var + 1e-5) * w + b).astype(v.dtype)

    L, N, D = x.shape
    hd = D // n_head
    h = ln(x, p["ln1_weight"], p["ln1_bias"])
    qkv = h @ p["in_proj_weight"].T + p["in_proj_bias"]
    q, k, v = jnp.split(qkv, 3, axis=-1)
    q = q.reshape(L, N, n_head, hd) * (1.0 / hd ** 0.5)
    k = k.reshape(L, N, n_head, hd)
    v = v.reshape(L, N, n_head, hd)
    s = jnp.einsum("lnhd,mnhd->nhlm", q, k)
    a = jax.nn.softmax(s, axis=-1)
    o = jnp.einsum("nhlm,mnhd->lnhd", a, v).reshape(L, N, D)
    o = o @ p["out_proj_weight"].T + p["out_proj_bias"]
    x = x + o
    h2 = ln(x, p["ln2_weight"], p["ln2_bias"])
    f = h2 @ p["c_fc_weight"].T + p["c_fc_bias"]
    f = f * jax.nn.sigmoid(1.702 * f)
    m = f @ p["c_proj_weight"].T + p["c_proj_bias"]
    return x + m


if __name__ == "__main__":
    D, n_head = 32, 4

    key = jax.random.PRNGKey(0)
    pkey, xkey = jax.random.split(key)
    ks = jax.random.split(pkey, 12)

    params = {
        "ln1_weight": 1.0 + 0.1 * jax.random.normal(ks[8], (D,), jnp.float32),
        "ln1_bias": 0.01 * jax.random.normal(ks[9], (D,), jnp.float32),
        "in_proj_weight": 0.05 * jax.random.normal(ks[0], (3 * D, D), jnp.float32),
        "in_proj_bias": 0.01 * jax.random.normal(ks[1], (3 * D,), jnp.float32),
        "out_proj_weight": 0.05 * jax.random.normal(ks[2], (D, D), jnp.float32),
        "out_proj_bias": 0.01 * jax.random.normal(ks[3], (D,), jnp.float32),
        "ln2_weight": 1.0 + 0.1 * jax.random.normal(ks[10], (D,), jnp.float32),
        "ln2_bias": 0.01 * jax.random.normal(ks[11], (D,), jnp.float32),
        "c_fc_weight": 0.05 * jax.random.normal(ks[4], (4 * D, D), jnp.float32),
        "c_fc_bias": 0.01 * jax.random.normal(ks[5], (4 * D,), jnp.float32),
        "c_proj_weight": 0.05 * jax.random.normal(ks[6], (D, 4 * D), jnp.float32),
        "c_proj_bias": 0.01 * jax.random.normal(ks[7], (D,), jnp.float32),
    }
    kparams = prepare_params(params, n_head)

    # (L=8, nb=1): one batch element per grid step.
    # (L=10, nb=2): non-multiple-of-8 sequence + batch-blocked grid step.
    for L, N, nb in ((8, 2, 1), (10, 2, 2)):
        x = jax.random.normal(jax.random.fold_in(xkey, L), (L, N, D), jnp.float32)
        out = jax.block_until_ready(
            residual_attention_block(x, kparams, n_head, block_batch=nb))
        ref = jax.block_until_ready(reference(x, params, n_head))
        np.testing.assert_allclose(np.asarray(out), np.asarray(ref),
                                   rtol=5e-2, atol=5e-2)

    print("KERNEL_OK")
</pallas_src>

<mosaic_0001>
module attributes {stable_mosaic.version = 11 : i64} {
  func.func @_rab_kernel(%arg0: i32, %arg1: memref<1x8x32xf32, #tpu.memory_space<vmem>>, %arg2: memref<1x32xf32, #tpu.memory_space<vmem>>, %arg3: memref<1x32xf32, #tpu.memory_space<vmem>>, %arg4: memref<32x96xbf16, #tpu.memory_space<vmem>>, %arg5: memref<1x96xf32, #tpu.memory_space<vmem>>, %arg6: memref<32x32xbf16, #tpu.memory_space<vmem>>, %arg7: memref<1x32xf32, #tpu.memory_space<vmem>>, %arg8: memref<1x32xf32, #tpu.memory_space<vmem>>, %arg9: memref<1x32xf32, #tpu.memory_space<vmem>>, %arg10: memref<32x128xbf16, #tpu.memory_space<vmem>>, %arg11: memref<1x128xf32, #tpu.memory_space<vmem>>, %arg12: memref<128x32xbf16, #tpu.memory_space<vmem>>, %arg13: memref<1x32xf32, #tpu.memory_space<vmem>>, %arg14: memref<1x8x32xf32, #tpu.memory_space<vmem>>) attributes {dimension_semantics = [#tpu.dimension_semantics<parallel>], iteration_bounds = array<i64: 2>, scalar_prefetch = 0 : i64, scratch_operands = 0 : i64, tpu.core_type = #tpu.core_type<tc>, window_params = [{transform_indices = @transform_0, window_bounds = array<i64: 1, 8, 32>}, {pipeline_mode = #tpu.pipeline_mode<synchronous>, transform_indices = @transform_1, window_bounds = array<i64: 1, 32>}, {pipeline_mode = #tpu.pipeline_mode<synchronous>, transform_indices = @transform_2, window_bounds = array<i64: 1, 32>}, {pipeline_mode = #tpu.pipeline_mode<synchronous>, transform_indices = @transform_3, window_bounds = array<i64: 32, 96>}, {pipeline_mode = #tpu.pipeline_mode<synchronous>, transform_indices = @transform_4, window_bounds = array<i64: 1, 96>}, {pipeline_mode = #tpu.pipeline_mode<synchronous>, transform_indices = @transform_5, window_bounds = array<i64: 32, 32>}, {pipeline_mode = #tpu.pipeline_mode<synchronous>, transform_indices = @transform_6, window_bounds = array<i64: 1, 32>}, {pipeline_mode = #tpu.pipeline_mode<synchronous>, transform_indices = @transform_7, window_bounds = array<i64: 1, 32>}, {pipeline_mode = #tpu.pipeline_mode<synchronous>, transform_indices = @transform_8, window_bounds = array<i64: 1, 32>}, {pipeline_mode = #tpu.pipeline_mode<synchronous>, transform_indices = @transform_9, window_bounds = array<i64: 32, 128>}, {pipeline_mode = #tpu.pipeline_mode<synchronous>, transform_indices = @transform_10, window_bounds = array<i64: 1, 128>}, {pipeline_mode = #tpu.pipeline_mode<synchronous>, transform_indices = @transform_11, window_bounds = array<i64: 128, 32>}, {pipeline_mode = #tpu.pipeline_mode<synchronous>, transform_indices = @transform_12, window_bounds = array<i64: 1, 32>}, {transform_indices = @transform_13, window_bounds = array<i64: 1, 8, 32>}]} {
    %c0 = arith.constant 0 : index
    %c0_0 = arith.constant 0 : index
    %c0_1 = arith.constant 0 : index
    %0 = vector.load %arg1[%c0, %c0_0, %c0_1] : memref<1x8x32xf32, #tpu.memory_space<vmem>>, vector<1x8x32xf32>
    %1 = vector.shape_cast %0 : vector<1x8x32xf32> to vector<8x32xf32>
    %c0_2 = arith.constant 0 : index
    %c0_3 = arith.constant 0 : index
    %2 = vector.load %arg2[%c0_2, %c0_3] : memref<1x32xf32, #tpu.memory_space<vmem>>, vector<1x32xf32>
    %c0_4 = arith.constant 0 : index
    %c0_5 = arith.constant 0 : index
    %3 = vector.load %arg3[%c0_4, %c0_5] : memref<1x32xf32, #tpu.memory_space<vmem>>, vector<1x32xf32>
    %cst = arith.constant dense<0.000000e+00> : vector<8xf32>
    %4 = vector.multi_reduction <add>, %1, %cst [1] : vector<8x32xf32> to vector<8xf32>
    %5 = vector.shape_cast %4 : vector<8xf32> to vector<8x1xf32>
    %cst_6 = arith.constant 3.200000e+01 : f32
    %6 = vector.broadcast %cst_6 : f32 to vector<8x1xf32>
    %7 = arith.divf %5, %6 : vector<8x1xf32>
    %8 = vector.broadcast %7 : vector<8x1xf32> to vector<8x32xf32>
    %9 = arith.subf %1, %8 : vector<8x32xf32>
    %10 = arith.mulf %9, %9 : vector<8x32xf32>
    %cst_7 = arith.constant dense<0.000000e+00> : vector<8xf32>
    %11 = vector.multi_reduction <add>, %10, %cst_7 [1] : vector<8x32xf32> to vector<8xf32>
    %12 = vector.shape_cast %11 : vector<8xf32> to vector<8x1xf32>
    %cst_8 = arith.constant 3.200000e+01 : f32
    %13 = vector.broadcast %cst_8 : f32 to vector<8x1xf32>
    %14 = arith.divf %12, %13 : vector<8x1xf32>
    %15 = vector.broadcast %7 : vector<8x1xf32> to vector<8x32xf32>
    %16 = arith.subf %1, %15 : vector<8x32xf32>
    %cst_9 = arith.constant 9.99999974E-6 : f32
    %17 = vector.broadcast %cst_9 : f32 to vector<8x1xf32>
    %18 = arith.addf %14, %17 : vector<8x1xf32>
    %19 = math.rsqrt %18 : vector<8x1xf32>
    %20 = vector.broadcast %19 : vector<8x1xf32> to vector<8x32xf32>
    %21 = arith.mulf %16, %20 : vector<8x32xf32>
    %22 = vector.broadcast %2 : vector<1x32xf32> to vector<8x32xf32>
    %23 = arith.mulf %21, %22 : vector<8x32xf32>
    %24 = vector.broadcast %3 : vector<1x32xf32> to vector<8x32xf32>
    %25 = arith.addf %23, %24 : vector<8x32xf32>
    %26 = arith.truncf %25 : vector<8x32xf32> to vector<8x32xbf16>
    %c0_10 = arith.constant 0 : index
    %c0_11 = arith.constant 0 : index
    %27 = vector.load %arg4[%c0_10, %c0_11] : memref<32x96xbf16, #tpu.memory_space<vmem>>, vector<32x96xbf16>
    %cst_12 = arith.constant dense<0.000000e+00> : vector<8x96xf32>
    %28 = tpu.matmul %26, %27, %cst_12 {dimension_numbers = #tpu.dot_dimension_numbers<[1], [0], [0], [1], [0, 0, 1, 1], [], []>} : vector<8x32xbf16>, vector<32x96xbf16>, vector<8x96xf32> -> vector<8x96xf32>
    %c0_13 = arith.constant 0 : index
    %c0_14 = arith.constant 0 : index
    %29 = vector.load %arg5[%c0_13, %c0_14] : memref<1x96xf32, #tpu.memory_space<vmem>>, vector<1x96xf32>
    %30 = vector.broadcast %29 : vector<1x96xf32> to vector<8x96xf32>
    %31 = arith.addf %28, %30 : vector<8x96xf32>
    %32 = vector.extract_strided_slice %31 {offsets = [0, 0], sizes = [8, 32], strides = [1, 1]} : vector<8x96xf32> to vector<8x32xf32>
    %33 = vector.shape_cast %32 : vector<8x32xf32> to vector<1x8x4x8xf32>
    %34 = tpu.transpose %33, [0, 2, 1, 3] : vector<1x8x4x8xf32> -> vector<1x4x8x8xf32>
    %35 = vector.shape_cast %34 : vector<1x4x8x8xf32> to vector<4x8x8xf32>
    %36 = arith.truncf %35 : vector<4x8x8xf32> to vector<4x8x8xbf16>
    %37 = vector.extract_strided_slice %31 {offsets = [0, 32], sizes = [8, 32], strides = [1, 1]} : vector<8x96xf32> to vector<8x32xf32>
    %38 = vector.shape_cast %37 : vector<8x32xf32> to vector<1x8x4x8xf32>
    %39 = tpu.transpose %38, [0, 2, 1, 3] : vector<1x8x4x8xf32> -> vector<1x4x8x8xf32>
    %40 = vector.shape_cast %39 : vector<1x4x8x8xf32> to vector<4x8x8xf32>
    %41 = arith.truncf %40 : vector<4x8x8xf32> to vector<4x8x8xbf16>
    %42 = vector.extract_strided_slice %31 {offsets = [0, 64], sizes = [8, 32], strides = [1, 1]} : vector<8x96xf32> to vector<8x32xf32>
    %43 = vector.shape_cast %42 : vector<8x32xf32> to vector<1x8x4x8xf32>
    %44 = tpu.transpose %43, [0, 2, 1, 3] : vector<1x8x4x8xf32> -> vector<1x4x8x8xf32>
    %45 = vector.shape_cast %44 : vector<1x4x8x8xf32> to vector<4x8x8xf32>
    %46 = arith.truncf %45 : vector<4x8x8xf32> to vector<4x8x8xbf16>
    "tpu.trace_start"() <{level = 10 : i32, message = "bqd,bkd->bqk"}> : () -> ()
    %cst_15 = arith.constant dense<0.000000e+00> : vector<4x8x8xf32>
    %47 = tpu.matmul %36, %41, %cst_15 {dimension_numbers = #tpu.dot_dimension_numbers<[2], [2], [1], [1], [0, 0, 0, 1, 1, 1], [0], [0]>} : vector<4x8x8xbf16>, vector<4x8x8xbf16>, vector<4x8x8xf32> -> vector<4x8x8xf32>
    "tpu.trace_stop"() : () -> ()
    %cst_16 = arith.constant dense<0xFF800000> : vector<4x8xf32>
    %48 = vector.multi_reduction <maximumf>, %47, %cst_16 [2] : vector<4x8x8xf32> to vector<4x8xf32>
    %49 = vector.shape_cast %48 : vector<4x8xf32> to vector<4x8x1xf32>
    %50 = vector.broadcast %49 : vector<4x8x1xf32> to vector<4x8x8xf32>
    %51 = arith.subf %47, %50 : vector<4x8x8xf32>
    %52 = math.exp %51 : vector<4x8x8xf32>
    %cst_17 = arith.constant dense<0.000000e+00> : vector<4x8xf32>
    %53 = vector.multi_reduction <add>, %52, %cst_17 [2] : vector<4x8x8xf32> to vector<4x8xf32>
    %54 = vector.shape_cast %53 : vector<4x8xf32> to vector<4x8x1xf32>
    %55 = tpu.reciprocal %54 {approx = true} : vector<4x8x1xf32> -> vector<4x8x1xf32>
    %56 = vector.broadcast %55 : vector<4x8x1xf32> to vector<4x8x8xf32>
    %57 = arith.mulf %52, %56 : vector<4x8x8xf32>
    %58 = arith.truncf %57 : vector<4x8x8xf32> to vector<4x8x8xbf16>
    "tpu.trace_start"() <{level = 10 : i32, message = "bqk,bkd->bqd"}> : () -> ()
    %cst_18 = arith.constant dense<0.000000e+00> : vector<4x8x8xf32>
    %59 = tpu.matmul %58, %46, %cst_18 {dimension_numbers = #tpu.dot_dimension_numbers<[2], [1], [1], [2], [0, 0, 0, 1, 1, 2], [0], [0]>} : vector<4x8x8xbf16>, vector<4x8x8xbf16>, vector<4x8x8xf32> -> vector<4x8x8xf32>
    "tpu.trace_stop"() : () -> ()
    %60 = vector.shape_cast %59 : vector<4x8x8xf32> to vector<1x4x8x8xf32>
    %61 = tpu.transpose %60, [0, 2, 1, 3] : vector<1x4x8x8xf32> -> vector<1x8x4x8xf32>
    %62 = vector.shape_cast %61 : vector<1x8x4x8xf32> to vector<8x32xf32>
    %63 = arith.truncf %62 : vector<8x32xf32> to vector<8x32xbf16>
    %c0_19 = arith.constant 0 : index
    %c0_20 = arith.constant 0 : index
    %64 = vector.load %arg6[%c0_19, %c0_20] : memref<32x32xbf16, #tpu.memory_space<vmem>>, vector<32x32xbf16>
    %cst_21 = arith.constant dense<0.000000e+00> : vector<8x32xf32>
    %65 = tpu.matmul %63, %64, %cst_21 {dimension_numbers = #tpu.dot_dimension_numbers<[1], [0], [0], [1], [0, 0, 1, 1], [], []>} : vector<8x32xbf16>, vector<32x32xbf16>, vector<8x32xf32> -> vector<8x32xf32>
    %c0_22 = arith.constant 0 : index
    %c0_23 = arith.constant 0 : index
    %66 = vector.load %arg7[%c0_22, %c0_23] : memref<1x32xf32, #tpu.memory_space<vmem>>, vector<1x32xf32>
    %67 = vector.broadcast %66 : vector<1x32xf32> to vector<8x32xf32>
    %68 = arith.addf %65, %67 : vector<8x32xf32>
    %69 = arith.addf %1, %68 : vector<8x32xf32>
    %c0_24 = arith.constant 0 : index
    %c0_25 = arith.constant 0 : index
    %70 = vector.load %arg8[%c0_24, %c0_25] : memref<1x32xf32, #tpu.memory_space<vmem>>, vector<1x32xf32>
    %c0_26 = arith.constant 0 : index
    %c0_27 = arith.constant 0 : index
    %71 = vector.load %arg9[%c0_26, %c0_27] : memref<1x32xf32, #tpu.memory_space<vmem>>, vector<1x32xf32>
    %cst_28 = arith.constant dense<0.000000e+00> : vector<8xf32>
    %72 = vector.multi_reduction <add>, %69, %cst_28 [1] : vector<8x32xf32> to vector<8xf32>
    %73 = vector.shape_cast %72 : vector<8xf32> to vector<8x1xf32>
    %cst_29 = arith.constant 3.200000e+01 : f32
    %74 = vector.broadcast %cst_29 : f32 to vector<8x1xf32>
    %75 = arith.divf %73, %74 : vector<8x1xf32>
    %76 = vector.broadcast %75 : vector<8x1xf32> to vector<8x32xf32>
    %77 = arith.subf %69, %76 : vector<8x32xf32>
    %78 = arith.mulf %77, %77 : vector<8x32xf32>
    %cst_30 = arith.constant dense<0.000000e+00> : vector<8xf32>
    %79 = vector.multi_reduction <add>, %78, %cst_30 [1] : vector<8x32xf32> to vector<8xf32>
    %80 = vector.shape_cast %79 : vector<8xf32> to vector<8x1xf32>
    %cst_31 = arith.constant 3.200000e+01 : f32
    %81 = vector.broadcast %cst_31 : f32 to vector<8x1xf32>
    %82 = arith.divf %80, %81 : vector<8x1xf32>
    %83 = vector.broadcast %75 : vector<8x1xf32> to vector<8x32xf32>
    %84 = arith.subf %69, %83 : vector<8x32xf32>
    %cst_32 = arith.constant 9.99999974E-6 : f32
    %85 = vector.broadcast %cst_32 : f32 to vector<8x1xf32>
    %86 = arith.addf %82, %85 : vector<8x1xf32>
    %87 = math.rsqrt %86 : vector<8x1xf32>
    %88 = vector.broadcast %87 : vector<8x1xf32> to vector<8x32xf32>
    %89 = arith.mulf %84, %88 : vector<8x32xf32>
    %90 = vector.broadcast %70 : vector<1x32xf32> to vector<8x32xf32>
    %91 = arith.mulf %89, %90 : vector<8x32xf32>
    %92 = vector.broadcast %71 : vector<1x32xf32> to vector<8x32xf32>
    %93 = arith.addf %91, %92 : vector<8x32xf32>
    %94 = arith.truncf %93 : vector<8x32xf32> to vector<8x32xbf16>
    %c0_33 = arith.constant 0 : index
    %c0_34 = arith.constant 0 : index
    %95 = vector.load %arg10[%c0_33, %c0_34] : memref<32x128xbf16, #tpu.memory_space<vmem>>, vector<32x128xbf16>
    %cst_35 = arith.constant dense<0.000000e+00> : vector<8x128xf32>
    %96 = tpu.matmul %94, %95, %cst_35 {dimension_numbers = #tpu.dot_dimension_numbers<[1], [0], [0], [1], [0, 0, 1, 1], [], []>} : vector<8x32xbf16>, vector<32x128xbf16>, vector<8x128xf32> -> vector<8x128xf32>
    %c0_36 = arith.constant 0 : index
    %c0_37 = arith.constant 0 : index
    %97 = vector.load %arg11[%c0_36, %c0_37] : memref<1x128xf32, #tpu.memory_space<vmem>>, vector<1x128xf32>
    %98 = vector.broadcast %97 : vector<1x128xf32> to vector<8x128xf32>
    %99 = arith.addf %96, %98 : vector<8x128xf32>
    %100 = arith.truncf %99 : vector<8x128xf32> to vector<8x128xbf16>
    %cst_38 = arith.constant 1.703130e+00 : bf16
    %101 = vector.broadcast %cst_38 : bf16 to vector<8x128xbf16>
    %102 = arith.mulf %101, %100 : vector<8x128xbf16>
    %103 = arith.negf %102 : vector<8x128xbf16>
    %104 = math.exp %103 : vector<8x128xbf16>
    %cst_39 = arith.constant 1.000000e+00 : bf16
    %105 = vector.broadcast %cst_39 : bf16 to vector<8x128xbf16>
    %106 = arith.addf %105, %104 : vector<8x128xbf16>
    %107 = arith.divf %105, %106 : vector<8x128xbf16>
    %108 = arith.mulf %100, %107 : vector<8x128xbf16>
    %c0_40 = arith.constant 0 : index
    %c0_41 = arith.constant 0 : index
    %109 = vector.load %arg12[%c0_40, %c0_41] : memref<128x32xbf16, #tpu.memory_space<vmem>>, vector<128x32xbf16>
    %cst_42 = arith.constant dense<0.000000e+00> : vector<8x32xf32>
    %110 = tpu.matmul %108, %109, %cst_42 {dimension_numbers = #tpu.dot_dimension_numbers<[1], [0], [0], [1], [0, 0, 1, 1], [], []>} : vector<8x128xbf16>, vector<128x32xbf16>, vector<8x32xf32> -> vector<8x32xf32>
    %c0_43 = arith.constant 0 : index
    %c0_44 = arith.constant 0 : index
    %111 = vector.load %arg13[%c0_43, %c0_44] : memref<1x32xf32, #tpu.memory_space<vmem>>, vector<1x32xf32>
    %112 = vector.broadcast %111 : vector<1x32xf32> to vector<8x32xf32>
    %113 = arith.addf %110, %112 : vector<8x32xf32>
    %114 = arith.addf %69, %113 : vector<8x32xf32>
    %115 = vector.shape_cast %114 : vector<8x32xf32> to vector<1x8x32xf32>
    %c0_45 = arith.constant 0 : index
    %c0_46 = arith.constant 0 : index
    %c0_47 = arith.constant 0 : index
    %116 = vector.load %arg14[%c0_45, %c0_46, %c0_47] : memref<1x8x32xf32, #tpu.memory_space<vmem>>, vector<1x8x32xf32>
    tpu.vector_store %arg14[%c0_45, %c0_46, %c0_47], %115 {strides = array<i32>} : memref<1x8x32xf32, #tpu.memory_space<vmem>>, vector<1x8x32xf32>,
    return
  }
  func.func @transform_0(%arg0: i32) -> (i32, i32, i32) {
    %c0_i32 = arith.constant 0 : i32
    %c0_i32_0 = arith.constant 0 : i32
    %c0_i32_1 = arith.constant 0 : i32
    return %arg0, %c0_i32, %c0_i32_0 : i32, i32, i32
  }
  func.func @transform_1(%arg0: i32) -> (i32, i32) {
    %c0_i32 = arith.constant 0 : i32
    %c0_i32_0 = arith.constant 0 : i32
    %c0_i32_1 = arith.constant 0 : i32
    return %c0_i32, %c0_i32_0 : i32, i32
  }
  func.func @transform_2(%arg0: i32) -> (i32, i32) {
    %c0_i32 = arith.constant 0 : i32
    %c0_i32_0 = arith.constant 0 : i32
    %c0_i32_1 = arith.constant 0 : i32
    return %c0_i32, %c0_i32_0 : i32, i32
  }
  func.func @transform_3(%arg0: i32) -> (i32, i32) {
    %c0_i32 = arith.constant 0 : i32
    %c0_i32_0 = arith.constant 0 : i32
    %c0_i32_1 = arith.constant 0 : i32
    return %c0_i32, %c0_i32_0 : i32, i32
  }
  func.func @transform_4(%arg0: i32) -> (i32, i32) {
    %c0_i32 = arith.constant 0 : i32
    %c0_i32_0 = arith.constant 0 : i32
    %c0_i32_1 = arith.constant 0 : i32
    return %c0_i32, %c0_i32_0 : i32, i32
  }
  func.func @transform_5(%arg0: i32) -> (i32, i32) {
    %c0_i32 = arith.constant 0 : i32
    %c0_i32_0 = arith.constant 0 : i32
    %c0_i32_1 = arith.constant 0 : i32
    return %c0_i32, %c0_i32_0 : i32, i32
  }
  func.func @transform_6(%arg0: i32) -> (i32, i32) {
    %c0_i32 = arith.constant 0 : i32
    %c0_i32_0 = arith.constant 0 : i32
    %c0_i32_1 = arith.constant 0 : i32
    return %c0_i32, %c0_i32_0 : i32, i32
  }
  func.func @transform_7(%arg0: i32) -> (i32, i32) {
    %c0_i32 = arith.constant 0 : i32
    %c0_i32_0 = arith.constant 0 : i32
    %c0_i32_1 = arith.constant 0 : i32
    return %c0_i32, %c0_i32_0 : i32, i32
  }
  func.func @transform_8(%arg0: i32) -> (i32, i32) {
    %c0_i32 = arith.constant 0 : i32
    %c0_i32_0 = arith.constant 0 : i32
    %c0_i32_1 = arith.constant 0 : i32
    return %c0_i32, %c0_i32_0 : i32, i32
  }
  func.func @transform_9(%arg0: i32) -> (i32, i32) {
    %c0_i32 = arith.constant 0 : i32
    %c0_i32_0 = arith.constant 0 : i32
    %c0_i32_1 = arith.constant 0 : i32
    return %c0_i32, %c0_i32_0 : i32, i32
  }
  func.func @transform_10(%arg0: i32) -> (i32, i32) {
    %c0_i32 = arith.constant 0 : i32
    %c0_i32_0 = arith.constant 0 : i32
    %c0_i32_1 = arith.constant 0 : i32
    return %c0_i32, %c0_i32_0 : i32, i32
  }
  func.func @transform_11(%arg0: i32) -> (i32, i32) {
    %c0_i32 = arith.constant 0 : i32
    %c0_i32_0 = arith.constant 0 : i32
    %c0_i32_1 = arith.constant 0 : i32
    return %c0_i32, %c0_i32_0 : i32, i32
  }
  func.func @transform_12(%arg0: i32) -> (i32, i32) {
    %c0_i32 = arith.constant 0 : i32
    %c0_i32_0 = arith.constant 0 : i32
    %c0_i32_1 = arith.constant 0 : i32
    return %c0_i32, %c0_i32_0 : i32, i32
  }
  func.func @transform_13(%arg0: i32) -> (i32, i32, i32) {
    %c0_i32 = arith.constant 0 : i32
    %c0_i32_0 = arith.constant 0 : i32
    %c0_i32_1 = arith.constant 0 : i32
    return %arg0, %c0_i32, %c0_i32_0 : i32, i32, i32
  }
}

module attributes {stable_mosaic.version = 11 : i64} {
  func.func @_rab_kernel(%arg0: i32, %arg1: memref<1x8x32xf32, #tpu.memory_space<vmem>>, %arg2: memref<1x32xf32, #tpu.memory_space<vmem>>, %arg3: memref<1x32xf32, #tpu.memory_space<vmem>>, %arg4: memref<32x96xbf16, #tpu.memory_space<vmem>>, %arg5: memref<1x96xf32, #tpu.memory_space<vmem>>, %arg6: memref<32x32xbf16, #tpu.memory_space<vmem>>, %arg7: memref<1x32xf32, #tpu.memory_space<vmem>>, %arg8: memref<1x32xf32, #tpu.memory_space<vmem>>, %arg9: memref<1x32xf32, #tpu.memory_space<vmem>>, %arg10: memref<32x128xbf16, #tpu.memory_space<vmem>>, %arg11: memref<1x128xf32, #tpu.memory_space<vmem>>, %arg12: memref<128x32xbf16, #tpu.memory_space<vmem>>, %arg13: memref<1x32xf32, #tpu.memory_space<vmem>>, %arg14: memref<1x8x32xf32, #tpu.memory_space<vmem>>) attributes {dimension_semantics = [#tpu.dimension_semantics<parallel>], iteration_bounds = array<i64: 2>, scalar_prefetch = 0 : i64, scratch_operands = 0 : i64, tpu.core_type = #tpu.core_type<tc>, window_params = [{transform_indices = @transform_0, window_bounds = array<i64: 1, 8, 32>}, {pipeline_mode = #tpu.pipeline_mode<synchronous>, transform_indices = @transform_1, window_bounds = array<i64: 1, 32>}, {pipeline_mode = #tpu.pipeline_mode<synchronous>, transform_indices = @transform_2, window_bounds = array<i64: 1, 32>}, {pipeline_mode = #tpu.pipeline_mode<synchronous>, transform_indices = @transform_3, window_bounds = array<i64: 32, 96>}, {pipeline_mode = #tpu.pipeline_mode<synchronous>, transform_indices = @transform_4, window_bounds = array<i64: 1, 96>}, {pipeline_mode = #tpu.pipeline_mode<synchronous>, transform_indices = @transform_5, window_bounds = array<i64: 32, 32>}, {pipeline_mode = #tpu.pipeline_mode<synchronous>, transform_indices = @transform_6, window_bounds = array<i64: 1, 32>}, {pipeline_mode = #tpu.pipeline_mode<synchronous>, transform_indices = @transform_7, window_bounds = array<i64: 1, 32>}, {pipeline_mode = #tpu.pipeline_mode<synchronous>, transform_indices = @transform_8, window_bounds = array<i64: 1, 32>}, {pipeline_mode = #tpu.pipeline_mode<synchronous>, transform_indices = @transform_9, window_bounds = array<i64: 32, 128>}, {pipeline_mode = #tpu.pipeline_mode<synchronous>, transform_indices = @transform_10, window_bounds = array<i64: 1, 128>}, {pipeline_mode = #tpu.pipeline_mode<synchronous>, transform_indices = @transform_11, window_bounds = array<i64: 128, 32>}, {pipeline_mode = #tpu.pipeline_mode<synchronous>, transform_indices = @transform_12, window_bounds = array<i64: 1, 32>}, {transform_indices = @transform_13, window_bounds = array<i64: 1, 8, 32>}]} {
    %c0 = arith.constant 0 : index
    %c0_0 = arith.constant 0 : index
    %c0_1 = arith.constant 0 : index
    %0 = vector.load %arg1[%c0, %c0_0, %c0_1] : memref<1x8x32xf32, #tpu.memory_space<vmem>>, vector<1x8x32xf32>
    %1 = vector.shape_cast %0 : vector<1x8x32xf32> to vector<8x32xf32>
    %c0_2 = arith.constant 0 : index
    %c0_3 = arith.constant 0 : index
    %2 = vector.load %arg2[%c0_2, %c0_3] : memref<1x32xf32, #tpu.memory_space<vmem>>, vector<1x32xf32>
    %c0_4 = arith.constant 0 : index
    %c0_5 = arith.constant 0 : index
    %3 = vector.load %arg3[%c0_4, %c0_5] : memref<1x32xf32, #tpu.memory_space<vmem>>, vector<1x32xf32>
    %cst = arith.constant dense<0.000000e+00> : vector<8xf32>
    %4 = vector.multi_reduction <add>, %1, %cst [1] : vector<8x32xf32> to vector<8xf32>
    %5 = vector.shape_cast %4 : vector<8xf32> to vector<8x1xf32>
    %cst_6 = arith.constant 3.200000e+01 : f32
    %6 = vector.broadcast %cst_6 : f32 to vector<8x1xf32>
    %7 = arith.divf %5, %6 : vector<8x1xf32>
    %8 = vector.broadcast %7 : vector<8x1xf32> to vector<8x32xf32>
    %9 = arith.subf %1, %8 : vector<8x32xf32>
    %10 = arith.mulf %9, %9 : vector<8x32xf32>
    %cst_7 = arith.constant dense<0.000000e+00> : vector<8xf32>
    %11 = vector.multi_reduction <add>, %10, %cst_7 [1] : vector<8x32xf32> to vector<8xf32>
    %12 = vector.shape_cast %11 : vector<8xf32> to vector<8x1xf32>
    %cst_8 = arith.constant 3.200000e+01 : f32
    %13 = vector.broadcast %cst_8 : f32 to vector<8x1xf32>
    %14 = arith.divf %12, %13 : vector<8x1xf32>
    %15 = vector.broadcast %7 : vector<8x1xf32> to vector<8x32xf32>
    %16 = arith.subf %1, %15 : vector<8x32xf32>
    %cst_9 = arith.constant 9.99999974E-6 : f32
    %17 = vector.broadcast %cst_9 : f32 to vector<8x1xf32>
    %18 = arith.addf %14, %17 : vector<8x1xf32>
    %19 = math.rsqrt %18 : vector<8x1xf32>
    %20 = vector.broadcast %19 : vector<8x1xf32> to vector<8x32xf32>
    %21 = arith.mulf %16, %20 : vector<8x32xf32>
    %22 = vector.broadcast %2 : vector<1x32xf32> to vector<8x32xf32>
    %23 = arith.mulf %21, %22 : vector<8x32xf32>
    %24 = vector.broadcast %3 : vector<1x32xf32> to vector<8x32xf32>
    %25 = arith.addf %23, %24 : vector<8x32xf32>
    %26 = arith.truncf %25 : vector<8x32xf32> to vector<8x32xbf16>
    %c0_10 = arith.constant 0 : index
    %c0_11 = arith.constant 0 : index
    %27 = vector.load %arg4[%c0_10, %c0_11] : memref<32x96xbf16, #tpu.memory_space<vmem>>, vector<32x96xbf16>
    %cst_12 = arith.constant dense<0.000000e+00> : vector<8x96xf32>
    %28 = tpu.matmul %26, %27, %cst_12 {dimension_numbers = #tpu.dot_dimension_numbers<[1], [0], [0], [1], [0, 0, 1, 1], [], []>} : vector<8x32xbf16>, vector<32x96xbf16>, vector<8x96xf32> -> vector<8x96xf32>
    %c0_13 = arith.constant 0 : index
    %c0_14 = arith.constant 0 : index
    %29 = vector.load %arg5[%c0_13, %c0_14] : memref<1x96xf32, #tpu.memory_space<vmem>>, vector<1x96xf32>
    %30 = vector.broadcast %29 : vector<1x96xf32> to vector<8x96xf32>
    %31 = arith.addf %28, %30 : vector<8x96xf32>
    %32 = vector.extract_strided_slice %31 {offsets = [0, 0], sizes = [8, 32], strides = [1, 1]} : vector<8x96xf32> to vector<8x32xf32>
    %33 = vector.shape_cast %32 : vector<8x32xf32> to vector<1x8x4x8xf32>
    %34 = tpu.transpose %33, [0, 2, 1, 3] : vector<1x8x4x8xf32> -> vector<1x4x8x8xf32>
    %35 = vector.shape_cast %34 : vector<1x4x8x8xf32> to vector<4x8x8xf32>
    %36 = arith.truncf %35 : vector<4x8x8xf32> to vector<4x8x8xbf16>
    %37 = vector.extract_strided_slice %31 {offsets = [0, 32], sizes = [8, 32], strides = [1, 1]} : vector<8x96xf32> to vector<8x32xf32>
    %38 = vector.shape_cast %37 : vector<8x32xf32> to vector<1x8x4x8xf32>
    %39 = tpu.transpose %38, [0, 2, 1, 3] : vector<1x8x4x8xf32> -> vector<1x4x8x8xf32>
    %40 = vector.shape_cast %39 : vector<1x4x8x8xf32> to vector<4x8x8xf32>
    %41 = arith.truncf %40 : vector<4x8x8xf32> to vector<4x8x8xbf16>
    %42 = vector.extract_strided_slice %31 {offsets = [0, 64], sizes = [8, 32], strides = [1, 1]} : vector<8x96xf32> to vector<8x32xf32>
    %43 = vector.shape_cast %42 : vector<8x32xf32> to vector<1x8x4x8xf32>
    %44 = tpu.transpose %43, [0, 2, 1, 3] : vector<1x8x4x8xf32> -> vector<1x4x8x8xf32>
    %45 = vector.shape_cast %44 : vector<1x4x8x8xf32> to vector<4x8x8xf32>
    %46 = arith.truncf %45 : vector<4x8x8xf32> to vector<4x8x8xbf16>
    "tpu.trace_start"() <{level = 10 : i32, message = "bqd,bkd->bqk"}> : () -> ()
    %cst_15 = arith.constant dense<0.000000e+00> : vector<4x8x8xf32>
    %47 = tpu.matmul %36, %41, %cst_15 {dimension_numbers = #tpu.dot_dimension_numbers<[2], [2], [1], [1], [0, 0, 0, 1, 1, 1], [0], [0]>} : vector<4x8x8xbf16>, vector<4x8x8xbf16>, vector<4x8x8xf32> -> vector<4x8x8xf32>
    "tpu.trace_stop"() : () -> ()
    %cst_16 = arith.constant dense<0xFF800000> : vector<4x8xf32>
    %48 = vector.multi_reduction <maximumf>, %47, %cst_16 [2] : vector<4x8x8xf32> to vector<4x8xf32>
    %49 = vector.shape_cast %48 : vector<4x8xf32> to vector<4x8x1xf32>
    %50 = vector.broadcast %49 : vector<4x8x1xf32> to vector<4x8x8xf32>
    %51 = arith.subf %47, %50 : vector<4x8x8xf32>
    %52 = math.exp %51 : vector<4x8x8xf32>
    %cst_17 = arith.constant dense<0.000000e+00> : vector<4x8xf32>
    %53 = vector.multi_reduction <add>, %52, %cst_17 [2] : vector<4x8x8xf32> to vector<4x8xf32>
    %54 = vector.shape_cast %53 : vector<4x8xf32> to vector<4x8x1xf32>
    %55 = tpu.reciprocal %54 {approx = true} : vector<4x8x1xf32> -> vector<4x8x1xf32>
    %56 = vector.broadcast %55 : vector<4x8x1xf32> to vector<4x8x8xf32>
    %57 = arith.mulf %52, %56 : vector<4x8x8xf32>
    %58 = arith.truncf %57 : vector<4x8x8xf32> to vector<4x8x8xbf16>
    "tpu.trace_start"() <{level = 10 : i32, message = "bqk,bkd->bqd"}> : () -> ()
    %cst_18 = arith.constant dense<0.000000e+00> : vector<4x8x8xf32>
    %59 = tpu.matmul %58, %46, %cst_18 {dimension_numbers = #tpu.dot_dimension_numbers<[2], [1], [1], [2], [0, 0, 0, 1, 1, 2], [0], [0]>} : vector<4x8x8xbf16>, vector<4x8x8xbf16>, vector<4x8x8xf32> -> vector<4x8x8xf32>
    "tpu.trace_stop"() : () -> ()
    %60 = vector.shape_cast %59 : vector<4x8x8xf32> to vector<1x4x8x8xf32>
    %61 = tpu.transpose %60, [0, 2, 1, 3] : vector<1x4x8x8xf32> -> vector<1x8x4x8xf32>
    %62 = vector.shape_cast %61 : vector<1x8x4x8xf32> to vector<8x32xf32>
    %63 = arith.truncf %62 : vector<8x32xf32> to vector<8x32xbf16>
    %c0_19 = arith.constant 0 : index
    %c0_20 = arith.constant 0 : index
    %64 = vector.load %arg6[%c0_19, %c0_20] : memref<32x32xbf16, #tpu.memory_space<vmem>>, vector<32x32xbf16>
    %cst_21 = arith.constant dense<0.000000e+00> : vector<8x32xf32>
    %65 = tpu.matmul %63, %64, %cst_21 {dimension_numbers = #tpu.dot_dimension_numbers<[1], [0], [0], [1], [0, 0, 1, 1], [], []>} : vector<8x32xbf16>, vector<32x32xbf16>, vector<8x32xf32> -> vector<8x32xf32>
    %c0_22 = arith.constant 0 : index
    %c0_23 = arith.constant 0 : index
    %66 = vector.load %arg7[%c0_22, %c0_23] : memref<1x32xf32, #tpu.memory_space<vmem>>, vector<1x32xf32>
    %67 = vector.broadcast %66 : vector<1x32xf32> to vector<8x32xf32>
    %68 = arith.addf %65, %67 : vector<8x32xf32>
    %69 = arith.addf %1, %68 : vector<8x32xf32>
    %c0_24 = arith.constant 0 : index
    %c0_25 = arith.constant 0 : index
    %70 = vector.load %arg8[%c0_24, %c0_25] : memref<1x32xf32, #tpu.memory_space<vmem>>, vector<1x32xf32>
    %c0_26 = arith.constant 0 : index
    %c0_27 = arith.constant 0 : index
    %71 = vector.load %arg9[%c0_26, %c0_27] : memref<1x32xf32, #tpu.memory_space<vmem>>, vector<1x32xf32>
    %cst_28 = arith.constant dense<0.000000e+00> : vector<8xf32>
    %72 = vector.multi_reduction <add>, %69, %cst_28 [1] : vector<8x32xf32> to vector<8xf32>
    %73 = vector.shape_cast %72 : vector<8xf32> to vector<8x1xf32>
    %cst_29 = arith.constant 3.200000e+01 : f32
    %74 = vector.broadcast %cst_29 : f32 to vector<8x1xf32>
    %75 = arith.divf %73, %74 : vector<8x1xf32>
    %76 = vector.broadcast %75 : vector<8x1xf32> to vector<8x32xf32>
    %77 = arith.subf %69, %76 : vector<8x32xf32>
    %78 = arith.mulf %77, %77 : vector<8x32xf32>
    %cst_30 = arith.constant dense<0.000000e+00> : vector<8xf32>
    %79 = vector.multi_reduction <add>, %78, %cst_30 [1] : vector<8x32xf32> to vector<8xf32>
    %80 = vector.shape_cast %79 : vector<8xf32> to vector<8x1xf32>
    %cst_31 = arith.constant 3.200000e+01 : f32
    %81 = vector.broadcast %cst_31 : f32 to vector<8x1xf32>
    %82 = arith.divf %80, %81 : vector<8x1xf32>
    %83 = vector.broadcast %75 : vector<8x1xf32> to vector<8x32xf32>
    %84 = arith.subf %69, %83 : vector<8x32xf32>
    %cst_32 = arith.constant 9.99999974E-6 : f32
    %85 = vector.broadcast %cst_32 : f32 to vector<8x1xf32>
    %86 = arith.addf %82, %85 : vector<8x1xf32>
    %87 = math.rsqrt %86 : vector<8x1xf32>
    %88 = vector.broadcast %87 : vector<8x1xf32> to vector<8x32xf32>
    %89 = arith.mulf %84, %88 : vector<8x32xf32>
    %90 = vector.broadcast %70 : vector<1x32xf32> to vector<8x32xf32>
    %91 = arith.mulf %89, %90 : vector<8x32xf32>
    %92 = vector.broadcast %71 : vector<1x32xf32> to vector<8x32xf32>
    %93 = arith.addf %91, %92 : vector<8x32xf32>
    %94 = arith.truncf %93 : vector<8x32xf32> to vector<8x32xbf16>
    %c0_33 = arith.constant 0 : index
    %c0_34 = arith.constant 0 : index
    %95 = vector.load %arg10[%c0_33, %c0_34] : memref<32x128xbf16, #tpu.memory_space<vmem>>, vector<32x128xbf16>
    %cst_35 = arith.constant dense<0.000000e+00> : vector<8x128xf32>
    %96 = tpu.matmul %94, %95, %cst_35 {dimension_numbers = #tpu.dot_dimension_numbers<[1], [0], [0], [1], [0, 0, 1, 1], [], []>} : vector<8x32xbf16>, vector<32x128xbf16>, vector<8x128xf32> -> vector<8x128xf32>
    %c0_36 = arith.constant 0 : index
    %c0_37 = arith.constant 0 : index
    %97 = vector.load %arg11[%c0_36, %c0_37] : memref<1x128xf32, #tpu.memory_space<vmem>>, vector<1x128xf32>
    %98 = vector.broadcast %97 : vector<1x128xf32> to vector<8x128xf32>
    %99 = arith.addf %96, %98 : vector<8x128xf32>
    %100 = arith.truncf %99 : vector<8x128xf32> to vector<8x128xbf16>
    %cst_38 = arith.constant 1.703130e+00 : bf16
    %101 = vector.broadcast %cst_38 : bf16 to vector<8x128xbf16>
    %102 = arith.mulf %101, %100 : vector<8x128xbf16>
    %103 = arith.negf %102 : vector<8x128xbf16>
    %104 = math.exp %103 : vector<8x128xbf16>
    %cst_39 = arith.constant 1.000000e+00 : bf16
    %105 = vector.broadcast %cst_39 : bf16 to vector<8x128xbf16>
    %106 = arith.addf %105, %104 : vector<8x128xbf16>
    %107 = arith.divf %105, %106 : vector<8x128xbf16>
    %108 = arith.mulf %100, %107 : vector<8x128xbf16>
    %c0_40 = arith.constant 0 : index
    %c0_41 = arith.constant 0 : index
    %109 = vector.load %arg12[%c0_40, %c0_41] : memref<128x32xbf16, #tpu.memory_space<vmem>>, vector<128x32xbf16>
    %cst_42 = arith.constant dense<0.000000e+00> : vector<8x32xf32>
    %110 = tpu.matmul %108, %109, %cst_42 {dimension_numbers = #tpu.dot_dimension_numbers<[1], [0], [0], [1], [0, 0, 1, 1], [], []>} : vector<8x128xbf16>, vector<128x32xbf16>, vector<8x32xf32> -> vector<8x32xf32>
    %c0_43 = arith.constant 0 : index
    %c0_44 = arith.constant 0 : index
    %111 = vector.load %arg13[%c0_43, %c0_44] : memref<1x32xf32, #tpu.memory_space<vmem>>, vector<1x32xf32>
    %112 = vector.broadcast %111 : vector<1x32xf32> to vector<8x32xf32>
    %113 = arith.addf %110, %112 : vector<8x32xf32>
    %114 = arith.addf %69, %113 : vector<8x32xf32>
    %115 = vector.shape_cast %114 : vector<8x32xf32> to vector<1x8x32xf32>
    %c0_45 = arith.constant 0 : index
    %c0_46 = arith.constant 0 : index
    %c0_47 = arith.constant 0 : index
    %116 = vector.load %arg14[%c0_45, %c0_46, %c0_47] : memref<1x8x32xf32, #tpu.memory_space<vmem>>, vector<1x8x32xf32>
    tpu.vector_store %arg14[%c0_45, %c0_46, %c0_47], %115 {strides = array<i32>} : memref<1x8x32xf32, #tpu.memory_space<vmem>>, vector<1x8x32xf32>,
    return
  }
  func.func @transform_0(%arg0: i32) -> (i32, i32, i32) {
    %c0_i32 = arith.constant 0 : i32
    %c0_i32_0 = arith.constant 0 : i32
    %c0_i32_1 = arith.constant 0 : i32
    return %arg0, %c0_i32, %c0_i32_0 : i32, i32, i32
  }
  func.func @transform_1(%arg0: i32) -> (i32, i32) {
    %c0_i32 = arith.constant 0 : i32
    %c0_i32_0 = arith.constant 0 : i32
    %c0_i32_1 = arith.constant 0 : i32
    return %c0_i32, %c0_i32_0 : i32, i32
  }
  func.func @transform_2(%arg0: i32) -> (i32, i32) {
    %c0_i32 = arith.constant 0 : i32
    %c0_i32_0 = arith.constant 0 : i32
    %c0_i32_1 = arith.constant 0 : i32
    return %c0_i32, %c0_i32_0 : i32, i32
  }
  func.func @transform_3(%arg0: i32) -> (i32, i32) {
    %c0_i32 = arith.constant 0 : i32
    %c0_i32_0 = arith.constant 0 : i32
    %c0_i32_1 = arith.constant 0 : i32
    return %c0_i32, %c0_i32_0 : i32, i32
  }
  func.func @transform_4(%arg0: i32) -> (i32, i32) {
    %c0_i32 = arith.constant 0 : i32
    %c0_i32_0 = arith.constant 0 : i32
    %c0_i32_1 = arith.constant 0 : i32
    return %c0_i32, %c0_i32_0 : i32, i32
  }
  func.func @transform_5(%arg0: i32) -> (i32, i32) {
    %c0_i32 = arith.constant 0 : i32
    %c0_i32_0 = arith.constant 0 : i32
    %c0_i32_1 = arith.constant 0 : i32
    return %c0_i32, %c0_i32_0 : i32, i32
  }
  func.func @transform_6(%arg0: i32) -> (i32, i32) {
    %c0_i32 = arith.constant 0 : i32
    %c0_i32_0 = arith.constant 0 : i32
    %c0_i32_1 = arith.constant 0 : i32
    return %c0_i32, %c0_i32_0 : i32, i32
  }
  func.func @transform_7(%arg0: i32) -> (i32, i32) {
    %c0_i32 = arith.constant 0 : i32
    %c0_i32_0 = arith.constant 0 : i32
    %c0_i32_1 = arith.constant 0 : i32
    return %c0_i32, %c0_i32_0 : i32, i32
  }
  func.func @transform_8(%arg0: i32) -> (i32, i32) {
    %c0_i32 = arith.constant 0 : i32
    %c0_i32_0 = arith.constant 0 : i32
    %c0_i32_1 = arith.constant 0 : i32
    return %c0_i32, %c0_i32_0 : i32, i32
  }
  func.func @transform_9(%arg0: i32) -> (i32, i32) {
    %c0_i32 = arith.constant 0 : i32
    %c0_i32_0 = arith.constant 0 : i32
    %c0_i32_1 = arith.constant 0 : i32
    return %c0_i32, %c0_i32_0 : i32, i32
  }
  func.func @transform_10(%arg0: i32) -> (i32, i32) {
    %c0_i32 = arith.constant 0 : i32
    %c0_i32_0 = arith.constant 0 : i32
    %c0_i32_1 = arith.constant 0 : i32
    return %c0_i32, %c0_i32_0 : i32, i32
  }
  func.func @transform_11(%arg0: i32) -> (i32, i32) {
    %c0_i32 = arith.constant 0 : i32
    %c0_i32_0 = arith.constant 0 : i32
    %c0_i32_1 = arith.constant 0 : i32
    return %c0_i32, %c0_i32_0 : i32, i32
  }
  func.func @transform_12(%arg0: i32) -> (i32, i32) {
    %c0_i32 = arith.constant 0 : i32
    %c0_i32_0 = arith.constant 0 : i32
    %c0_i32_1 = arith.constant 0 : i32
    return %c0_i32, %c0_i32_0 : i32, i32
  }
  func.func @transform_13(%arg0: i32) -> (i32, i32, i32) {
    %c0_i32 = arith.constant 0 : i32
    %c0_i32_0 = arith.constant 0 : i32
    %c0_i32_1 = arith.constant 0 : i32
    return %arg0, %c0_i32, %c0_i32_0 : i32, i32, i32
  }
}

</mosaic_0001>

<llo_original>
// kernel: tpu_custom_call.1
$region0: #{tpu_custom_call.1}
  #allocation0 [shape = 'u32[]', space=smem, size = 0x4, offset = 0x4, fixed_abs, tag = 'smem constant byte address 0x4 - core index']
  #allocation1 [shape = 'u32[144,128]{1,0:T(1,128)}', space=vmem, size = 0x12000, scoped, tag = 'internal scratch']
  %s0 = inlined_call_operand.vmem [shape: f32[2,8,32], index: 0, kind: input, shape index: {}]
  %s1 = inlined_call_operand.vmem [shape: f32[1,32], index: 1, kind: input, shape index: {}]
  %s2 = inlined_call_operand.vmem [shape: f32[1,32], index: 2, kind: input, shape index: {}]
  %s3 = inlined_call_operand.vmem [shape: bf16[32,96], index: 3, kind: input, shape index: {}]
  %s4 = inlined_call_operand.vmem [shape: f32[1,96], index: 4, kind: input, shape index: {}]
  %s5 = inlined_call_operand.vmem [shape: bf16[32,32], index: 5, kind: input, shape index: {}]
  %s6 = inlined_call_operand.vmem [shape: f32[1,32], index: 6, kind: input, shape index: {}]
  %s7 = inlined_call_operand.vmem [shape: f32[1,32], index: 7, kind: input, shape index: {}]
  %s8 = inlined_call_operand.vmem [shape: f32[1,32], index: 8, kind: input, shape index: {}]
  %s9 = inlined_call_operand.vmem [shape: bf16[32,128], index: 9, kind: input, shape index: {}]
  %s10 = inlined_call_operand.vmem [shape: f32[1,128], index: 10, kind: input, shape index: {}]
  %s11 = inlined_call_operand.vmem [shape: bf16[128,32], index: 11, kind: input, shape index: {}]
  %s12 = inlined_call_operand.vmem [shape: f32[1,32], index: 12, kind: input, shape index: {}]
  %s13 = inlined_call_operand.hbm [shape: f32[2,8,32], index: 13, kind: output, shape index: {}]
  %s14 = sld [smem:[#allocation0]]
  $region85: #{tpu_custom_call.1} parent=0
    _
  %s16 = ssub.s32 1, %s14
  %s17 = scalar_select 0, %s16, %s14
  $region1: #{tpu_custom_call.1} parent=0
    #allocation2 [shape = 'u8[8192]{0}', space=vmem, size = 0x2000, scoped, tag = 'output window, operand 0']
    #allocation3 [shape = 's32[2]{0}', space=sflag, size = 0x8, scoped, tag = 'scoped memory for tpu_custom_call.1']
    %18 = vsyncpa [#allocation3], 0
    %s19 = scalar_lea.sflag [#allocation3], 1
    %20 = vsyncpa %s19, 0
    loop: start=0, step=1, limit=4
    $region2: #{tpu_custom_call.1} parent=1 // loop_pre_header
      _
    $region3: #{tpu_custom_call.1} parent=1 // loop_header
      %s22 = sphi 0, %s26
      %p23 = scmp.ge.s32.totalorder %s22, 4
      %s32 = sphi 0, %s34
      %s35 = sphi 0, %s32
      %s36 = sphi 0, %s35
      %s52 = sphi 0, %s36
      %s56 = sphi 0, %s56
      %s58 = sphi 0, %s56
      %s59 = sphi 0, %s58
      %s73 = sphi 0, %s59
      %s77 = sphi 0, %s77
      %s79 = sphi 0, %s77
      %s80 = sphi 0, %s79
      %s94 = sphi 0, %s80
      %s98 = sphi 0, %s98
      %s100 = sphi 0, %s98
      %s101 = sphi 0, %s100
      %s115 = sphi 0, %s101
      %s119 = sphi 0, %s119
      %s121 = sphi 0, %s119
      %s122 = sphi 0, %s121
      %s136 = sphi 0, %s122
      %s140 = sphi 0, %s140
      %s142 = sphi 0, %s140
      %s143 = sphi 0, %s142
      %s157 = sphi 0, %s143
      %s161 = sphi 0, %s161
      %s163 = sphi 0, %s161
      %s164 = sphi 0, %s163
      %s178 = sphi 0, %s164
      %s182 = sphi 0, %s182
      %s184 = sphi 0, %s182
      %s185 = sphi 0, %s184
      %s199 = sphi 0, %s185
      %s203 = sphi 0, %s203
      %s205 = sphi 0, %s203
      %s206 = sphi 0, %s205
      %s220 = sphi 0, %s206
      %s224 = sphi 0, %s224
      %s226 = sphi 0, %s224
      %s227 = sphi 0, %s226
      %s241 = sphi 0, %s227
      %s245 = sphi 0, %s245
      %s247 = sphi 0, %s245
      %s248 = sphi 0, %s247
      %s262 = sphi 0, %s248
      %s266 = sphi 0, %s266
      %s268 = sphi 0, %s266
      %s269 = sphi 0, %s268
      %s283 = sphi 0, %s269
      %s287 = sphi 0, %s287
      %s289 = sphi 0, %s287
      %s290 = sphi 0, %s289
      %s304 = sphi 0, %s290
      %s310 = sphi 0, %s312
      %s313 = sphi 0, %s310
      %s314 = sphi 0, %s313
      %s330 = sphi 0, %s314
    $region4: #{tpu_custom_call.1} parent=1 // loop_header_branch
      %25 = sbr.rel (%p23) target = $region8
    $region5: #{tpu_custom_call.1} parent=1 // loop_body
      %s27 = ssub.s32 %s22, 1
      %s28 = ssub.s32 %s22, 2
      %s29 = sadd.s32 %s22, 1
      %s30 = ssub.s32 %s22, %s29
      %p31 = scmp.eq.s32.totalorder %s30, 0
      %s33 = sadd.s32 %s32, 1
      %s34 = scalar_select %p31, %s32, %s33
      %p37 = pneg %p31
      %p38 = scmp.eq.s32.totalorder %s22, 1
      %p39 = por %p37, %p38
      %p40 = scmp.ne.s32.totalorder %s32, %s35
      %p41 = scmp.eq.s32.totalorder %s22, 0
      %p42 = por %p40, %p41
      %p43 = scmp.ne.s32.totalorder %s32, %s35
      %p44 = scmp.eq.s32.totalorder %s27, 1
      %p45 = por %p43, %p44
      %p46 = scmp.ne.s32.totalorder %s35, %s36
      %p47 = scmp.eq.s32.totalorder %s27, 0
      %p48 = por %p46, %p47
      %p49 = scmp.ne.s32.totalorder %s35, %s36
      %p50 = scmp.eq.s32.totalorder %s28, 1
      %p51 = por %p49, %p50
      %p53 = scmp.ne.s32.totalorder %s36, %s52
      %p54 = scmp.eq.s32.totalorder %s28, 0
      %p55 = por %p53, %p54
      %s57 = sadd.s32 %s56, 1
      %p60 = scmp.eq.s32.totalorder %s22, 1
      %p61 = scmp.ne.s32.totalorder %s56, %s58
      %p62 = scmp.eq.s32.totalorder %s22, 0
      %p63 = por %p61, %p62
      %p64 = scmp.ne.s32.totalorder %s56, %s58
      %p65 = scmp.eq.s32.totalorder %s27, 1
      %p66 = por %p64, %p65
      %p67 = scmp.ne.s32.totalorder %s58, %s59
      %p68 = scmp.eq.s32.totalorder %s27, 0
      %p69 = por %p67, %p68
      %p70 = scmp.ne.s32.totalorder %s58, %s59
      %p71 = scmp.eq.s32.totalorder %s28, 1
      %p72 = por %p70, %p71
      %p74 = scmp.ne.s32.totalorder %s59, %s73
      %p75 = scmp.eq.s32.totalorder %s28, 0
      %p76 = por %p74, %p75
      %s78 = sadd.s32 %s77, 1
      %p81 = scmp.eq.s32.totalorder %s22, 1
      %p82 = scmp.ne.s32.totalorder %s77, %s79
      %p83 = scmp.eq.s32.totalorder %s22, 0
      %p84 = por %p82, %p83
      %p85 = scmp.ne.s32.totalorder %s77, %s79
      %p86 = scmp.eq.s32.totalorder %s27, 1
      %p87 = por %p85, %p86
      %p88 = scmp.ne.s32.totalorder %s79, %s80
      %p89 = scmp.eq.s32.totalorder %s27, 0
      %p90 = por %p88, %p89
      %p91 = scmp.ne.s32.totalorder %s79, %s80
      %p92 = scmp.eq.s32.totalorder %s28, 1
      %p93 = por %p91, %p92
      %p95 = scmp.ne.s32.totalorder %s80, %s94
      %p96 = scmp.eq.s32.totalorder %s28, 0
      %p97 = por %p95, %p96
      %s99 = sadd.s32 %s98, 1
      %p102 = scmp.eq.s32.totalorder %s22, 1
      %p103 = scmp.ne.s32.totalorder %s98, %s100
      %p104 = scmp.eq.s32.totalorder %s22, 0
      %p105 = por %p103, %p104
      %p106 = scmp.ne.s32.totalorder %s98, %s100
      %p107 = scmp.eq.s32.totalorder %s27, 1
      %p108 = por %p106, %p107
      %p109 = scmp.ne.s32.totalorder %s100, %s101
      %p110 = scmp.eq.s32.totalorder %s27, 0
      %p111 = por %p109, %p110
      %p112 = scmp.ne.s32.totalorder %s100, %s101
      %p113 = scmp.eq.s32.totalorder %s28, 1
      %p114 = por %p112, %p113
      %p116 = scmp.ne.s32.totalorder %s101, %s115
      %p117 = scmp.eq.s32.totalorder %s28, 0
      %p118 = por %p116, %p117
      %s120 = sadd.s32 %s119, 1
      %p123 = scmp.eq.s32.totalorder %s22, 1
      %p124 = scmp.ne.s32.totalorder %s119, %s121
      %p125 = scmp.eq.s32.totalorder %s22, 0
      %p126 = por %p124, %p125
      %p127 = scmp.ne.s32.totalorder %s119, %s121
      %p128 = scmp.eq.s32.totalorder %s27, 1
      %p129 = por %p127, %p128
      %p130 = scmp.ne.s32.totalorder %s121, %s122
      %p131 = scmp.eq.s32.totalorder %s27, 0
      %p132 = por %p130, %p131
      %p133 = scmp.ne.s32.totalorder %s121, %s122
      %p134 = scmp.eq.s32.totalorder %s28, 1
      %p135 = por %p133, %p134
      %p137 = scmp.ne.s32.totalorder %s122, %s136
      %p138 = scmp.eq.s32.totalorder %s28, 0
      %p139 = por %p137, %p138
      %s141 = sadd.s32 %s140, 1
      %p144 = scmp.eq.s32.totalorder %s22, 1
      %p145 = scmp.ne.s32.totalorder %s140, %s142
      %p146 = scmp.eq.s32.totalorder %s22, 0
      %p147 = por %p145, %p146
      %p148 = scmp.ne.s32.totalorder %s140, %s142
      %p149 = scmp.eq.s32.totalorder %s27, 1
      %p150 = por %p148, %p149
      %p151 = scmp.ne.s32.totalorder %s142, %s143
      %p152 = scmp.eq.s32.totalorder %s27, 0
      %p153 = por %p151, %p152
      %p154 = scmp.ne.s32.totalorder %s142, %s143
      %p155 = scmp.eq.s32.totalorder %s28, 1
      %p156 = por %p154, %p155
      %p158 = scmp.ne.s32.totalorder %s143, %s157
      %p159 = scmp.eq.s32.totalorder %s28, 0
      %p160 = por %p158, %p159
      %s162 = sadd.s32 %s161, 1
      %p165 = scmp.eq.s32.totalorder %s22, 1
      %p166 = scmp.ne.s32.totalorder %s161, %s163
      %p167 = scmp.eq.s32.totalorder %s22, 0
      %p168 = por %p166, %p167
      %p169 = scmp.ne.s32.totalorder %s161, %s163
      %p170 = scmp.eq.s32.totalorder %s27, 1
      %p171 = por %p169, %p170
      %p172 = scmp.ne.s32.totalorder %s163, %s164
      %p173 = scmp.eq.s32.totalorder %s27, 0
      %p174 = por %p172, %p173
      %p175 = scmp.ne.s32.totalorder %s163, %s164
      %p176 = scmp.eq.s32.totalorder %s28, 1
      %p177 = por %p175, %p176
      %p179 = scmp.ne.s32.totalorder %s164, %s178
      %p180 = scmp.eq.s32.totalorder %s28, 0
      %p181 = por %p179, %p180
      %s183 = sadd.s32 %s182, 1
      %p186 = scmp.eq.s32.totalorder %s22, 1
      %p187 = scmp.ne.s32.totalorder %s182, %s184
      %p188 = scmp.eq.s32.totalorder %s22, 0
      %p189 = por %p187, %p188
      %p190 = scmp.ne.s32.totalorder %s182, %s184
      %p191 = scmp.eq.s32.totalorder %s27, 1
      %p192 = por %p190, %p191
      %p193 = scmp.ne.s32.totalorder %s184, %s185
      %p194 = scmp.eq.s32.totalorder %s27, 0
      %p195 = por %p193, %p194
      %p196 = scmp.ne.s32.totalorder %s184, %s185
      %p197 = scmp.eq.s32.totalorder %s28, 1
      %p198 = por %p196, %p197
      %p200 = scmp.ne.s32.totalorder %s185, %s199
      %p201 = scmp.eq.s32.totalorder %s28, 0
      %p202 = por %p200, %p201
      %s204 = sadd.s32 %s203, 1
      %p207 = scmp.eq.s32.totalorder %s22, 1
      %p208 = scmp.ne.s32.totalorder %s203, %s205
      %p209 = scmp.eq.s32.totalorder %s22, 0
      %p210 = por %p208, %p209
      %p211 = scmp.ne.s32.totalorder %s203, %s205
      %p212 = scmp.eq.s32.totalorder %s27, 1
      %p213 = por %p211, %p212
      %p214 = scmp.ne.s32.totalorder %s205, %s206
      %p215 = scmp.eq.s32.totalorder %s27, 0
      %p216 = por %p214, %p215
      %p217 = scmp.ne.s32.totalorder %s205, %s206
      %p218 = scmp.eq.s32.totalorder %s28, 1
      %p219 = por %p217, %p218
      %p221 = scmp.ne.s32.totalorder %s206, %s220
      %p222 = scmp.eq.s32.totalorder %s28, 0
      %p223 = por %p221, %p222
      %s225 = sadd.s32 %s224, 1
      %p228 = scmp.eq.s32.totalorder %s22, 1
      %p229 = scmp.ne.s32.totalorder %s224, %s226
      %p230 = scmp.eq.s32.totalorder %s22, 0
      %p231 = por %p229, %p230
      %p232 = scmp.ne.s32.totalorder %s224, %s226
      %p233 = scmp.eq.s32.totalorder %s27, 1
      %p234 = por %p232, %p233
      %p235 = scmp.ne.s32.totalorder %s226, %s227
      %p236 = scmp.eq.s32.totalorder %s27, 0
      %p237 = por %p235, %p236
      %p238 = scmp.ne.s32.totalorder %s226, %s227
      %p239 = scmp.eq.s32.totalorder %s28, 1
      %p240 = por %p238, %p239
      %p242 = scmp.ne.s32.totalorder %s227, %s241
      %p243 = scmp.eq.s32.totalorder %s28, 0
      %p244 = por %p242, %p243
      %s246 = sadd.s32 %s245, 1
      %p249 = scmp.eq.s32.totalorder %s22, 1
      %p250 = scmp.ne.s32.totalorder %s245, %s247
      %p251 = scmp.eq.s32.totalorder %s22, 0
      %p252 = por %p250, %p251
      %p253 = scmp.ne.s32.totalorder %s245, %s247
      %p254 = scmp.eq.s32.totalorder %s27, 1
      %p255 = por %p253, %p254
      %p256 = scmp.ne.s32.totalorder %s247, %s248
      %p257 = scmp.eq.s32.totalorder %s27, 0
      %p258 = por %p256, %p257
      %p259 = scmp.ne.s32.totalorder %s247, %s248
      %p260 = scmp.eq.s32.totalorder %s28, 1
      %p261 = por %p259, %p260
      %p263 = scmp.ne.s32.totalorder %s248, %s262
      %p264 = scmp.eq.s32.totalorder %s28, 0
      %p265 = por %p263, %p264
      %s267 = sadd.s32 %s266, 1
      %p270 = scmp.eq.s32.totalorder %s22, 1
      %p271 = scmp.ne.s32.totalorder %s266, %s268
      %p272 = scmp.eq.s32.totalorder %s22, 0
      %p273 = por %p271, %p272
      %p274 = scmp.ne.s32.totalorder %s266, %s268
      %p275 = scmp.eq.s32.totalorder %s27, 1
      %p276 = por %p274, %p275
      %p277 = scmp.ne.s32.totalorder %s268, %s269
      %p278 = scmp.eq.s32.totalorder %s27, 0
      %p279 = por %p277, %p278
      %p280 = scmp.ne.s32.totalorder %s268, %s269
      %p281 = scmp.eq.s32.totalorder %s28, 1
      %p282 = por %p280, %p281
      %p284 = scmp.ne.s32.totalorder %s269, %s283
      %p285 = scmp.eq.s32.totalorder %s28, 0
      %p286 = por %p284, %p285
      %s288 = sadd.s32 %s287, 1
      %p291 = scmp.eq.s32.totalorder %s22, 1
      %p292 = scmp.ne.s32.totalorder %s287, %s289
      %p293 = scmp.eq.s32.totalorder %s22, 0
      %p294 = por %p292, %p293
      %p295 = scmp.ne.s32.totalorder %s287, %s289
      %p296 = scmp.eq.s32.totalorder %s27, 1
      %p297 = por %p295, %p296
      %p298 = scmp.ne.s32.totalorder %s289, %s290
      %p299 = scmp.eq.s32.totalorder %s27, 0
      %p300 = por %p298, %p299
      %p301 = scmp.ne.s32.totalorder %s289, %s290
      %p302 = scmp.eq.s32.totalorder %s28, 1
      %p303 = por %p301, %p302
      %p305 = scmp.ne.s32.totalorder %s290, %s304
      %p306 = scmp.eq.s32.totalorder %s28, 0
      %p307 = por %p305, %p306
      %s308 = ssub.s32 %s22, %s29
      %p309 = scmp.eq.s32.totalorder %s308, 0
      %s311 = sadd.s32 %s310, 1
      %s312 = scalar_select %p309, %s310, %s311
      %p315 = pneg %p309
      %p316 = scmp.eq.s32.totalorder %s22, 1
      %p317 = por %p315, %p316
      %p318 = scmp.ne.s32.totalorder %s310, %s313
      %p319 = scmp.eq.s32.totalorder %s22, 0
      %p320 = por %p318, %p319
      %p321 = scmp.ne.s32.totalorder %s310, %s313
      %p322 = scmp.eq.s32.totalorder %s27, 1
      %p323 = por %p321, %p322
      %p324 = scmp.ne.s32.totalorder %s313, %s314
      %p325 = scmp.eq.s32.totalorder %s27, 0
      %p326 = por %p324, %p325
      %p327 = scmp.ne.s32.totalorder %s313, %s314
      %p328 = scmp.eq.s32.totalorder %s28, 1
      %p329 = por %p327, %p328
      %p331 = scmp.ne.s32.totalorder %s314, %s330
      %p332 = scmp.eq.s32.totalorder %s28, 0
      %p333 = por %p331, %p332
      %p334 = scmp.le.s32.totalorder 1, %s22
      %p335 = scmp.lt.s32.totalorder %s22, 3
      %p336 = pnand %p334, %p335
      %p337 = pneg %p336
      // Predicated region
      $region9: #{tpu_custom_call.1} parent=5 // pred_check
        _
      $region10: #{tpu_custom_call.1} parent=5 // pred_check_branch
        %339 = sbr.rel (%p336) target = $region12
      $region11: #{tpu_custom_call.1} parent=5 // pred_region
        %s340 = ssub.s32 %s22, 1
        // Predicated region
        $region13: #{tpu_custom_call.1} parent=11 // pred_check
          %p341 = pneg %p69
        $region14: #{tpu_custom_call.1} parent=11 // pred_check_branch
          %343 = sbr.rel (%p341) target = $region16
        $region15: #{tpu_custom_call.1} parent=11 // pred_region
          _
        $region16: #{tpu_custom_call.1} parent=11 // pred_fallthru
          _
        // Predicated region
        $region17: #{tpu_custom_call.1} parent=11 // pred_check
          %p344 = pneg %p90
        $region18: #{tpu_custom_call.1} parent=11 // pred_check_branch
          %346 = sbr.rel (%p344) target = $region20
        $region19: #{tpu_custom_call.1} parent=11 // pred_region
          _
        $region20: #{tpu_custom_call.1} parent=11 // pred_fallthru
          _
        // Predicated region
        $region21: #{tpu_custom_call.1} parent=11 // pred_check
          %p347 = pneg %p111
        $region22: #{tpu_custom_call.1} parent=11 // pred_check_branch
          %349 = sbr.rel (%p347) target = $region24
        $region23: #{tpu_custom_call.1} parent=11 // pred_region
          _
        $region24: #{tpu_custom_call.1} parent=11 // pred_fallthru
          _
        // Predicated region
        $region25: #{tpu_custom_call.1} parent=11 // pred_check
          %p350 = pneg %p132
        $region26: #{tpu_custom_call.1} parent=11 // pred_check_branch
          %352 = sbr.rel (%p350) target = $region28
        $region27: #{tpu_custom_call.1} parent=11 // pred_region
          _
        $region28: #{tpu_custom_call.1} parent=11 // pred_fallthru
          _
        // Predicated region
        $region29: #{tpu_custom_call.1} parent=11 // pred_check
          %p353 = pneg %p153
        $region30: #{tpu_custom_call.1} parent=11 // pred_check_branch
          %355 = sbr.rel (%p353) target = $region32
        $region31: #{tpu_custom_call.1} parent=11 // pred_region
          _
        $region32: #{tpu_custom_call.1} parent=11 // pred_fallthru
          _
        // Predicated region
        $region33: #{tpu_custom_call.1} parent=11 // pred_check
          %p356 = pneg %p174
        $region34: #{tpu_custom_call.1} parent=11 // pred_check_branch
          %358 = sbr.rel (%p356) target = $region36
        $region35: #{tpu_custom_call.1} parent=11 // pred_region
          _
        $region36: #{tpu_custom_call.1} parent=11 // pred_fallthru
          _
        // Predicated region
        $region37: #{tpu_custom_call.1} parent=11 // pred_check
          %p359 = pneg %p195
        $region38: #{tpu_custom_call.1} parent=11 // pred_check_branch
          %361 = sbr.rel (%p359) target = $region40
        $region39: #{tpu_custom_call.1} parent=11 // pred_region
          _
        $region40: #{tpu_custom_call.1} parent=11 // pred_fallthru
          _
        // Predicated region
        $region41: #{tpu_custom_call.1} parent=11 // pred_check
          %p362 = pneg %p216
        $region42: #{tpu_custom_call.1} parent=11 // pred_check_branch
          %364 = sbr.rel (%p362) target = $region44
        $region43: #{tpu_custom_call.1} parent=11 // pred_region
          _
        $region44: #{tpu_custom_call.1} parent=11 // pred_fallthru
          _
        // Predicated region
        $region45: #{tpu_custom_call.1} parent=11 // pred_check
          %p365 = pneg %p237
        $region46: #{tpu_custom_call.1} parent=11 // pred_check_branch
          %367 = sbr.rel (%p365) target = $region48
        $region47: #{tpu_custom_call.1} parent=11 // pred_region
          _
        $region48: #{tpu_custom_call.1} parent=11 // pred_fallthru
          _
        // Predicated region
        $region49: #{tpu_custom_call.1} parent=11 // pred_check
          %p368 = pneg %p258
        $region50: #{tpu_custom_call.1} parent=11 // pred_check_branch
          %370 = sbr.rel (%p368) target = $region52
        $region51: #{tpu_custom_call.1} parent=11 // pred_region
          _
        $region52: #{tpu_custom_call.1} parent=11 // pred_fallthru
          _
        // Predicated region
        $region53: #{tpu_custom_call.1} parent=11 // pred_check
          %p371 = pneg %p279
        $region54: #{tpu_custom_call.1} parent=11 // pred_check_branch
          %373 = sbr.rel (%p371) target = $region56
        $region55: #{tpu_custom_call.1} parent=11 // pred_region
          _
        $region56: #{tpu_custom_call.1} parent=11 // pred_fallthru
          _
        // Predicated region
        $region57: #{tpu_custom_call.1} parent=11 // pred_check
          %p374 = pneg %p300
        $region58: #{tpu_custom_call.1} parent=11 // pred_check_branch
          %376 = sbr.rel (%p374) target = $region60
        $region59: #{tpu_custom_call.1} parent=11 // pred_region
          _
        $region60: #{tpu_custom_call.1} parent=11 // pred_fallthru
          _
      $region12: #{tpu_custom_call.1} parent=5 // pred_fallthru
        _
      %p377 = scmp.lt.s32.totalorder %s22, 2
      // Predicated region
      $region61: #{tpu_custom_call.1} parent=5 // pred_check
        %p378 = pneg %p377
      $region62: #{tpu_custom_call.1} parent=5 // pred_check_branch
        %380 = sbr.rel (%p378) target = $region64
      $region63: #{tpu_custom_call.1} parent=5 // pred_region
        // Predicated region
        $region65: #{tpu_custom_call.1} parent=63 // pred_check
          %p381 = pneg %p42
        $region66: #{tpu_custom_call.1} parent=63 // pred_check_branch
          %383 = sbr.rel (%p381) target = $region68
        $region67: #{tpu_custom_call.1} parent=63 // pred_region
          %p384 = scmp.lt.s32.totalorder %s22, 1
          %s385 = scalar_select %p384, %s22, 1
          %s386 = smul.addr %s385, 8
          %s387 = scalar_lea.vmem %s0, %s386
        $region68: #{tpu_custom_call.1} parent=63 // pred_fallthru
          _
      $region64: #{tpu_custom_call.1} parent=5 // pred_fallthru
        _
      %p388 = scmp.le.s32.totalorder 1, %s22
      %p389 = scmp.lt.s32.totalorder %s22, 3
      %p390 = pnand %p388, %p389
      %p391 = pneg %p390
      // Predicated region
      $region69: #{tpu_custom_call.1} parent=5 // pred_check
        _
      $region70: #{tpu_custom_call.1} parent=5 // pred_check_branch
        %393 = sbr.rel (%p390) target = $region72
      $region71: #{tpu_custom_call.1} parent=5 // pred_region
        %s394 = ssub.s32 %s22, 1
        %p395 = scmp.lt.s32.totalorder %s27, 1
        %s396 = scalar_select %p395, %s27, 1
        %s397 = smul.addr %s396, 8
        %s398 = scalar_lea.vmem %s0, %s397
        %p399 = pneg %p48
        %p400 = pneg %p45
        %p401 = pneg %p69
        %p402 = pneg %p66
        %p403 = pneg %p90
        %p404 = pneg %p87
        %p405 = pneg %p111
        %p406 = pneg %p108
        %p407 = pneg %p132
        %p408 = pneg %p129
        %p409 = pneg %p153
        %p410 = pneg %p150
        %p411 = pneg %p174
        %p412 = pneg %p171
        %p413 = pneg %p195
        %p414 = pneg %p192
        %p415 = pneg %p216
        %p416 = pneg %p213
        %p417 = pneg %p237
        %p418 = pneg %p234
        %p419 = pneg %p258
        %p420 = pneg %p255
        %p421 = pneg %p279
        %p422 = pneg %p276
        %p423 = pneg %p300
        %p424 = pneg %p297
        %p425 = pneg %p326
        %p426 = pneg %p323
        %s427 = sand.u32 %s313, 1
        %s428 = scalar_lea.sflag [#allocation3], %s427
        %s429 = sand.u32 %s313, 1
        %s430 = smul.addr %s429, 8
        %s431 = scalar_lea.vmem [#allocation2], %s430
        %p432 = scmp.lt.s32.totalorder %s27, 1
        %s433 = scalar_select %p432, %s27, 1
        %s434 = smul.addr %s433, 8
        %s435 = scalar_lea.vmem %s0, %s434
        %v439 = vld [vmem:[%s435] sm:$0xff]
        %v440 = vld [vmem:[%s1] sm:$0x1]
        %v441 = vld [vmem:[%s2] sm:$0x1]
        %vm442 = vcmask 261120
        %v443 = vsel %vm442, %v439, 0.0
        %444 = vadd.xlane.f32.xlu0 %v443
        %v445 = vpop.xlane.xlu0 %444
        %v446 = vrcp.pop 32.0
        %v447 = vmul.f32 %v445, %v446
        %v448 = vsub.f32 %v439, %v447
        %v449 = vmul.f32 %v448, %v448
        %v450 = vsel %vm442, %v449, 0.0
        %451 = vadd.xlane.f32.xlu0 %v450
        %v452 = vpop.xlane.xlu0 %451
        %v453 = vmul.f32 %v452, %v446
        %v454 = vadd.f32 %v453, 1e-05
        %v455 = vrsqrt.pop %v454
        %v456 = vmul.f32 %v448, %v455
        %v458 = vlaneseq
        %v459 = vshrl.u32 %v458, 7
        %v460 = vsub.s32 0, %v459
        %v461 = vrot.slane %v440, %v460
        %v463 = vmul.f32 %v456, %v461
        %v465 = vlaneseq
        %v466 = vshrl.u32 %v465, 7
        %v467 = vsub.s32 0, %v466
        %v468 = vrot.slane %v441, %v467
        %v470 = vadd.f32 %v463, %v468
        %v471 = vpack.c.bf16 %v470, %v470
        %v472 = vld [vmem:[%s3] sm:$0xf]
        %v473 = vld [vmem:[%s3 + $0x4] sm:$0xf]
        %v474 = vld [vmem:[%s3 + $0x8] sm:$0xf]
        %v475 = vld [vmem:[%s3 + $0xc] sm:$0xf]
        %v476 = vld [vmem:[%s4] sm:$0x1]
        %v478 = vlaneseq
        %v479 = vshrl.u32 %v478, 7
        %v480 = vsub.s32 0, %v479
        %v481 = vrot.slane %v476, %v480
        %v487 = vunpack.c.l.b16 %v472
        %v488 = vunpack.c.l.b16 %v473
        %v489 = vunpack.c.l.b16 %v474
        %v490 = vunpack.c.l.b16 %v475
        %v491 = vpack.c.b16 %v488, %v487
        %v492 = vpack.c.b16 %v490, %v489
        %v496 = vsel %vm442, %v471, 0
        %498 = vmatprep.subr.bf16.mxu0 0
        %499 = vmatpush1.bf16.msra.mxu0 %v491
        %500 = vmatprep.subr.bf16.mxu0 0
        %501 = vmatpush1.bf16.msra.mxu0 %v492
        %502 = vmatprep.subr.bf16.mxu0 0
        %503 = vmatpush1.bf16.msra.mxu0 0
        %504 = vmatprep.subr.bf16.mxu0 0
        %505 = vmatpush1.bf16.msra.mxu0 0
        %506 = vmatprep.subr.bf16.mxu0 0
        %507 = vmatpush1.bf16.msra.mxu0 0
        %508 = vmatprep.subr.bf16.mxu0 0
        %509 = vmatpush1.bf16.msra.mxu0 0
        %510 = vmatprep.subr.bf16.mxu0 0
        %511 = vmatpush1.bf16.msra.mxu0 0
        %512 = vmatprep.subr.bf16.mxu0 0
        %513 = vmatpush1.bf16.msra.mxu0 0
        %514 = vmatprep.subr.bf16.mxu0 0
        %515 = vmatpush1.bf16.msra.mxu0 0
        %516 = vmatprep.subr.bf16.mxu0 0
        %517 = vmatpush1.bf16.msra.mxu0 0
        %518 = vmatprep.subr.bf16.mxu0 0
        %519 = vmatpush1.bf16.msra.mxu0 0
        %520 = vmatprep.subr.bf16.mxu0 0
        %521 = vmatpush1.bf16.msra.mxu0 0
        %522 = vmatprep.subr.bf16.mxu0 0
        %523 = vmatpush1.bf16.msra.mxu0 0
        %524 = vmatprep.subr.bf16.mxu0 0
        %525 = vmatpush1.bf16.msra.mxu0 0
        %526 = vmatprep.subr.bf16.mxu0 0
        %527 = vmatpush1.bf16.msra.mxu0 0
        %528 = vmatprep.subr.bf16.mxu0 0
        %529 = vmatpush1.bf16.msra.mxu0 0
        %530 = vmatprep.mubr.bf16.mxu0 0
        %531 = vmatmul.mubr.bf16.gmra.mrb[0].mxu0 %v496
        %v532 = vpop.f32.mrb[0].mxu0
        %v533 = vadd.f32 %v481, %v532
        %v534 = vpop.f32.mrb[0].mxu0
        %v535 = vpop.f32.mrb[0].mxu0
        %v536 = vpop.f32.mrb[0].mxu0
        %537 = vdwg.mxu0
        %539 = vrot.lane.b32.xlu0 %v533, 120
        %v540 = vpop.permute.xlu0 %539
        %542 = vrot.lane.b32.xlu0 %v533, 112
        %v543 = vpop.permute.xlu0 %542
        %545 = vrot.lane.b32.xlu0 %v533, 104
        %v546 = vpop.permute.xlu0 %545
        %v548 = vcombine.low %v533, %v543
        %v549 = vcombine.high %v533, %v543
        %v551 = vunpack.c.l.s4 1983009808
        %v552 = vunpack.c.0.s8 %v551
        %v553 = vlaneseq
        %v554 = vshrl.u32 %v553, 7
        %v555 = vsub.s32 %v552, %v554
        %v556 = vrot.slane %v548, %v555
        %v558 = vunpack.c.l.s4 1983009808
        %v559 = vunpack.c.0.s8 %v558
        %v560 = vlaneseq
        %v561 = vshrl.u32 %v560, 7
        %v562 = vsub.s32 %v559, %v561
        %v563 = vrot.slane %v549, %v562
        %v564 = vcombine.low %v540, %v546
        %v565 = vcombine.high %v540, %v546
        %v567 = vunpack.c.l.s4 1983009808
        %v568 = vunpack.c.0.s8 %v567
        %v569 = vlaneseq
        %v570 = vshrl.u32 %v569, 7
        %v571 = vsub.s32 %v568, %v570
        %v572 = vrot.slane %v564, %v571
        %v574 = vunpack.c.l.s4 1983009808
        %v575 = vunpack.c.0.s8 %v574
        %v576 = vlaneseq
        %v577 = vshrl.u32 %v576, 7
        %v578 = vsub.s32 %v575, %v577
        %v579 = vrot.slane %v565, %v578
        %v580 = vcombine.low %v556, %v572
        %v581 = vcombine.high %v556, %v572
        %v583 = vunpack.c.l.s4 1934713408
        %v584 = vunpack.c.0.s8 %v583
        %v585 = vlaneseq
        %v586 = vshrl.u32 %v585, 7
        %v587 = vsub.s32 %v584, %v586
        %v588 = vrot.slane %v580, %v587
        %v590 = vunpack.c.l.s4 1934713408
        %v591 = vunpack.c.0.s8 %v590
        %v592 = vlaneseq
        %v593 = vshrl.u32 %v592, 7
        %v594 = vsub.s32 %v591, %v593
        %v595 = vrot.slane %v581, %v594
        %v596 = vcombine.low %v563, %v579
        %v597 = vcombine.high %v563, %v579
        %v599 = vunpack.c.l.s4 1934713408
        %v600 = vunpack.c.0.s8 %v599
        %v601 = vlaneseq
        %v602 = vshrl.u32 %v601, 7
        %v603 = vsub.s32 %v600, %v602
        %v604 = vrot.slane %v596, %v603
        %v606 = vunpack.c.l.s4 1934713408
        %v607 = vunpack.c.0.s8 %v606
        %v608 = vlaneseq
        %v609 = vshrl.u32 %v608, 7
        %v610 = vsub.s32 %v607, %v609
        %v611 = vrot.slane %v597, %v610
        %v612 = vcombine.high %v588, 0.0
        %v613 = vcombine.high %v595, 0.0
        %v614 = vcombine.high %v604, 0.0
        %v615 = vcombine.high %v611, 0.0
        %v616 = vcombine.low %v588, %v595
        %v618 = vunpack.c.l.s4 1983009808
        %v619 = vunpack.c.0.s8 %v618
        %v620 = vlaneseq
        %v621 = vshrl.u32 %v620, 7
        %v622 = vsub.s32 %v619, %v621
        %v623 = vrot.slane %v616, %v622
        %v624 = vcombine.low %v612, %v613
        %v626 = vunpack.c.l.s4 1983009808
        %v627 = vunpack.c.0.s8 %v626
        %v628 = vlaneseq
        %v629 = vshrl.u32 %v628, 7
        %v630 = vsub.s32 %v627, %v629
        %v631 = vrot.slane %v624, %v630
        %v632 = vcombine.low %v604, %v611
        %v634 = vunpack.c.l.s4 1983009808
        %v635 = vunpack.c.0.s8 %v634
        %v636 = vlaneseq
        %v637 = vshrl.u32 %v636, 7
        %v638 = vsub.s32 %v635, %v637
        %v639 = vrot.slane %v632, %v638
        %v640 = vcombine.low %v614, %v615
        %v642 = vunpack.c.l.s4 1983009808
        %v643 = vunpack.c.0.s8 %v642
        %v644 = vlaneseq
        %v645 = vshrl.u32 %v644, 7
        %v646 = vsub.s32 %v643, %v645
        %v647 = vrot.slane %v640, %v646
        %v648 = vcombine.low %v623, %v631
        %v649 = vcombine.high %v623, %v631
        %v651 = vunpack.c.l.s4 1934713408
        %v652 = vunpack.c.0.s8 %v651
        %v653 = vlaneseq
        %v654 = vshrl.u32 %v653, 7
        %v655 = vsub.s32 %v652, %v654
        %v656 = vrot.slane %v648, %v655
        %v658 = vunpack.c.l.s4 1934713408
        %v659 = vunpack.c.0.s8 %v658
        %v660 = vlaneseq
        %v661 = vshrl.u32 %v660, 7
        %v662 = vsub.s32 %v659, %v661
        %v663 = vrot.slane %v649, %v662
        %v664 = vcombine.low %v639, %v647
        %v665 = vcombine.high %v639, %v647
        %v667 = vunpack.c.l.s4 1934713408
        %v668 = vunpack.c.0.s8 %v667
        %v669 = vlaneseq
        %v670 = vshrl.u32 %v669, 7
        %v671 = vsub.s32 %v668, %v670
        %v672 = vrot.slane %v664, %v671
        %v674 = vunpack.c.l.s4 1934713408
        %v675 = vunpack.c.0.s8 %v674
        %v676 = vlaneseq
        %v677 = vshrl.u32 %v676, 7
        %v678 = vsub.s32 %v675, %v677
        %v679 = vrot.slane %v665, %v678
        %v680 = vcombine.low %v656, %v672
        %v681 = vcombine.high %v656, %v672
        %v682 = vcombine.low %v663, %v679
        %v683 = vcombine.high %v663, %v679
        %v684 = vpack.c.bf16 %v680, %v680
        %v685 = vpack.c.bf16 %v681, %v681
        %v686 = vpack.c.bf16 %v682, %v682
        %v687 = vpack.c.bf16 %v683, %v683
        %688 = vrot.lane.b32.xlu0 %v533, 96
        %v689 = vpop.permute.xlu0 %688
        %690 = vrot.lane.b32.xlu0 %v540, 96
        %v691 = vpop.permute.xlu0 %690
        %692 = vrot.lane.b32.xlu0 %v543, 96
        %v693 = vpop.permute.xlu0 %692
        %694 = vrot.lane.b32.xlu0 %v546, 96
        %v695 = vpop.permute.xlu0 %694
        %v700 = vcombine.low %v689, %v693
        %v701 = vcombine.high %v689, %v693
        %v703 = vunpack.c.l.s4 1983009808
        %v704 = vunpack.c.0.s8 %v703
        %v705 = vlaneseq
        %v706 = vshrl.u32 %v705, 7
        %v707 = vsub.s32 %v704, %v706
        %v708 = vrot.slane %v700, %v707
        %v710 = vunpack.c.l.s4 1983009808
        %v711 = vunpack.c.0.s8 %v710
        %v712 = vlaneseq
        %v713 = vshrl.u32 %v712, 7
        %v714 = vsub.s32 %v711, %v713
        %v715 = vrot.slane %v701, %v714
        %v716 = vcombine.low %v691, %v695
        %v717 = vcombine.high %v691, %v695
        %v719 = vunpack.c.l.s4 1983009808
        %v720 = vunpack.c.0.s8 %v719
        %v721 = vlaneseq
        %v722 = vshrl.u32 %v721, 7
        %v723 = vsub.s32 %v720, %v722
        %v724 = vrot.slane %v716, %v723
        %v726 = vunpack.c.l.s4 1983009808
        %v727 = vunpack.c.0.s8 %v726
        %v728 = vlaneseq
        %v729 = vshrl.u32 %v728, 7
        %v730 = vsub.s32 %v727, %v729
        %v731 = vrot.slane %v717, %v730
        %v732 = vcombine.low %v708, %v724
        %v733 = vcombine.high %v708, %v724
        %v735 = vunpack.c.l.s4 1934713408
        %v736 = vunpack.c.0.s8 %v735
        %v737 = vlaneseq
        %v738 = vshrl.u32 %v737, 7
        %v739 = vsub.s32 %v736, %v738
        %v740 = vrot.slane %v732, %v739
        %v742 = vunpack.c.l.s4 1934713408
        %v743 = vunpack.c.0.s8 %v742
        %v744 = vlaneseq
        %v745 = vshrl.u32 %v744, 7
        %v746 = vsub.s32 %v743, %v745
        %v747 = vrot.slane %v733, %v746
        %v748 = vcombine.low %v715, %v731
        %v749 = vcombine.high %v715, %v731
        %v751 = vunpack.c.l.s4 1934713408
        %v752 = vunpack.c.0.s8 %v751
        %v753 = vlaneseq
        %v754 = vshrl.u32 %v753, 7
        %v755 = vsub.s32 %v752, %v754
        %v756 = vrot.slane %v748, %v755
        %v758 = vunpack.c.l.s4 1934713408
        %v759 = vunpack.c.0.s8 %v758
        %v760 = vlaneseq
        %v761 = vshrl.u32 %v760, 7
        %v762 = vsub.s32 %v759, %v761
        %v763 = vrot.slane %v749, %v762
        %v764 = vcombine.high %v740, 0.0
        %v765 = vcombine.high %v747, 0.0
        %v766 = vcombine.high %v756, 0.0
        %v767 = vcombine.high %v763, 0.0
        %v768 = vcombine.low %v740, %v747
        %v770 = vunpack.c.l.s4 1983009808
        %v771 = vunpack.c.0.s8 %v770
        %v772 = vlaneseq
        %v773 = vshrl.u32 %v772, 7
        %v774 = vsub.s32 %v771, %v773
        %v775 = vrot.slane %v768, %v774
        %v776 = vcombine.low %v764, %v765
        %v778 = vunpack.c.l.s4 1983009808
        %v779 = vunpack.c.0.s8 %v778
        %v780 = vlaneseq
        %v781 = vshrl.u32 %v780, 7
        %v782 = vsub.s32 %v779, %v781
        %v783 = vrot.slane %v776, %v782
        %v784 = vcombine.low %v756, %v763
        %v786 = vunpack.c.l.s4 1983009808
        %v787 = vunpack.c.0.s8 %v786
        %v788 = vlaneseq
        %v789 = vshrl.u32 %v788, 7
        %v790 = vsub.s32 %v787, %v789
        %v791 = vrot.slane %v784, %v790
        %v792 = vcombine.low %v766, %v767
        %v794 = vunpack.c.l.s4 1983009808
        %v795 = vunpack.c.0.s8 %v794
        %v796 = vlaneseq
        %v797 = vshrl.u32 %v796, 7
        %v798 = vsub.s32 %v795, %v797
        %v799 = vrot.slane %v792, %v798
        %v800 = vcombine.low %v775, %v783
        %v801 = vcombine.high %v775, %v783
        %v803 = vunpack.c.l.s4 1934713408
        %v804 = vunpack.c.0.s8 %v803
        %v805 = vlaneseq
        %v806 = vshrl.u32 %v805, 7
        %v807 = vsub.s32 %v804, %v806
        %v808 = vrot.slane %v800, %v807
        %v810 = vunpack.c.l.s4 1934713408
        %v811 = vunpack.c.0.s8 %v810
        %v812 = vlaneseq
        %v813 = vshrl.u32 %v812, 7
        %v814 = vsub.s32 %v811, %v813
        %v815 = vrot.slane %v801, %v814
        %v816 = vcombine.low %v791, %v799
        %v817 = vcombine.high %v791, %v799
        %v819 = vunpack.c.l.s4 1934713408
        %v820 = vunpack.c.0.s8 %v819
        %v821 = vlaneseq
        %v822 = vshrl.u32 %v821, 7
        %v823 = vsub.s32 %v820, %v822
        %v824 = vrot.slane %v816, %v823
        %v826 = vunpack.c.l.s4 1934713408
        %v827 = vunpack.c.0.s8 %v826
        %v828 = vlaneseq
        %v829 = vshrl.u32 %v828, 7
        %v830 = vsub.s32 %v827, %v829
        %v831 = vrot.slane %v817, %v830
        %v832 = vcombine.low %v808, %v824
        %v833 = vcombine.high %v808, %v824
        %v834 = vcombine.low %v815, %v831
        %v835 = vcombine.high %v815, %v831
        %v836 = vpack.c.bf16 %v832, %v832
        %v837 = vpack.c.bf16 %v833, %v833
        %v838 = vpack.c.bf16 %v834, %v834
        %v839 = vpack.c.bf16 %v835, %v835
        %840 = vrot.lane.b32.xlu0 %v533, 64
        %v841 = vpop.permute.xlu0 %840
        %842 = vrot.lane.b32.xlu0 %v540, 64
        %v843 = vpop.permute.xlu0 %842
        %844 = vrot.lane.b32.xlu0 %v543, 64
        %v845 = vpop.permute.xlu0 %844
        %846 = vrot.lane.b32.xlu0 %v546, 64
        %v847 = vpop.permute.xlu0 %846
        %v852 = vcombine.low %v841, %v845
        %v853 = vcombine.high %v841, %v845
        %v855 = vunpack.c.l.s4 1983009808
        %v856 = vunpack.c.0.s8 %v855
        %v857 = vlaneseq
        %v858 = vshrl.u32 %v857, 7
        %v859 = vsub.s32 %v856, %v858
        %v860 = vrot.slane %v852, %v859
        %v862 = vunpack.c.l.s4 1983009808
        %v863 = vunpack.c.0.s8 %v862
        %v864 = vlaneseq
        %v865 = vshrl.u32 %v864, 7
        %v866 = vsub.s32 %v863, %v865
        %v867 = vrot.slane %v853, %v866
        %v868 = vcombine.low %v843, %v847
        %v869 = vcombine.high %v843, %v847
        %v871 = vunpack.c.l.s4 1983009808
        %v872 = vunpack.c.0.s8 %v871
        %v873 = vlaneseq
        %v874 = vshrl.u32 %v873, 7
        %v875 = vsub.s32 %v872, %v874
        %v876 = vrot.slane %v868, %v875
        %v878 = vunpack.c.l.s4 1983009808
        %v879 = vunpack.c.0.s8 %v878
        %v880 = vlaneseq
        %v881 = vshrl.u32 %v880, 7
        %v882 = vsub.s32 %v879, %v881
        %v883 = vrot.slane %v869, %v882
        %v884 = vcombine.low %v860, %v876
        %v885 = vcombine.high %v860, %v876
        %v887 = vunpack.c.l.s4 1934713408
        %v888 = vunpack.c.0.s8 %v887
        %v889 = vlaneseq
        %v890 = vshrl.u32 %v889, 7
        %v891 = vsub.s32 %v888, %v890
        %v892 = vrot.slane %v884, %v891
        %v894 = vunpack.c.l.s4 1934713408
        %v895 = vunpack.c.0.s8 %v894
        %v896 = vlaneseq
        %v897 = vshrl.u32 %v896, 7
        %v898 = vsub.s32 %v895, %v897
        %v899 = vrot.slane %v885, %v898
        %v900 = vcombine.low %v867, %v883
        %v901 = vcombine.high %v867, %v883
        %v903 = vunpack.c.l.s4 1934713408
        %v904 = vunpack.c.0.s8 %v903
        %v905 = vlaneseq
        %v906 = vshrl.u32 %v905, 7
        %v907 = vsub.s32 %v904, %v906
        %v908 = vrot.slane %v900, %v907
        %v910 = vunpack.c.l.s4 1934713408
        %v911 = vunpack.c.0.s8 %v910
        %v912 = vlaneseq
        %v913 = vshrl.u32 %v912, 7
        %v914 = vsub.s32 %v911, %v913
        %v915 = vrot.slane %v901, %v914
        %v916 = vcombine.high %v892, 0.0
        %v917 = vcombine.high %v899, 0.0
        %v918 = vcombine.high %v908, 0.0
        %v919 = vcombine.high %v915, 0.0
        %v920 = vcombine.low %v892, %v899
        %v922 = vunpack.c.l.s4 1983009808
        %v923 = vunpack.c.0.s8 %v922
        %v924 = vlaneseq
        %v925 = vshrl.u32 %v924, 7
        %v926 = vsub.s32 %v923, %v925
        %v927 = vrot.slane %v920, %v926
        %v928 = vcombine.low %v916, %v917
        %v930 = vunpack.c.l.s4 1983009808
        %v931 = vunpack.c.0.s8 %v930
        %v932 = vlaneseq
        %v933 = vshrl.u32 %v932, 7
        %v934 = vsub.s32 %v931, %v933
        %v935 = vrot.slane %v928, %v934
        %v936 = vcombine.low %v908, %v915
        %v938 = vunpack.c.l.s4 1983009808
        %v939 = vunpack.c.0.s8 %v938
        %v940 = vlaneseq
        %v941 = vshrl.u32 %v940, 7
        %v942 = vsub.s32 %v939, %v941
        %v943 = vrot.slane %v936, %v942
        %v944 = vcombine.low %v918, %v919
        %v946 = vunpack.c.l.s4 1983009808
        %v947 = vunpack.c.0.s8 %v946
        %v948 = vlaneseq
        %v949 = vshrl.u32 %v948, 7
        %v950 = vsub.s32 %v947, %v949
        %v951 = vrot.slane %v944, %v950
        %v952 = vcombine.low %v927, %v935
        %v953 = vcombine.high %v927, %v935
        %v955 = vunpack.c.l.s4 1934713408
        %v956 = vunpack.c.0.s8 %v955
        %v957 = vlaneseq
        %v958 = vshrl.u32 %v957, 7
        %v959 = vsub.s32 %v956, %v958
        %v960 = vrot.slane %v952, %v959
        %v962 = vunpack.c.l.s4 1934713408
        %v963 = vunpack.c.0.s8 %v962
        %v964 = vlaneseq
        %v965 = vshrl.u32 %v964, 7
        %v966 = vsub.s32 %v963, %v965
        %v967 = vrot.slane %v953, %v966
        %v968 = vcombine.low %v943, %v951
        %v969 = vcombine.high %v943, %v951
        %v971 = vunpack.c.l.s4 1934713408
        %v972 = vunpack.c.0.s8 %v971
        %v973 = vlaneseq
        %v974 = vshrl.u32 %v973, 7
        %v975 = vsub.s32 %v972, %v974
        %v976 = vrot.slane %v968, %v975
        %v978 = vunpack.c.l.s4 1934713408
        %v979 = vunpack.c.0.s8 %v978
        %v980 = vlaneseq
        %v981 = vshrl.u32 %v980, 7
        %v982 = vsub.s32 %v979, %v981
        %v983 = vrot.slane %v969, %v982
        %v984 = vcombine.low %v960, %v976
        %v985 = vcombine.high %v960, %v976
        %v986 = vcombine.low %v967, %v983
        %v987 = vcombine.high %v967, %v983
        %v988 = vpack.c.bf16 %v984, %v984
        %v989 = vpack.c.bf16 %v985, %v985
        %v990 = vpack.c.bf16 %v986, %v986
        %v991 = vpack.c.bf16 %v987, %v987
        %vm992 = vcmask 64512
        %v994 = vsel %vm992, %v684, 0
        %v997 = vsel %vm992, %v836, 0
        %999 = vmatprep.subr.bf16.mxu0 0
        %1000 = vmatpush1.bf16.xpose.msra.mxu0 %v997
        %1001 = vmatprep.subr.bf16.mxu0 0
        %1002 = vmatpush1.bf16.xpose.msra.mxu0 0
        %1003 = vmatprep.subr.bf16.mxu0 0
        %1004 = vmatpush1.bf16.xpose.msra.mxu0 0
        %1005 = vmatprep.subr.bf16.mxu0 0
        %1006 = vmatpush1.bf16.xpose.msra.mxu0 0
        %1007 = vmatprep.subr.bf16.mxu0 0
        %1008 = vmatpush1.bf16.xpose.msra.mxu0 0
        %1009 = vmatprep.subr.bf16.mxu0 0
        %1010 = vmatpush1.bf16.xpose.msra.mxu0 0
        %1011 = vmatprep.subr.bf16.mxu0 0
        %1012 = vmatpush1.bf16.xpose.msra.mxu0 0
        %1013 = vmatprep.subr.bf16.mxu0 0
        %1014 = vmatpush1.bf16.xpose.msra.mxu0 0
        %1015 = vmatprep.subr.bf16.mxu0 0
        %1016 = vmatpush1.bf16.xpose.msra.mxu0 0
        %1017 = vmatprep.subr.bf16.mxu0 0
        %1018 = vmatpush1.bf16.xpose.msra.mxu0 0
        %1019 = vmatprep.subr.bf16.mxu0 0
        %1020 = vmatpush1.bf16.xpose.msra.mxu0 0
        %1021 = vmatprep.subr.bf16.mxu0 0
        %1022 = vmatpush1.bf16.xpose.msra.mxu0 0
        %1023 = vmatprep.subr.bf16.mxu0 0
        %1024 = vmatpush1.bf16.xpose.msra.mxu0 0
        %1025 = vmatprep.subr.bf16.mxu0 0
        %1026 = vmatpush1.bf16.xpose.msra.mxu0 0
        %1027 = vmatprep.subr.bf16.mxu0 0
        %1028 = vmatpush1.bf16.xpose.msra.mxu0 0
        %1029 = vmatprep.subr.bf16.mxu0 0
        %1030 = vmatpush1.bf16.xpose.msra.mxu0 0
        %1031 = vmatprep.mubr.bf16.mxu0 0
        %1032 = vmatmul.mubr.bf16.gmra.mrb[0].mxu0 %v994
        %v1033 = vpop.f32.mrb[0].mxu0
        %v1034 = vadd.f32 0.0, %v1033
        %v1035 = vpop.f32.mrb[0].mxu0
        %v1036 = vpop.f32.mrb[0].mxu0
        %v1037 = vpop.f32.mrb[0].mxu0
        %1038 = vdwg.mxu0
        %v1040 = vsel %vm992, %v685, 0
        %v1043 = vsel %vm992, %v837, 0
        %1045 = vmatprep.subr.bf16.mxu0 0
        %1046 = vmatpush1.bf16.xpose.msra.mxu0 %v1043
        %1047 = vmatprep.subr.bf16.mxu0 0
        %1048 = vmatpush1.bf16.xpose.msra.mxu0 0
        %1049 = vmatprep.subr.bf16.mxu0 0
        %1050 = vmatpush1.bf16.xpose.msra.mxu0 0
        %1051 = vmatprep.subr.bf16.mxu0 0
        %1052 = vmatpush1.bf16.xpose.msra.mxu0 0
        %1053 = vmatprep.subr.bf16.mxu0 0
        %1054 = vmatpush1.bf16.xpose.msra.mxu0 0
        %1055 = vmatprep.subr.bf16.mxu0 0
        %1056 = vmatpush1.bf16.xpose.msra.mxu0 0
        %1057 = vmatprep.subr.bf16.mxu0 0
        %1058 = vmatpush1.bf16.xpose.msra.mxu0 0
        %1059 = vmatprep.subr.bf16.mxu0 0
        %1060 = vmatpush1.bf16.xpose.msra.mxu0 0
        %1061 = vmatprep.subr.bf16.mxu0 0
        %1062 = vmatpush1.bf16.xpose.msra.mxu0 0
        %1063 = vmatprep.subr.bf16.mxu0 0
        %1064 = vmatpush1.bf16.xpose.msra.mxu0 0
        %1065 = vmatprep.subr.bf16.mxu0 0
        %1066 = vmatpush1.bf16.xpose.msra.mxu0 0
        %1067 = vmatprep.subr.bf16.mxu0 0
        %1068 = vmatpush1.bf16.xpose.msra.mxu0 0
        %1069 = vmatprep.subr.bf16.mxu0 0
        %1070 = vmatpush1.bf16.xpose.msra.mxu0 0
        %1071 = vmatprep.subr.bf16.mxu0 0
        %1072 = vmatpush1.bf16.xpose.msra.mxu0 0
        %1073 = vmatprep.subr.bf16.mxu0 0
        %1074 = vmatpush1.bf16.xpose.msra.mxu0 0
        %1075 = vmatprep.subr.bf16.mxu0 0
        %1076 = vmatpush1.bf16.xpose.msra.mxu0 0
        %1077 = vmatprep.mubr.bf16.mxu0 0
        %1078 = vmatmul.mubr.bf16.gmra.mrb[0].mxu0 %v1040
        %v1079 = vpop.f32.mrb[0].mxu0
        %v1080 = vadd.f32 0.0, %v1079
        %v1081 = vpop.f32.mrb[0].mxu0
        %v1082 = vpop.f32.mrb[0].mxu0
        %v1083 = vpop.f32.mrb[0].mxu0
        %1084 = vdwg.mxu0
        %v1086 = vsel %vm992, %v686, 0
        %v1089 = vsel %vm992, %v838, 0
        %1091 = vmatprep.subr.bf16.mxu0 0
        %1092 = vmatpush1.bf16.xpose.msra.mxu0 %v1089
        %1093 = vmatprep.subr.bf16.mxu0 0
        %1094 = vmatpush1.bf16.xpose.msra.mxu0 0
        %1095 = vmatprep.subr.bf16.mxu0 0
        %1096 = vmatpush1.bf16.xpose.msra.mxu0 0
        %1097 = vmatprep.subr.bf16.mxu0 0
        %1098 = vmatpush1.bf16.xpose.msra.mxu0 0
        %1099 = vmatprep.subr.bf16.mxu0 0
        %1100 = vmatpush1.bf16.xpose.msra.mxu0 0
        %1101 = vmatprep.subr.bf16.mxu0 0
        %1102 = vmatpush1.bf16.xpose.msra.mxu0 0
        %1103 = vmatprep.subr.bf16.mxu0 0
        %1104 = vmatpush1.bf16.xpose.msra.mxu0 0
        %1105 = vmatprep.subr.bf16.mxu0 0
        %1106 = vmatpush1.bf16.xpose.msra.mxu0 0
        %1107 = vmatprep.subr.bf16.mxu0 0
        %1108 = vmatpush1.bf16.xpose.msra.mxu0 0
        %1109 = vmatprep.subr.bf16.mxu0 0
        %1110 = vmatpush1.bf16.xpose.msra.mxu0 0
        %1111 = vmatprep.subr.bf16.mxu0 0
        %1112 = vmatpush1.bf16.xpose.msra.mxu0 0
        %1113 = vmatprep.subr.bf16.mxu0 0
        %1114 = vmatpush1.bf16.xpose.msra.mxu0 0
        %1115 = vmatprep.subr.bf16.mxu0 0
        %1116 = vmatpush1.bf16.xpose.msra.mxu0 0
        %1117 = vmatprep.subr.bf16.mxu0 0
        %1118 = vmatpush1.bf16.xpose.msra.mxu0 0
        %1119 = vmatprep.subr.bf16.mxu0 0
        %1120 = vmatpush1.bf16.xpose.msra.mxu0 0
        %1121 = vmatprep.subr.bf16.mxu0 0
        %1122 = vmatpush1.bf16.xpose.msra.mxu0 0
        %1123 = vmatprep.mubr.bf16.mxu0 0
        %1124 = vmatmul.mubr.bf16.gmra.mrb[0].mxu0 %v1086
        %v1125 = vpop.f32.mrb[0].mxu0
        %v1126 = vadd.f32 0.0, %v1125
        %v1127 = vpop.f32.mrb[0].mxu0
        %v1128 = vpop.f32.mrb[0].mxu0
        %v1129 = vpop.f32.mrb[0].mxu0
        %1130 = vdwg.mxu0
        %v1132 = vsel %vm992, %v687, 0
        %v1135 = vsel %vm992, %v839, 0
        %1137 = vmatprep.subr.bf16.mxu0 0
        %1138 = vmatpush1.bf16.xpose.msra.mxu0 %v1135
        %1139 = vmatprep.subr.bf16.mxu0 0
        %1140 = vmatpush1.bf16.xpose.msra.mxu0 0
        %1141 = vmatprep.subr.bf16.mxu0 0
        %1142 = vmatpush1.bf16.xpose.msra.mxu0 0
        %1143 = vmatprep.subr.bf16.mxu0 0
        %1144 = vmatpush1.bf16.xpose.msra.mxu0 0
        %1145 = vmatprep.subr.bf16.mxu0 0
        %1146 = vmatpush1.bf16.xpose.msra.mxu0 0
        %1147 = vmatprep.subr.bf16.mxu0 0
        %1148 = vmatpush1.bf16.xpose.msra.mxu0 0
        %1149 = vmatprep.subr.bf16.mxu0 0
        %1150 = vmatpush1.bf16.xpose.msra.mxu0 0
        %1151 = vmatprep.subr.bf16.mxu0 0
        %1152 = vmatpush1.bf16.xpose.msra.mxu0 0
        %1153 = vmatprep.subr.bf16.mxu0 0
        %1154 = vmatpush1.bf16.xpose.msra.mxu0 0
        %1155 = vmatprep.subr.bf16.mxu0 0
        %1156 = vmatpush1.bf16.xpose.msra.mxu0 0
        %1157 = vmatprep.subr.bf16.mxu0 0
        %1158 = vmatpush1.bf16.xpose.msra.mxu0 0
        %1159 = vmatprep.subr.bf16.mxu0 0
        %1160 = vmatpush1.bf16.xpose.msra.mxu0 0
        %1161 = vmatprep.subr.bf16.mxu0 0
        %1162 = vmatpush1.bf16.xpose.msra.mxu0 0
        %1163 = vmatprep.subr.bf16.mxu0 0
        %1164 = vmatpush1.bf16.xpose.msra.mxu0 0
        %1165 = vmatprep.subr.bf16.mxu0 0
        %1166 = vmatpush1.bf16.xpose.msra.mxu0 0
        %1167 = vmatprep.subr.bf16.mxu0 0
        %1168 = vmatpush1.bf16.xpose.msra.mxu0 0
        %1169 = vmatprep.mubr.bf16.mxu0 0
        %1170 = vmatmul.mubr.bf16.gmra.mrb[0].mxu0 %v1132
        %v1171 = vpop.f32.mrb[0].mxu0
        %v1172 = vadd.f32 0.0, %v1171
        %v1173 = vpop.f32.mrb[0].mxu0
        %v1174 = vpop.f32.mrb[0].mxu0
        %v1175 = vpop.f32.mrb[0].mxu0
        %1176 = vdwg.mxu0
        %v1177 = vsel %vm992, %v1034, -inf
        %1178 = vmax.xlane.f32.xlu0 %v1177
        %v1179 = vpop.xlane.xlu0 %1178
        %v1180 = vsel %vm992, %v1080, -inf
        %1181 = vmax.xlane.f32.xlu0 %v1180
        %v1182 = vpop.xlane.xlu0 %1181
        %v1183 = vsel %vm992, %v1126, -inf
        %1184 = vmax.xlane.f32.xlu0 %v1183
        %v1185 = vpop.xlane.xlu0 %1184
        %v1186 = vsel %vm992, %v1172, -inf
        %1187 = vmax.xlane.f32.xlu0 %v1186
        %v1188 = vpop.xlane.xlu0 %1187
        %v1189 = vsub.f32 %v1034, %v1179
        %v1190 = vsub.f32 %v1080, %v1182
        %v1191 = vsub.f32 %v1126, %v1185
        %v1192 = vsub.f32 %v1172, %v1188
        %v1193 = vmul.f32 %v1189, 1.442695
        %v1194 = vpow.pop %v1193
        %v1195 = vmul.f32 %v1190, 1.442695
        %v1196 = vpow.pop %v1195
        %v1197 = vmul.f32 %v1191, 1.442695
        %v1198 = vpow.pop %v1197
        %v1199 = vmul.f32 %v1192, 1.442695
        %v1200 = vpow.pop %v1199
        %v1201 = vsel %vm992, %v1194, 0.0
        %1202 = vadd.xlane.f32.xlu0 %v1201
        %v1203 = vpop.xlane.xlu0 %1202
        %v1204 = vsel %vm992, %v1196, 0.0
        %1205 = vadd.xlane.f32.xlu0 %v1204
        %v1206 = vpop.xlane.xlu0 %1205
        %v1207 = vsel %vm992, %v1198, 0.0
        %1208 = vadd.xlane.f32.xlu0 %v1207
        %v1209 = vpop.xlane.xlu0 %1208
        %v1210 = vsel %vm992, %v1200, 0.0
        %1211 = vadd.xlane.f32.xlu0 %v1210
        %v1212 = vpop.xlane.xlu0 %1211
        %v1213 = vrcp.pop %v1203
        %v1214 = vrcp.pop %v1206
        %v1215 = vrcp.pop %v1209
        %v1216 = vrcp.pop %v1212
        %v1217 = vmul.f32 %v1194, %v1213
        %v1218 = vmul.f32 %v1196, %v1214
        %v1219 = vmul.f32 %v1198, %v1215
        %v1220 = vmul.f32 %v1200, %v1216
        %v1221 = vpack.c.bf16 %v1217, %v1217
        %v1222 = vpack.c.bf16 %v1218, %v1218
        %v1223 = vpack.c.bf16 %v1219, %v1219
        %v1224 = vpack.c.bf16 %v1220, %v1220
        %v1226 = vsel %vm992, %v1221, 0
        %vm1228 = vcmask 1043456
        %v1230 = vsel %vm1228, %v988, 0
        %1232 = vmatprep.subr.bf16.mxu0 0
        %1233 = vmatpush1.bf16.msra.mxu0 %v1230
        %1234 = vmatprep.subr.bf16.mxu0 0
        %1235 = vmatpush1.bf16.msra.mxu0 0
        %1236 = vmatprep.subr.bf16.mxu0 0
        %1237 = vmatpush1.bf16.msra.mxu0 0
        %1238 = vmatprep.subr.bf16.mxu0 0
        %1239 = vmatpush1.bf16.msra.mxu0 0
        %1240 = vmatprep.subr.bf16.mxu0 0
        %1241 = vmatpush1.bf16.msra.mxu0 0
        %1242 = vmatprep.subr.bf16.mxu0 0
        %1243 = vmatpush1.bf16.msra.mxu0 0
        %1244 = vmatprep.subr.bf16.mxu0 0
        %1245 = vmatpush1.bf16.msra.mxu0 0
        %1246 = vmatprep.subr.bf16.mxu0 0
        %1247 = vmatpush1.bf16.msra.mxu0 0
        %1248 = vmatprep.subr.bf16.mxu0 0
        %1249 = vmatpush1.bf16.msra.mxu0 0
        %1250 = vmatprep.subr.bf16.mxu0 0
        %1251 = vmatpush1.bf16.msra.mxu0 0
        %1252 = vmatprep.subr.bf16.mxu0 0
        %1253 = vmatpush1.bf16.msra.mxu0 0
        %1254 = vmatprep.subr.bf16.mxu0 0
        %1255 = vmatpush1.bf16.msra.mxu0 0
        %1256 = vmatprep.subr.bf16.mxu0 0
        %1257 = vmatpush1.bf16.msra.mxu0 0
        %1258 = vmatprep.subr.bf16.mxu0 0
        %1259 = vmatpush1.bf16.msra.mxu0 0
        %1260 = vmatprep.subr.bf16.mxu0 0
        %1261 = vmatpush1.bf16.msra.mxu0 0
        %1262 = vmatprep.subr.bf16.mxu0 0
        %1263 = vmatpush1.bf16.msra.mxu0 0
        %1264 = vmatprep.mubr.bf16.mxu0 0
        %1265 = vmatmul.mubr.bf16.gmra.mrb[0].mxu0 %v1226
        %v1266 = vpop.f32.mrb[0].mxu0
        %v1267 = vadd.f32 0.0, %v1266
        %v1268 = vpop.f32.mrb[0].mxu0
        %v1269 = vpop.f32.mrb[0].mxu0
        %v1270 = vpop.f32.mrb[0].mxu0
        %1271 = vdwg.mxu0
        %v1273 = vsel %vm992, %v1222, 0
        %v1276 = vsel %vm1228, %v989, 0
        %1278 = vmatprep.subr.bf16.mxu0 0
        %1279 = vmatpush1.bf16.msra.mxu0 %v1276
        %1280 = vmatprep.subr.bf16.mxu0 0
        %1281 = vmatpush1.bf16.msra.mxu0 0
        %1282 = vmatprep.subr.bf16.mxu0 0
        %1283 = vmatpush1.bf16.msra.mxu0 0
        %1284 = vmatprep.subr.bf16.mxu0 0
        %1285 = vmatpush1.bf16.msra.mxu0 0
        %1286 = vmatprep.subr.bf16.mxu0 0
        %1287 = vmatpush1.bf16.msra.mxu0 0
        %1288 = vmatprep.subr.bf16.mxu0 0
        %1289 = vmatpush1.bf16.msra.mxu0 0
        %1290 = vmatprep.subr.bf16.mxu0 0
        %1291 = vmatpush1.bf16.msra.mxu0 0
        %1292 = vmatprep.subr.bf16.mxu0 0
        %1293 = vmatpush1.bf16.msra.mxu0 0
        %1294 = vmatprep.subr.bf16.mxu0 0
        %1295 = vmatpush1.bf16.msra.mxu0 0
        %1296 = vmatprep.subr.bf16.mxu0 0
        %1297 = vmatpush1.bf16.msra.mxu0 0
        %1298 = vmatprep.subr.bf16.mxu0 0
        %1299 = vmatpush1.bf16.msra.mxu0 0
        %1300 = vmatprep.subr.bf16.mxu0 0
        %1301 = vmatpush1.bf16.msra.mxu0 0
        %1302 = vmatprep.subr.bf16.mxu0 0
        %1303 = vmatpush1.bf16.msra.mxu0 0
        %1304 = vmatprep.subr.bf16.mxu0 0
        %1305 = vmatpush1.bf16.msra.mxu0 0
        %1306 = vmatprep.subr.bf16.mxu0 0
        %1307 = vmatpush1.bf16.msra.mxu0 0
        %1308 = vmatprep.subr.bf16.mxu0 0
        %1309 = vmatpush1.bf16.msra.mxu0 0
        %1310 = vmatprep.mubr.bf16.mxu0 0
        %1311 = vmatmul.mubr.bf16.gmra.mrb[0].mxu0 %v1273
        %v1312 = vpop.f32.mrb[0].mxu0
        %v1313 = vadd.f32 0.0, %v1312
        %v1314 = vpop.f32.mrb[0].mxu0
        %v1315 = vpop.f32.mrb[0].mxu0
        %v1316 = vpop.f32.mrb[0].mxu0
        %1317 = vdwg.mxu0
        %v1319 = vsel %vm992, %v1223, 0
        %v1322 = vsel %vm1228, %v990, 0
        %1324 = vmatprep.subr.bf16.mxu0 0
        %1325 = vmatpush1.bf16.msra.mxu0 %v1322
        %1326 = vmatprep.subr.bf16.mxu0 0
        %1327 = vmatpush1.bf16.msra.mxu0 0
        %1328 = vmatprep.subr.bf16.mxu0 0
        %1329 = vmatpush1.bf16.msra.mxu0 0
        %1330 = vmatprep.subr.bf16.mxu0 0
        %1331 = vmatpush1.bf16.msra.mxu0 0
        %1332 = vmatprep.subr.bf16.mxu0 0
        %1333 = vmatpush1.bf16.msra.mxu0 0
        %1334 = vmatprep.subr.bf16.mxu0 0
        %1335 = vmatpush1.bf16.msra.mxu0 0
        %1336 = vmatprep.subr.bf16.mxu0 0
        %1337 = vmatpush1.bf16.msra.mxu0 0
        %1338 = vmatprep.subr.bf16.mxu0 0
        %1339 = vmatpush1.bf16.msra.mxu0 0
        %1340 = vmatprep.subr.bf16.mxu0 0
        %1341 = vmatpush1.bf16.msra.mxu0 0
        %1342 = vmatprep.subr.bf16.mxu0 0
        %1343 = vmatpush1.bf16.msra.mxu0 0
        %1344 = vmatprep.subr.bf16.mxu0 0
        %1345 = vmatpush1.bf16.msra.mxu0 0
        %1346 = vmatprep.subr.bf16.mxu0 0
        %1347 = vmatpush1.bf16.msra.mxu0 0
        %1348 = vmatprep.subr.bf16.mxu0 0
        %1349 = vmatpush1.bf16.msra.mxu0 0
        %1350 = vmatprep.subr.bf16.mxu0 0
        %1351 = vmatpush1.bf16.msra.mxu0 0
        %1352 = vmatprep.subr.bf16.mxu0 0
        %1353 = vmatpush1.bf16.msra.mxu0 0
        %1354 = vmatprep.subr.bf16.mxu0 0
        %1355 = vmatpush1.bf16.msra.mxu0 0
        %1356 = vmatprep.mubr.bf16.mxu0 0
        %1357 = vmatmul.mubr.bf16.gmra.mrb[0].mxu0 %v1319
        %v1358 = vpop.f32.mrb[0].mxu0
        %v1359 = vadd.f32 0.0, %v1358
        %v1360 = vpop.f32.mrb[0].mxu0
        %v1361 = vpop.f32.mrb[0].mxu0
        %v1362 = vpop.f32.mrb[0].mxu0
        %1363 = vdwg.mxu0
        %v1365 = vsel %vm992, %v1224, 0
        %v1368 = vsel %vm1228, %v991, 0
        %1370 = vmatprep.subr.bf16.mxu0 0
        %1371 = vmatpush1.bf16.msra.mxu0 %v1368
        %1372 = vmatprep.subr.bf16.mxu0 0
        %1373 = vmatpush1.bf16.msra.mxu0 0
        %1374 = vmatprep.subr.bf16.mxu0 0
        %1375 = vmatpush1.bf16.msra.mxu0 0
        %1376 = vmatprep.subr.bf16.mxu0 0
        %1377 = vmatpush1.bf16.msra.mxu0 0
        %1378 = vmatprep.subr.bf16.mxu0 0
        %1379 = vmatpush1.bf16.msra.mxu0 0
        %1380 = vmatprep.subr.bf16.mxu0 0
        %1381 = vmatpush1.bf16.msra.mxu0 0
        %1382 = vmatprep.subr.bf16.mxu0 0
        %1383 = vmatpush1.bf16.msra.mxu0 0
        %1384 = vmatprep.subr.bf16.mxu0 0
        %1385 = vmatpush1.bf16.msra.mxu0 0
        %1386 = vmatprep.subr.bf16.mxu0 0
        %1387 = vmatpush1.bf16.msra.mxu0 0
        %1388 = vmatprep.subr.bf16.mxu0 0
        %1389 = vmatpush1.bf16.msra.mxu0 0
        %1390 = vmatprep.subr.bf16.mxu0 0
        %1391 = vmatpush1.bf16.msra.mxu0 0
        %1392 = vmatprep.subr.bf16.mxu0 0
        %1393 = vmatpush1.bf16.msra.mxu0 0
        %1394 = vmatprep.subr.bf16.mxu0 0
        %1395 = vmatpush1.bf16.msra.mxu0 0
        %1396 = vmatprep.subr.bf16.mxu0 0
        %1397 = vmatpush1.bf16.msra.mxu0 0
        %1398 = vmatprep.subr.bf16.mxu0 0
        %1399 = vmatpush1.bf16.msra.mxu0 0
        %1400 = vmatprep.subr.bf16.mxu0 0
        %1401 = vmatpush1.bf16.msra.mxu0 0
        %1402 = vmatprep.mubr.bf16.mxu0 0
        %1403 = vmatmul.mubr.bf16.gmra.mrb[0].mxu0 %v1365
        %v1404 = vpop.f32.mrb[0].mxu0
        %v1405 = vadd.f32 0.0, %v1404
        %v1406 = vpop.f32.mrb[0].mxu0
        %v1407 = vpop.f32.mrb[0].mxu0
        %v1408 = vpop.f32.mrb[0].mxu0
        %1409 = vdwg.mxu0
        %v1410 = vcombine.low %v1267, %v1359
        %v1411 = vcombine.high %v1267, %v1359
        %v1413 = vunpack.c.l.s4 1983009808
        %v1414 = vunpack.c.0.s8 %v1413
        %v1415 = vlaneseq
        %v1416 = vshrl.u32 %v1415, 7
        %v1417 = vsub.s32 %v1414, %v1416
        %v1418 = vrot.slane %v1410, %v1417
        %v1420 = vunpack.c.l.s4 1983009808
        %v1421 = vunpack.c.0.s8 %v1420
        %v1422 = vlaneseq
        %v1423 = vshrl.u32 %v1422, 7
        %v1424 = vsub.s32 %v1421, %v1423
        %v1425 = vrot.slane %v1411, %v1424
        %v1426 = vcombine.low %v1313, %v1405
        %v1427 = vcombine.high %v1313, %v1405
        %v1429 = vunpack.c.l.s4 1983009808
        %v1430 = vunpack.c.0.s8 %v1429
        %v1431 = vlaneseq
        %v1432 = vshrl.u32 %v1431, 7
        %v1433 = vsub.s32 %v1430, %v1432
        %v1434 = vrot.slane %v1426, %v1433
        %v1436 = vunpack.c.l.s4 1983009808
        %v1437 = vunpack.c.0.s8 %v1436
        %v1438 = vlaneseq
        %v1439 = vshrl.u32 %v1438, 7
        %v1440 = vsub.s32 %v1437, %v1439
        %v1441 = vrot.slane %v1427, %v1440
        %v1442 = vcombine.low %v1418, %v1434
        %v1443 = vcombine.high %v1418, %v1434
        %v1445 = vunpack.c.l.s4 1934713408
        %v1446 = vunpack.c.0.s8 %v1445
        %v1447 = vlaneseq
        %v1448 = vshrl.u32 %v1447, 7
        %v1449 = vsub.s32 %v1446, %v1448
        %v1450 = vrot.slane %v1442, %v1449
        %v1452 = vunpack.c.l.s4 1934713408
        %v1453 = vunpack.c.0.s8 %v1452
        %v1454 = vlaneseq
        %v1455 = vshrl.u32 %v1454, 7
        %v1456 = vsub.s32 %v1453, %v1455
        %v1457 = vrot.slane %v1443, %v1456
        %v1458 = vcombine.low %v1425, %v1441
        %v1459 = vcombine.high %v1425, %v1441
        %v1461 = vunpack.c.l.s4 1934713408
        %v1462 = vunpack.c.0.s8 %v1461
        %v1463 = vlaneseq
        %v1464 = vshrl.u32 %v1463, 7
        %v1465 = vsub.s32 %v1462, %v1464
        %v1466 = vrot.slane %v1458, %v1465
        %v1468 = vunpack.c.l.s4 1934713408
        %v1469 = vunpack.c.0.s8 %v1468
        %v1470 = vlaneseq
        %v1471 = vshrl.u32 %v1470, 7
        %v1472 = vsub.s32 %v1469, %v1471
        %v1473 = vrot.slane %v1459, %v1472
        %v1474 = vcombine.high %v1450, 0.0
        %v1475 = vcombine.high %v1457, 0.0
        %v1476 = vcombine.high %v1466, 0.0
        %v1477 = vcombine.high %v1473, 0.0
        %v1478 = vcombine.low %v1450, %v1457
        %v1480 = vunpack.c.l.s4 1983009808
        %v1481 = vunpack.c.0.s8 %v1480
        %v1482 = vlaneseq
        %v1483 = vshrl.u32 %v1482, 7
        %v1484 = vsub.s32 %v1481, %v1483
        %v1485 = vrot.slane %v1478, %v1484
        %v1486 = vcombine.low %v1474, %v1475
        %v1488 = vunpack.c.l.s4 1983009808
        %v1489 = vunpack.c.0.s8 %v1488
        %v1490 = vlaneseq
        %v1491 = vshrl.u32 %v1490, 7
        %v1492 = vsub.s32 %v1489, %v1491
        %v1493 = vrot.slane %v1486, %v1492
        %v1494 = vcombine.low %v1466, %v1473
        %v1496 = vunpack.c.l.s4 1983009808
        %v1497 = vunpack.c.0.s8 %v1496
        %v1498 = vlaneseq
        %v1499 = vshrl.u32 %v1498, 7
        %v1500 = vsub.s32 %v1497, %v1499
        %v1501 = vrot.slane %v1494, %v1500
        %v1502 = vcombine.low %v1476, %v1477
        %v1504 = vunpack.c.l.s4 1983009808
        %v1505 = vunpack.c.0.s8 %v1504
        %v1506 = vlaneseq
        %v1507 = vshrl.u32 %v1506, 7
        %v1508 = vsub.s32 %v1505, %v1507
        %v1509 = vrot.slane %v1502, %v1508
        %v1510 = vcombine.low %v1485, %v1493
        %v1511 = vcombine.high %v1485, %v1493
        %v1513 = vunpack.c.l.s4 1934713408
        %v1514 = vunpack.c.0.s8 %v1513
        %v1515 = vlaneseq
        %v1516 = vshrl.u32 %v1515, 7
        %v1517 = vsub.s32 %v1514, %v1516
        %v1518 = vrot.slane %v1510, %v1517
        %v1520 = vunpack.c.l.s4 1934713408
        %v1521 = vunpack.c.0.s8 %v1520
        %v1522 = vlaneseq
        %v1523 = vshrl.u32 %v1522, 7
        %v1524 = vsub.s32 %v1521, %v1523
        %v1525 = vrot.slane %v1511, %v1524
        %v1526 = vcombine.low %v1501, %v1509
        %v1527 = vcombine.high %v1501, %v1509
        %v1529 = vunpack.c.l.s4 1934713408
        %v1530 = vunpack.c.0.s8 %v1529
        %v1531 = vlaneseq
        %v1532 = vshrl.u32 %v1531, 7
        %v1533 = vsub.s32 %v1530, %v1532
        %v1534 = vrot.slane %v1526, %v1533
        %v1536 = vunpack.c.l.s4 1934713408
        %v1537 = vunpack.c.0.s8 %v1536
        %v1538 = vlaneseq
        %v1539 = vshrl.u32 %v1538, 7
        %v1540 = vsub.s32 %v1537, %v1539
        %v1541 = vrot.slane %v1527, %v1540
        %v1542 = vcombine.low %v1518, %v1534
        %v1543 = vcombine.high %v1518, %v1534
        %v1544 = vcombine.low %v1525, %v1541
        %v1545 = vcombine.high %v1525, %v1541
        %1547 = vrot.lane.b32.xlu0 %v1543, 8
        %v1548 = vpop.permute.xlu0 %1547
        %1551 = vrot.lane.b32.xlu0 %v1544, 16
        %v1552 = vpop.permute.xlu0 %1551
        %1555 = vrot.lane.b32.xlu0 %v1545, 24
        %v1556 = vpop.permute.xlu0 %1555
        %v1558 = vsel %vm992, %v1542, %v1548
        %vm1559 = vcmask 130048
        %v1560 = vsel %vm1559, %v1558, %v1552
        %vm1561 = vcmask 195584
        %v1562 = vsel %vm1561, %v1560, %v1556
        %v1563 = vpack.c.bf16 %v1562, %v1562
        %v1564 = vld [vmem:[%s5] sm:$0xf]
        %v1565 = vld [vmem:[%s5 + $0x4] sm:$0xf]
        %v1566 = vld [vmem:[%s5 + $0x8] sm:$0xf]
        %v1567 = vld [vmem:[%s5 + $0xc] sm:$0xf]
        %v1568 = vld [vmem:[%s6] sm:$0x1]
        %v1570 = vlaneseq
        %v1571 = vshrl.u32 %v1570, 7
        %v1572 = vsub.s32 0, %v1571
        %v1573 = vrot.slane %v1568, %v1572
        %v1579 = vunpack.c.l.b16 %v1564
        %v1580 = vunpack.c.l.b16 %v1565
        %v1581 = vunpack.c.l.b16 %v1566
        %v1582 = vunpack.c.l.b16 %v1567
        %v1583 = vpack.c.b16 %v1580, %v1579
        %v1584 = vpack.c.b16 %v1582, %v1581
        %v1588 = vsel %vm442, %v1563, 0
        %1590 = vmatprep.subr.bf16.mxu0 0
        %1591 = vmatpush1.bf16.msra.mxu0 %v1583
        %1592 = vmatprep.subr.bf16.mxu0 0
        %1593 = vmatpush1.bf16.msra.mxu0 %v1584
        %1594 = vmatprep.subr.bf16.mxu0 0
        %1595 = vmatpush1.bf16.msra.mxu0 0
        %1596 = vmatprep.subr.bf16.mxu0 0
        %1597 = vmatpush1.bf16.msra.mxu0 0
        %1598 = vmatprep.subr.bf16.mxu0 0
        %1599 = vmatpush1.bf16.msra.mxu0 0
        %1600 = vmatprep.subr.bf16.mxu0 0
        %1601 = vmatpush1.bf16.msra.mxu0 0
        %1602 = vmatprep.subr.bf16.mxu0 0
        %1603 = vmatpush1.bf16.msra.mxu0 0
        %1604 = vmatprep.subr.bf16.mxu0 0
        %1605 = vmatpush1.bf16.msra.mxu0 0
        %1606 = vmatprep.subr.bf16.mxu0 0
        %1607 = vmatpush1.bf16.msra.mxu0 0
        %1608 = vmatprep.subr.bf16.mxu0 0
        %1609 = vmatpush1.bf16.msra.mxu0 0
        %1610 = vmatprep.subr.bf16.mxu0 0
        %1611 = vmatpush1.bf16.msra.mxu0 0
        %1612 = vmatprep.subr.bf16.mxu0 0
        %1613 = vmatpush1.bf16.msra.mxu0 0
        %1614 = vmatprep.subr.bf16.mxu0 0
        %1615 = vmatpush1.bf16.msra.mxu0 0
        %1616 = vmatprep.subr.bf16.mxu0 0
        %1617 = vmatpush1.bf16.msra.mxu0 0
        %1618 = vmatprep.subr.bf16.mxu0 0
        %1619 = vmatpush1.bf16.msra.mxu0 0
        %1620 = vmatprep.subr.bf16.mxu0 0
        %1621 = vmatpush1.bf16.msra.mxu0 0
        %1622 = vmatprep.mubr.bf16.mxu0 0
        %1623 = vmatmul.mubr.bf16.gmra.mrb[0].mxu0 %v1588
        %v1624 = vpop.f32.mrb[0].mxu0
        %v1625 = vadd.f32 %v1573, %v1624
        %v1626 = vpop.f32.mrb[0].mxu0
        %v1627 = vpop.f32.mrb[0].mxu0
        %v1628 = vpop.f32.mrb[0].mxu0
        %1629 = vdwg.mxu0
        %v1630 = vadd.f32 %v439, %v1625
        %v1631 = vld [vmem:[%s7] sm:$0x1]
        %v1632 = vld [vmem:[%s8] sm:$0x1]
        %v1633 = vsel %vm442, %v1630, 0.0
        %1634 = vadd.xlane.f32.xlu0 %v1633
        %v1635 = vpop.xlane.xlu0 %1634
        %v1636 = vmul.f32 %v1635, %v446
        %v1637 = vsub.f32 %v1630, %v1636
        %v1638 = vmul.f32 %v1637, %v1637
        %v1639 = vsel %vm442, %v1638, 0.0
        %1640 = vadd.xlane.f32.xlu0 %v1639
        %v1641 = vpop.xlane.xlu0 %1640
        %v1642 = vmul.f32 %v1641, %v446
        %v1643 = vadd.f32 %v1642, 1e-05
        %v1644 = vrsqrt.pop %v1643
        %v1645 = vmul.f32 %v1637, %v1644
        %v1647 = vlaneseq
        %v1648 = vshrl.u32 %v1647, 7
        %v1649 = vsub.s32 0, %v1648
        %v1650 = vrot.slane %v1631, %v1649
        %v1652 = vmul.f32 %v1645, %v1650
        %v1654 = vlaneseq
        %v1655 = vshrl.u32 %v1654, 7
        %v1656 = vsub.s32 0, %v1655
        %v1657 = vrot.slane %v1632, %v1656
        %v1659 = vadd.f32 %v1652, %v1657
        %v1660 = vpack.c.bf16 %v1659, %v1659
        %v1661 = vld [vmem:[%s9] sm:$0xf]
        %v1662 = vld [vmem:[%s9 + $0x4] sm:$0xf]
        %v1663 = vld [vmem:[%s9 + $0x8] sm:$0xf]
        %v1664 = vld [vmem:[%s9 + $0xc] sm:$0xf]
        %v1665 = vld [vmem:[%s10] sm:$0x1]
        %v1667 = vlaneseq
        %v1668 = vshrl.u32 %v1667, 7
        %v1669 = vsub.s32 0, %v1668
        %v1670 = vrot.slane %v1665, %v1669
        %v1676 = vunpack.c.l.b16 %v1661
        %v1677 = vunpack.c.l.b16 %v1662
        %v1678 = vunpack.c.l.b16 %v1663
        %v1679 = vunpack.c.l.b16 %v1664
        %v1680 = vpack.c.b16 %v1677, %v1676
        %v1681 = vpack.c.b16 %v1679, %v1678
        %v1685 = vsel %vm442, %v1660, 0
        %1687 = vmatprep.subr.bf16.mxu0 0
        %1688 = vmatpush1.bf16.msra.mxu0 %v1680
        %1689 = vmatprep.subr.bf16.mxu0 0
        %1690 = vmatpush1.bf16.msra.mxu0 %v1681
        %1691 = vmatprep.subr.bf16.mxu0 0
        %1692 = vmatpush1.bf16.msra.mxu0 0
        %1693 = vmatprep.subr.bf16.mxu0 0
        %1694 = vmatpush1.bf16.msra.mxu0 0
        %1695 = vmatprep.subr.bf16.mxu0 0
        %1696 = vmatpush1.bf16.msra.mxu0 0
        %1697 = vmatprep.subr.bf16.mxu0 0
        %1698 = vmatpush1.bf16.msra.mxu0 0
        %1699 = vmatprep.subr.bf16.mxu0 0
        %1700 = vmatpush1.bf16.msra.mxu0 0
        %1701 = vmatprep.subr.bf16.mxu0 0
        %1702 = vmatpush1.bf16.msra.mxu0 0
        %1703 = vmatprep.subr.bf16.mxu0 0
        %1704 = vmatpush1.bf16.msra.mxu0 0
        %1705 = vmatprep.subr.bf16.mxu0 0
        %1706 = vmatpush1.bf16.msra.mxu0 0
        %1707 = vmatprep.subr.bf16.mxu0 0
        %1708 = vmatpush1.bf16.msra.mxu0 0
        %1709 = vmatprep.subr.bf16.mxu0 0
        %1710 = vmatpush1.bf16.msra.mxu0 0
        %1711 = vmatprep.subr.bf16.mxu0 0
        %1712 = vmatpush1.bf16.msra.mxu0 0
        %1713 = vmatprep.subr.bf16.mxu0 0
        %1714 = vmatpush1.bf16.msra.mxu0 0
        %1715 = vmatprep.subr.bf16.mxu0 0
        %1716 = vmatpush1.bf16.msra.mxu0 0
        %1717 = vmatprep.subr.bf16.mxu0 0
        %1718 = vmatpush1.bf16.msra.mxu0 0
        %1719 = vmatprep.mubr.bf16.mxu0 0
        %1720 = vmatmul.mubr.bf16.gmra.mrb[0].mxu0 %v1685
        %v1721 = vpop.f32.mrb[0].mxu0
        %v1722 = vadd.f32 %v1670, %v1721
        %v1723 = vpop.f32.mrb[0].mxu0
        %v1724 = vpop.f32.mrb[0].mxu0
        %v1725 = vpop.f32.mrb[0].mxu0
        %1726 = vdwg.mxu0
        %v1727 = vpack.c.bf16 %v1722, %v1722
        %v1728 = vmul.bf16 %v1727, 1071267802
        %v1729 = vxor.u32 %v1728, 2147516416
        %v1731 = vmul.bf16 %v1729, 1069105081
        %v1732 = vpow.bf16.pop %v1731
        %v1733 = vadd.bf16 %v1732, 1065369472
        %v1734 = vrcp.bf16.pop %v1733
        %v1735 = vmul.bf16 1065369472, %v1734
        %v1736 = vmul.bf16 %v1727, %v1735
        %v1737 = vld [vmem:[%s11] sm:$0xf]
        %v1738 = vld [vmem:[%s11 + $0x4] sm:$0xf]
        %v1739 = vld [vmem:[%s11 + $0x8] sm:$0xf]
        %v1740 = vld [vmem:[%s11 + $0xc] sm:$0xf]
        %v1741 = vld [vmem:[%s11 + $0x10] sm:$0xf]
        %v1742 = vld [vmem:[%s11 + $0x14] sm:$0xf]
        %v1743 = vld [vmem:[%s11 + $0x18] sm:$0xf]
        %v1744 = vld [vmem:[%s11 + $0x1c] sm:$0xf]
        %v1745 = vld [vmem:[%s11 + $0x20] sm:$0xf]
        %v1746 = vld [vmem:[%s11 + $0x24] sm:$0xf]
        %v1747 = vld [vmem:[%s11 + $0x28] sm:$0xf]
        %v1748 = vld [vmem:[%s11 + $0x2c] sm:$0xf]
        %v1749 = vld [vmem:[%s11 + $0x30] sm:$0xf]
        %v1750 = vld [vmem:[%s11 + $0x34] sm:$0xf]
        %v1751 = vld [vmem:[%s11 + $0x38] sm:$0xf]
        %v1752 = vld [vmem:[%s11 + $0x3c] sm:$0xf]
        %v1753 = vld [vmem:[%s12] sm:$0x1]
        %v1755 = vlaneseq
        %v1756 = vshrl.u32 %v1755, 7
        %v1757 = vsub.s32 0, %v1756
        %v1758 = vrot.slane %v1753, %v1757
        %v1776 = vunpack.c.l.b16 %v1737
        %v1777 = vunpack.c.l.b16 %v1738
        %v1778 = vunpack.c.l.b16 %v1739
        %v1779 = vunpack.c.l.b16 %v1740
        %v1780 = vunpack.c.l.b16 %v1741
        %v1781 = vunpack.c.l.b16 %v1742
        %v1782 = vunpack.c.l.b16 %v1743
        %v1783 = vunpack.c.l.b16 %v1744
        %v1784 = vunpack.c.l.b16 %v1745
        %v1785 = vunpack.c.l.b16 %v1746
        %v1786 = vunpack.c.l.b16 %v1747
        %v1787 = vunpack.c.l.b16 %v1748
        %v1788 = vunpack.c.l.b16 %v1749
        %v1789 = vunpack.c.l.b16 %v1750
        %v1790 = vunpack.c.l.b16 %v1751
        %v1791 = vunpack.c.l.b16 %v1752
        %v1792 = vpack.c.b16 %v1777, %v1776
        %v1793 = vpack.c.b16 %v1779, %v1778
        %v1794 = vpack.c.b16 %v1781, %v1780
        %v1795 = vpack.c.b16 %v1783, %v1782
        %v1796 = vpack.c.b16 %v1785, %v1784
        %v1797 = vpack.c.b16 %v1787, %v1786
        %v1798 = vpack.c.b16 %v1789, %v1788
        %v1799 = vpack.c.b16 %v1791, %v1790
        %1808 = vmatprep.subr.bf16.mxu0 0
        %1809 = vmatpush1.bf16.msra.mxu0 %v1792
        %1810 = vmatprep.subr.bf16.mxu0 0
        %1811 = vmatpush1.bf16.msra.mxu0 %v1793
        %1812 = vmatprep.subr.bf16.mxu0 0
        %1813 = vmatpush1.bf16.msra.mxu0 %v1794
        %1814 = vmatprep.subr.bf16.mxu0 0
        %1815 = vmatpush1.bf16.msra.mxu0 %v1795
        %1816 = vmatprep.subr.bf16.mxu0 0
        %1817 = vmatpush1.bf16.msra.mxu0 %v1796
        %1818 = vmatprep.subr.bf16.mxu0 0
        %1819 = vmatpush1.bf16.msra.mxu0 %v1797
        %1820 = vmatprep.subr.bf16.mxu0 0
        %1821 = vmatpush1.bf16.msra.mxu0 %v1798
        %1822 = vmatprep.subr.bf16.mxu0 0
        %1823 = vmatpush1.bf16.msra.mxu0 %v1799
        %1824 = vmatprep.subr.bf16.mxu0 0
        %1825 = vmatpush1.bf16.msra.mxu0 0
        %1826 = vmatprep.subr.bf16.mxu0 0
        %1827 = vmatpush1.bf16.msra.mxu0 0
        %1828 = vmatprep.subr.bf16.mxu0 0
        %1829 = vmatpush1.bf16.msra.mxu0 0
        %1830 = vmatprep.subr.bf16.mxu0 0
        %1831 = vmatpush1.bf16.msra.mxu0 0
        %1832 = vmatprep.subr.bf16.mxu0 0
        %1833 = vmatpush1.bf16.msra.mxu0 0
        %1834 = vmatprep.subr.bf16.mxu0 0
        %1835 = vmatpush1.bf16.msra.mxu0 0
        %1836 = vmatprep.subr.bf16.mxu0 0
        %1837 = vmatpush1.bf16.msra.mxu0 0
        %1838 = vmatprep.subr.bf16.mxu0 0
        %1839 = vmatpush1.bf16.msra.mxu0 0
        %1840 = vmatprep.mubr.bf16.mxu0 0
        %1841 = vmatmul.mubr.bf16.gmra.mrb[0].mxu0 %v1736
        %v1842 = vpop.f32.mrb[0].mxu0
        %v1843 = vadd.f32 %v1758, %v1842
        %v1844 = vpop.f32.mrb[0].mxu0
        %v1845 = vpop.f32.mrb[0].mxu0
        %v1846 = vpop.f32.mrb[0].mxu0
        %1847 = vdwg.mxu0
        %v1848 = vadd.f32 %v1630, %v1843
        %1849 = vst.msk [vmem:[%s431] sm:$0xff] %vm442, %v1848
        %s1850 = sand.u32 %s313, 1
        %s1851 = scalar_lea.sflag [#allocation3], %s1850
        %s1852 = sand.u32 %s313, 1
        %s1853 = smul.addr %s1852, 8
        %s1854 = scalar_lea.vmem [#allocation2], %s1853
        // Predicated region
        $region73: #{tpu_custom_call.1} parent=71 // pred_check
          %p1855 = pneg %p323
        $region74: #{tpu_custom_call.1} parent=71 // pred_check_branch
          %1857 = sbr.rel (%p1855) target = $region76
        $region75: #{tpu_custom_call.1} parent=71 // pred_region
          %s1859 = ssub.s32 128, 128
          %1860 = vsyncadd %s1851, %s1859
          %s1861 = smul.addr %s27, 128
          %s1862 = scalar_lea.hbm %s13, %s1861
          %s1864 = sshll.u32 %s1854, 4
          %s1865 = int_to_ptr.vmem [resolvable:$true] %s1864
          %1867 = dma.vmem_to_hbm [thread:$0]  %s1865, 128, %s1862, %s1851
        $region76: #{tpu_custom_call.1} parent=71 // pred_fallthru
          _
      $region72: #{tpu_custom_call.1} parent=5 // pred_fallthru
        _
      %p1868 = scmp.le.s32.totalorder 2, %s22
      // Predicated region
      $region77: #{tpu_custom_call.1} parent=5 // pred_check
        %p1869 = pneg %p1868
      $region78: #{tpu_custom_call.1} parent=5 // pred_check_branch
        %1871 = sbr.rel (%p1869) target = $region80
      $region79: #{tpu_custom_call.1} parent=5 // pred_region
        %s1872 = ssub.s32 %s22, 2
        // Predicated region
        $region81: #{tpu_custom_call.1} parent=79 // pred_check
          %p1873 = pneg %p329
        $region82: #{tpu_custom_call.1} parent=79 // pred_check_branch
          %1875 = sbr.rel (%p1873) target = $region84
        $region83: #{tpu_custom_call.1} parent=79 // pred_region
          %s1876 = sand.u32 %s314, 1
          %s1877 = scalar_lea.sflag [#allocation3], %s1876
          %s1878 = sand.u32 %s314, 1
          %s1879 = smul.addr %s1878, 8
          %s1880 = scalar_lea.vmem [#allocation2], %s1879
          %1881 = dma.done %s1877, 128
        $region84: #{tpu_custom_call.1} parent=79 // pred_fallthru
          _
      $region80: #{tpu_custom_call.1} parent=5 // pred_fallthru
        _
    $region6: #{tpu_custom_call.1} parent=1 // loop_footer
      %s26 = sadd.s32 1, %s22
    $region7: #{tpu_custom_call.1} parent=1 // loop_footer_branch
      %21 = sbr.rel target = $region3
    $region8: #{tpu_custom_call.1} parent=1 // loop_exit
      _
    %1882 = vsyncpa [#allocation3], 1
    %s1883 = scalar_lea.sflag [#allocation3], 1
    %1884 = vsyncpa %s1883, 1

// kernel: tpu_custom_call.1
$region0: #{tpu_custom_call.1}
  #allocation0 [shape = 'u32[]', space=smem, size = 0x4, offset = 0x4, fixed_abs, tag = 'smem constant byte address 0x4 - core index']
  #allocation1 [shape = 'u32[144,128]{1,0:T(1,128)}', space=vmem, size = 0x12000, scoped, tag = 'internal scratch']
  %s0 = inlined_call_operand.vmem [shape: f32[2,8,32], index: 0, kind: input, shape index: {}]
  %s1 = inlined_call_operand.vmem [shape: f32[1,32], index: 1, kind: input, shape index: {}]
  %s2 = inlined_call_operand.vmem [shape: f32[1,32], index: 2, kind: input, shape index: {}]
  %s3 = inlined_call_operand.vmem [shape: bf16[32,96], index: 3, kind: input, shape index: {}]
  %s4 = inlined_call_operand.vmem [shape: f32[1,96], index: 4, kind: input, shape index: {}]
  %s5 = inlined_call_operand.vmem [shape: bf16[32,32], index: 5, kind: input, shape index: {}]
  %s6 = inlined_call_operand.vmem [shape: f32[1,32], index: 6, kind: input, shape index: {}]
  %s7 = inlined_call_operand.vmem [shape: f32[1,32], index: 7, kind: input, shape index: {}]
  %s8 = inlined_call_operand.vmem [shape: f32[1,32], index: 8, kind: input, shape index: {}]
  %s9 = inlined_call_operand.vmem [shape: bf16[32,128], index: 9, kind: input, shape index: {}]
  %s10 = inlined_call_operand.vmem [shape: f32[1,128], index: 10, kind: input, shape index: {}]
  %s11 = inlined_call_operand.vmem [shape: bf16[128,32], index: 11, kind: input, shape index: {}]
  %s12 = inlined_call_operand.vmem [shape: f32[1,32], index: 12, kind: input, shape index: {}]
  %s13 = inlined_call_operand.hbm [shape: f32[2,8,32], index: 13, kind: output, shape index: {}]
  %s14 = sld [smem:[#allocation0]]
  $region85: #{tpu_custom_call.1} parent=0
    _
  %s16 = ssub.s32 1, %s14
  %s17 = scalar_select 0, %s16, %s14
  $region1: #{tpu_custom_call.1} parent=0
    #allocation2 [shape = 'u8[8192]{0}', space=vmem, size = 0x2000, scoped, tag = 'output window, operand 0']
    #allocation3 [shape = 's32[2]{0}', space=sflag, size = 0x8, scoped, tag = 'scoped memory for tpu_custom_call.1']
    %18 = vsyncpa [#allocation3], 0
    %s19 = scalar_lea.sflag [#allocation3], 1
    %20 = vsyncpa %s19, 0
    loop: start=0, step=1, limit=4
    $region2: #{tpu_custom_call.1} parent=1 // loop_pre_header
      _
    $region3: #{tpu_custom_call.1} parent=1 // loop_header
      %s22 = sphi 0, %s26
      %p23 = scmp.ge.s32.totalorder %s22, 4
      %s32 = sphi 0, %s34
      %s35 = sphi 0, %s32
      %s36 = sphi 0, %s35
      %s52 = sphi 0, %s36
      %s56 = sphi 0, %s56
      %s58 = sphi 0, %s56
      %s59 = sphi 0, %s58
      %s73 = sphi 0, %s59
      %s77 = sphi 0, %s77
      %s79 = sphi 0, %s77
      %s80 = sphi 0, %s79
      %s94 = sphi 0, %s80
      %s98 = sphi 0, %s98
      %s100 = sphi 0, %s98
      %s101 = sphi 0, %s100
      %s115 = sphi 0, %s101
      %s119 = sphi 0, %s119
      %s121 = sphi 0, %s119
      %s122 = sphi 0, %s121
      %s136 = sphi 0, %s122
      %s140 = sphi 0, %s140
      %s142 = sphi 0, %s140
      %s143 = sphi 0, %s142
      %s157 = sphi 0, %s143
      %s161 = sphi 0, %s161
      %s163 = sphi 0, %s161
      %s164 = sphi 0, %s163
      %s178 = sphi 0, %s164
      %s182 = sphi 0, %s182
      %s184 = sphi 0, %s182
      %s185 = sphi 0, %s184
      %s199 = sphi 0, %s185
      %s203 = sphi 0, %s203
      %s205 = sphi 0, %s203
      %s206 = sphi 0, %s205
      %s220 = sphi 0, %s206
      %s224 = sphi 0, %s224
      %s226 = sphi 0, %s224
      %s227 = sphi 0, %s226
      %s241 = sphi 0, %s227
      %s245 = sphi 0, %s245
      %s247 = sphi 0, %s245
      %s248 = sphi 0, %s247
      %s262 = sphi 0, %s248
      %s266 = sphi 0, %s266
      %s268 = sphi 0, %s266
      %s269 = sphi 0, %s268
      %s283 = sphi 0, %s269
      %s287 = sphi 0, %s287
      %s289 = sphi 0, %s287
      %s290 = sphi 0, %s289
      %s304 = sphi 0, %s290
      %s310 = sphi 0, %s312
      %s313 = sphi 0, %s310
      %s314 = sphi 0, %s313
      %s330 = sphi 0, %s314
    $region4: #{tpu_custom_call.1} parent=1 // loop_header_branch
      %25 = sbr.rel (%p23) target = $region8
    $region5: #{tpu_custom_call.1} parent=1 // loop_body
      %s27 = ssub.s32 %s22, 1
      %s28 = ssub.s32 %s22, 2
      %s29 = sadd.s32 %s22, 1
      %s30 = ssub.s32 %s22, %s29
      %p31 = scmp.eq.s32.totalorder %s30, 0
      %s33 = sadd.s32 %s32, 1
      %s34 = scalar_select %p31, %s32, %s33
      %p37 = pneg %p31
      %p38 = scmp.eq.s32.totalorder %s22, 1
      %p39 = por %p37, %p38
      %p40 = scmp.ne.s32.totalorder %s32, %s35
      %p41 = scmp.eq.s32.totalorder %s22, 0
      %p42 = por %p40, %p41
      %p43 = scmp.ne.s32.totalorder %s32, %s35
      %p44 = scmp.eq.s32.totalorder %s27, 1
      %p45 = por %p43, %p44
      %p46 = scmp.ne.s32.totalorder %s35, %s36
      %p47 = scmp.eq.s32.totalorder %s27, 0
      %p48 = por %p46, %p47
      %p49 = scmp.ne.s32.totalorder %s35, %s36
      %p50 = scmp.eq.s32.totalorder %s28, 1
      %p51 = por %p49, %p50
      %p53 = scmp.ne.s32.totalorder %s36, %s52
      %p54 = scmp.eq.s32.totalorder %s28, 0
      %p55 = por %p53, %p54
      %s57 = sadd.s32 %s56, 1
      %p60 = scmp.eq.s32.totalorder %s22, 1
      %p61 = scmp.ne.s32.totalorder %s56, %s58
      %p62 = scmp.eq.s32.totalorder %s22, 0
      %p63 = por %p61, %p62
      %p64 = scmp.ne.s32.totalorder %s56, %s58
      %p65 = scmp.eq.s32.totalorder %s27, 1
      %p66 = por %p64, %p65
      %p67 = scmp.ne.s32.totalorder %s58, %s59
      %p68 = scmp.eq.s32.totalorder %s27, 0
      %p69 = por %p67, %p68
      %p70 = scmp.ne.s32.totalorder %s58, %s59
      %p71 = scmp.eq.s32.totalorder %s28, 1
      %p72 = por %p70, %p71
      %p74 = scmp.ne.s32.totalorder %s59, %s73
      %p75 = scmp.eq.s32.totalorder %s28, 0
      %p76 = por %p74, %p75
      %s78 = sadd.s32 %s77, 1
      %p81 = scmp.eq.s32.totalorder %s22, 1
      %p82 = scmp.ne.s32.totalorder %s77, %s79
      %p83 = scmp.eq.s32.totalorder %s22, 0
      %p84 = por %p82, %p83
      %p85 = scmp.ne.s32.totalorder %s77, %s79
      %p86 = scmp.eq.s32.totalorder %s27, 1
      %p87 = por %p85, %p86
      %p88 = scmp.ne.s32.totalorder %s79, %s80
      %p89 = scmp.eq.s32.totalorder %s27, 0
      %p90 = por %p88, %p89
      %p91 = scmp.ne.s32.totalorder %s79, %s80
      %p92 = scmp.eq.s32.totalorder %s28, 1
      %p93 = por %p91, %p92
      %p95 = scmp.ne.s32.totalorder %s80, %s94
      %p96 = scmp.eq.s32.totalorder %s28, 0
      %p97 = por %p95, %p96
      %s99 = sadd.s32 %s98, 1
      %p102 = scmp.eq.s32.totalorder %s22, 1
      %p103 = scmp.ne.s32.totalorder %s98, %s100
      %p104 = scmp.eq.s32.totalorder %s22, 0
      %p105 = por %p103, %p104
      %p106 = scmp.ne.s32.totalorder %s98, %s100
      %p107 = scmp.eq.s32.totalorder %s27, 1
      %p108 = por %p106, %p107
      %p109 = scmp.ne.s32.totalorder %s100, %s101
      %p110 = scmp.eq.s32.totalorder %s27, 0
      %p111 = por %p109, %p110
      %p112 = scmp.ne.s32.totalorder %s100, %s101
      %p113 = scmp.eq.s32.totalorder %s28, 1
      %p114 = por %p112, %p113
      %p116 = scmp.ne.s32.totalorder %s101, %s115
      %p117 = scmp.eq.s32.totalorder %s28, 0
      %p118 = por %p116, %p117
      %s120 = sadd.s32 %s119, 1
      %p123 = scmp.eq.s32.totalorder %s22, 1
      %p124 = scmp.ne.s32.totalorder %s119, %s121
      %p125 = scmp.eq.s32.totalorder %s22, 0
      %p126 = por %p124, %p125
      %p127 = scmp.ne.s32.totalorder %s119, %s121
      %p128 = scmp.eq.s32.totalorder %s27, 1
      %p129 = por %p127, %p128
      %p130 = scmp.ne.s32.totalorder %s121, %s122
      %p131 = scmp.eq.s32.totalorder %s27, 0
      %p132 = por %p130, %p131
      %p133 = scmp.ne.s32.totalorder %s121, %s122
      %p134 = scmp.eq.s32.totalorder %s28, 1
      %p135 = por %p133, %p134
      %p137 = scmp.ne.s32.totalorder %s122, %s136
      %p138 = scmp.eq.s32.totalorder %s28, 0
      %p139 = por %p137, %p138
      %s141 = sadd.s32 %s140, 1
      %p144 = scmp.eq.s32.totalorder %s22, 1
      %p145 = scmp.ne.s32.totalorder %s140, %s142
      %p146 = scmp.eq.s32.totalorder %s22, 0
      %p147 = por %p145, %p146
      %p148 = scmp.ne.s32.totalorder %s140, %s142
      %p149 = scmp.eq.s32.totalorder %s27, 1
      %p150 = por %p148, %p149
      %p151 = scmp.ne.s32.totalorder %s142, %s143
      %p152 = scmp.eq.s32.totalorder %s27, 0
      %p153 = por %p151, %p152
      %p154 = scmp.ne.s32.totalorder %s142, %s143
      %p155 = scmp.eq.s32.totalorder %s28, 1
      %p156 = por %p154, %p155
      %p158 = scmp.ne.s32.totalorder %s143, %s157
      %p159 = scmp.eq.s32.totalorder %s28, 0
      %p160 = por %p158, %p159
      %s162 = sadd.s32 %s161, 1
      %p165 = scmp.eq.s32.totalorder %s22, 1
      %p166 = scmp.ne.s32.totalorder %s161, %s163
      %p167 = scmp.eq.s32.totalorder %s22, 0
      %p168 = por %p166, %p167
      %p169 = scmp.ne.s32.totalorder %s161, %s163
      %p170 = scmp.eq.s32.totalorder %s27, 1
      %p171 = por %p169, %p170
      %p172 = scmp.ne.s32.totalorder %s163, %s164
      %p173 = scmp.eq.s32.totalorder %s27, 0
      %p174 = por %p172, %p173
      %p175 = scmp.ne.s32.totalorder %s163, %s164
      %p176 = scmp.eq.s32.totalorder %s28, 1
      %p177 = por %p175, %p176
      %p179 = scmp.ne.s32.totalorder %s164, %s178
      %p180 = scmp.eq.s32.totalorder %s28, 0
      %p181 = por %p179, %p180
      %s183 = sadd.s32 %s182, 1
      %p186 = scmp.eq.s32.totalorder %s22, 1
      %p187 = scmp.ne.s32.totalorder %s182, %s184
      %p188 = scmp.eq.s32.totalorder %s22, 0
      %p189 = por %p187, %p188
      %p190 = scmp.ne.s32.totalorder %s182, %s184
      %p191 = scmp.eq.s32.totalorder %s27, 1
      %p192 = por %p190, %p191
      %p193 = scmp.ne.s32.totalorder %s184, %s185
      %p194 = scmp.eq.s32.totalorder %s27, 0
      %p195 = por %p193, %p194
      %p196 = scmp.ne.s32.totalorder %s184, %s185
      %p197 = scmp.eq.s32.totalorder %s28, 1
      %p198 = por %p196, %p197
      %p200 = scmp.ne.s32.totalorder %s185, %s199
      %p201 = scmp.eq.s32.totalorder %s28, 0
      %p202 = por %p200, %p201
      %s204 = sadd.s32 %s203, 1
      %p207 = scmp.eq.s32.totalorder %s22, 1
      %p208 = scmp.ne.s32.totalorder %s203, %s205
      %p209 = scmp.eq.s32.totalorder %s22, 0
      %p210 = por %p208, %p209
      %p211 = scmp.ne.s32.totalorder %s203, %s205
      %p212 = scmp.eq.s32.totalorder %s27, 1
      %p213 = por %p211, %p212
      %p214 = scmp.ne.s32.totalorder %s205, %s206
      %p215 = scmp.eq.s32.totalorder %s27, 0
      %p216 = por %p214, %p215
      %p217 = scmp.ne.s32.totalorder %s205, %s206
      %p218 = scmp.eq.s32.totalorder %s28, 1
      %p219 = por %p217, %p218
      %p221 = scmp.ne.s32.totalorder %s206, %s220
      %p222 = scmp.eq.s32.totalorder %s28, 0
      %p223 = por %p221, %p222
      %s225 = sadd.s32 %s224, 1
      %p228 = scmp.eq.s32.totalorder %s22, 1
      %p229 = scmp.ne.s32.totalorder %s224, %s226
      %p230 = scmp.eq.s32.totalorder %s22, 0
      %p231 = por %p229, %p230
      %p232 = scmp.ne.s32.totalorder %s224, %s226
      %p233 = scmp.eq.s32.totalorder %s27, 1
      %p234 = por %p232, %p233
      %p235 = scmp.ne.s32.totalorder %s226, %s227
      %p236 = scmp.eq.s32.totalorder %s27, 0
      %p237 = por %p235, %p236
      %p238 = scmp.ne.s32.totalorder %s226, %s227
      %p239 = scmp.eq.s32.totalorder %s28, 1
      %p240 = por %p238, %p239
      %p242 = scmp.ne.s32.totalorder %s227, %s241
      %p243 = scmp.eq.s32.totalorder %s28, 0
      %p244 = por %p242, %p243
      %s246 = sadd.s32 %s245, 1
      %p249 = scmp.eq.s32.totalorder %s22, 1
      %p250 = scmp.ne.s32.totalorder %s245, %s247
      %p251 = scmp.eq.s32.totalorder %s22, 0
      %p252 = por %p250, %p251
      %p253 = scmp.ne.s32.totalorder %s245, %s247
      %p254 = scmp.eq.s32.totalorder %s27, 1
      %p255 = por %p253, %p254
      %p256 = scmp.ne.s32.totalorder %s247, %s248
      %p257 = scmp.eq.s32.totalorder %s27, 0
      %p258 = por %p256, %p257
      %p259 = scmp.ne.s32.totalorder %s247, %s248
      %p260 = scmp.eq.s32.totalorder %s28, 1
      %p261 = por %p259, %p260
      %p263 = scmp.ne.s32.totalorder %s248, %s262
      %p264 = scmp.eq.s32.totalorder %s28, 0
      %p265 = por %p263, %p264
      %s267 = sadd.s32 %s266, 1
      %p270 = scmp.eq.s32.totalorder %s22, 1
      %p271 = scmp.ne.s32.totalorder %s266, %s268
      %p272 = scmp.eq.s32.totalorder %s22, 0
      %p273 = por %p271, %p272
      %p274 = scmp.ne.s32.totalorder %s266, %s268
      %p275 = scmp.eq.s32.totalorder %s27, 1
      %p276 = por %p274, %p275
      %p277 = scmp.ne.s32.totalorder %s268, %s269
      %p278 = scmp.eq.s32.totalorder %s27, 0
      %p279 = por %p277, %p278
      %p280 = scmp.ne.s32.totalorder %s268, %s269
      %p281 = scmp.eq.s32.totalorder %s28, 1
      %p282 = por %p280, %p281
      %p284 = scmp.ne.s32.totalorder %s269, %s283
      %p285 = scmp.eq.s32.totalorder %s28, 0
      %p286 = por %p284, %p285
      %s288 = sadd.s32 %s287, 1
      %p291 = scmp.eq.s32.totalorder %s22, 1
      %p292 = scmp.ne.s32.totalorder %s287, %s289
      %p293 = scmp.eq.s32.totalorder %s22, 0
      %p294 = por %p292, %p293
      %p295 = scmp.ne.s32.totalorder %s287, %s289
      %p296 = scmp.eq.s32.totalorder %s27, 1
      %p297 = por %p295, %p296
      %p298 = scmp.ne.s32.totalorder %s289, %s290
      %p299 = scmp.eq.s32.totalorder %s27, 0
      %p300 = por %p298, %p299
      %p301 = scmp.ne.s32.totalorder %s289, %s290
      %p302 = scmp.eq.s32.totalorder %s28, 1
      %p303 = por %p301, %p302
      %p305 = scmp.ne.s32.totalorder %s290, %s304
      %p306 = scmp.eq.s32.totalorder %s28, 0
      %p307 = por %p305, %p306
      %s308 = ssub.s32 %s22, %s29
      %p309 = scmp.eq.s32.totalorder %s308, 0
      %s311 = sadd.s32 %s310, 1
      %s312 = scalar_select %p309, %s310, %s311
      %p315 = pneg %p309
      %p316 = scmp.eq.s32.totalorder %s22, 1
      %p317 = por %p315, %p316
      %p318 = scmp.ne.s32.totalorder %s310, %s313
      %p319 = scmp.eq.s32.totalorder %s22, 0
      %p320 = por %p318, %p319
      %p321 = scmp.ne.s32.totalorder %s310, %s313
      %p322 = scmp.eq.s32.totalorder %s27, 1
      %p323 = por %p321, %p322
      %p324 = scmp.ne.s32.totalorder %s313, %s314
      %p325 = scmp.eq.s32.totalorder %s27, 0
      %p326 = por %p324, %p325
      %p327 = scmp.ne.s32.totalorder %s313, %s314
      %p328 = scmp.eq.s32.totalorder %s28, 1
      %p329 = por %p327, %p328
      %p331 = scmp.ne.s32.totalorder %s314, %s330
      %p332 = scmp.eq.s32.totalorder %s28, 0
      %p333 = por %p331, %p332
      %p334 = scmp.le.s32.totalorder 1, %s22
      %p335 = scmp.lt.s32.totalorder %s22, 3
      %p336 = pnand %p334, %p335
      %p337 = pneg %p336
      // Predicated region
      $region9: #{tpu_custom_call.1} parent=5 // pred_check
        _
      $region10: #{tpu_custom_call.1} parent=5 // pred_check_branch
        %339 = sbr.rel (%p336) target = $region12
      $region11: #{tpu_custom_call.1} parent=5 // pred_region
        %s340 = ssub.s32 %s22, 1
        // Predicated region
        $region13: #{tpu_custom_call.1} parent=11 // pred_check
          %p341 = pneg %p69
        $region14: #{tpu_custom_call.1} parent=11 // pred_check_branch
          %343 = sbr.rel (%p341) target = $region16
        $region15: #{tpu_custom_call.1} parent=11 // pred_region
          _
        $region16: #{tpu_custom_call.1} parent=11 // pred_fallthru
          _
        // Predicated region
        $region17: #{tpu_custom_call.1} parent=11 // pred_check
          %p344 = pneg %p90
        $region18: #{tpu_custom_call.1} parent=11 // pred_check_branch
          %346 = sbr.rel (%p344) target = $region20
        $region19: #{tpu_custom_call.1} parent=11 // pred_region
          _
        $region20: #{tpu_custom_call.1} parent=11 // pred_fallthru
          _
        // Predicated region
        $region21: #{tpu_custom_call.1} parent=11 // pred_check
          %p347 = pneg %p111
        $region22: #{tpu_custom_call.1} parent=11 // pred_check_branch
          %349 = sbr.rel (%p347) target = $region24
        $region23: #{tpu_custom_call.1} parent=11 // pred_region
          _
        $region24: #{tpu_custom_call.1} parent=11 // pred_fallthru
          _
        // Predicated region
        $region25: #{tpu_custom_call.1} parent=11 // pred_check
          %p350 = pneg %p132
        $region26: #{tpu_custom_call.1} parent=11 // pred_check_branch
          %352 = sbr.rel (%p350) target = $region28
        $region27: #{tpu_custom_call.1} parent=11 // pred_region
          _
        $region28: #{tpu_custom_call.1} parent=11 // pred_fallthru
          _
        // Predicated region
        $region29: #{tpu_custom_call.1} parent=11 // pred_check
          %p353 = pneg %p153
        $region30: #{tpu_custom_call.1} parent=11 // pred_check_branch
          %355 = sbr.rel (%p353) target = $region32
        $region31: #{tpu_custom_call.1} parent=11 // pred_region
          _
        $region32: #{tpu_custom_call.1} parent=11 // pred_fallthru
          _
        // Predicated region
        $region33: #{tpu_custom_call.1} parent=11 // pred_check
          %p356 = pneg %p174
        $region34: #{tpu_custom_call.1} parent=11 // pred_check_branch
          %358 = sbr.rel (%p356) target = $region36
        $region35: #{tpu_custom_call.1} parent=11 // pred_region
          _
        $region36: #{tpu_custom_call.1} parent=11 // pred_fallthru
          _
        // Predicated region
        $region37: #{tpu_custom_call.1} parent=11 // pred_check
          %p359 = pneg %p195
        $region38: #{tpu_custom_call.1} parent=11 // pred_check_branch
          %361 = sbr.rel (%p359) target = $region40
        $region39: #{tpu_custom_call.1} parent=11 // pred_region
          _
        $region40: #{tpu_custom_call.1} parent=11 // pred_fallthru
          _
        // Predicated region
        $region41: #{tpu_custom_call.1} parent=11 // pred_check
          %p362 = pneg %p216
        $region42: #{tpu_custom_call.1} parent=11 // pred_check_branch
          %364 = sbr.rel (%p362) target = $region44
        $region43: #{tpu_custom_call.1} parent=11 // pred_region
          _
        $region44: #{tpu_custom_call.1} parent=11 // pred_fallthru
          _
        // Predicated region
        $region45: #{tpu_custom_call.1} parent=11 // pred_check
          %p365 = pneg %p237
        $region46: #{tpu_custom_call.1} parent=11 // pred_check_branch
          %367 = sbr.rel (%p365) target = $region48
        $region47: #{tpu_custom_call.1} parent=11 // pred_region
          _
        $region48: #{tpu_custom_call.1} parent=11 // pred_fallthru
          _
        // Predicated region
        $region49: #{tpu_custom_call.1} parent=11 // pred_check
          %p368 = pneg %p258
        $region50: #{tpu_custom_call.1} parent=11 // pred_check_branch
          %370 = sbr.rel (%p368) target = $region52
        $region51: #{tpu_custom_call.1} parent=11 // pred_region
          _
        $region52: #{tpu_custom_call.1} parent=11 // pred_fallthru
          _
        // Predicated region
        $region53: #{tpu_custom_call.1} parent=11 // pred_check
          %p371 = pneg %p279
        $region54: #{tpu_custom_call.1} parent=11 // pred_check_branch
          %373 = sbr.rel (%p371) target = $region56
        $region55: #{tpu_custom_call.1} parent=11 // pred_region
          _
        $region56: #{tpu_custom_call.1} parent=11 // pred_fallthru
          _
        // Predicated region
        $region57: #{tpu_custom_call.1} parent=11 // pred_check
          %p374 = pneg %p300
        $region58: #{tpu_custom_call.1} parent=11 // pred_check_branch
          %376 = sbr.rel (%p374) target = $region60
        $region59: #{tpu_custom_call.1} parent=11 // pred_region
          _
        $region60: #{tpu_custom_call.1} parent=11 // pred_fallthru
          _
      $region12: #{tpu_custom_call.1} parent=5 // pred_fallthru
        _
      %p377 = scmp.lt.s32.totalorder %s22, 2
      // Predicated region
      $region61: #{tpu_custom_call.1} parent=5 // pred_check
        %p378 = pneg %p377
      $region62: #{tpu_custom_call.1} parent=5 // pred_check_branch
        %380 = sbr.rel (%p378) target = $region64
      $region63: #{tpu_custom_call.1} parent=5 // pred_region
        // Predicated region
        $region65: #{tpu_custom_call.1} parent=63 // pred_check
          %p381 = pneg %p42
        $region66: #{tpu_custom_call.1} parent=63 // pred_check_branch
          %383 = sbr.rel (%p381) target = $region68
        $region67: #{tpu_custom_call.1} parent=63 // pred_region
          %p384 = scmp.lt.s32.totalorder %s22, 1
          %s385 = scalar_select %p384, %s22, 1
          %s386 = smul.addr %s385, 8
          %s387 = scalar_lea.vmem %s0, %s386
        $region68: #{tpu_custom_call.1} parent=63 // pred_fallthru
          _
      $region64: #{tpu_custom_call.1} parent=5 // pred_fallthru
        _
      %p388 = scmp.le.s32.totalorder 1, %s22
      %p389 = scmp.lt.s32.totalorder %s22, 3
      %p390 = pnand %p388, %p389
      %p391 = pneg %p390
      // Predicated region
      $region69: #{tpu_custom_call.1} parent=5 // pred_check
        _
      $region70: #{tpu_custom_call.1} parent=5 // pred_check_branch
        %393 = sbr.rel (%p390) target = $region72
      $region71: #{tpu_custom_call.1} parent=5 // pred_region
        %s394 = ssub.s32 %s22, 1
        %p395 = scmp.lt.s32.totalorder %s27, 1
        %s396 = scalar_select %p395, %s27, 1
        %s397 = smul.addr %s396, 8
        %s398 = scalar_lea.vmem %s0, %s397
        %p399 = pneg %p48
        %p400 = pneg %p45
        %p401 = pneg %p69
        %p402 = pneg %p66
        %p403 = pneg %p90
        %p404 = pneg %p87
        %p405 = pneg %p111
        %p406 = pneg %p108
        %p407 = pneg %p132
        %p408 = pneg %p129
        %p409 = pneg %p153
        %p410 = pneg %p150
        %p411 = pneg %p174
        %p412 = pneg %p171
        %p413 = pneg %p195
        %p414 = pneg %p192
        %p415 = pneg %p216
        %p416 = pneg %p213
        %p417 = pneg %p237
        %p418 = pneg %p234
        %p419 = pneg %p258
        %p420 = pneg %p255
        %p421 = pneg %p279
        %p422 = pneg %p276
        %p423 = pneg %p300
        %p424 = pneg %p297
        %p425 = pneg %p326
        %p426 = pneg %p323
        %s427 = sand.u32 %s313, 1
        %s428 = scalar_lea.sflag [#allocation3], %s427
        %s429 = sand.u32 %s313, 1
        %s430 = smul.addr %s429, 8
        %s431 = scalar_lea.vmem [#allocation2], %s430
        %p432 = scmp.lt.s32.totalorder %s27, 1
        %s433 = scalar_select %p432, %s27, 1
        %s434 = smul.addr %s433, 8
        %s435 = scalar_lea.vmem %s0, %s434
        %v439 = vld [vmem:[%s435] sm:$0xff]
        %v440 = vld [vmem:[%s1] sm:$0x1]
        %v441 = vld [vmem:[%s2] sm:$0x1]
        %vm442 = vcmask 261120
        %v443 = vsel %vm442, %v439, 0.0
        %444 = vadd.xlane.f32.xlu0 %v443
        %v445 = vpop.xlane.xlu0 %444
        %v446 = vrcp.pop 32.0
        %v447 = vmul.f32 %v445, %v446
        %v448 = vsub.f32 %v439, %v447
        %v449 = vmul.f32 %v448, %v448
        %v450 = vsel %vm442, %v449, 0.0
        %451 = vadd.xlane.f32.xlu0 %v450
        %v452 = vpop.xlane.xlu0 %451
        %v453 = vmul.f32 %v452, %v446
        %v454 = vadd.f32 %v453, 1e-05
        %v455 = vrsqrt.pop %v454
        %v456 = vmul.f32 %v448, %v455
        %v458 = vlaneseq
        %v459 = vshrl.u32 %v458, 7
        %v460 = vsub.s32 0, %v459
        %v461 = vrot.slane %v440, %v460
        %v463 = vmul.f32 %v456, %v461
        %v465 = vlaneseq
        %v466 = vshrl.u32 %v465, 7
        %v467 = vsub.s32 0, %v466
        %v468 = vrot.slane %v441, %v467
        %v470 = vadd.f32 %v463, %v468
        %v471 = vpack.c.bf16 %v470, %v470
        %v472 = vld [vmem:[%s3] sm:$0xf]
        %v473 = vld [vmem:[%s3 + $0x4] sm:$0xf]
        %v474 = vld [vmem:[%s3 + $0x8] sm:$0xf]
        %v475 = vld [vmem:[%s3 + $0xc] sm:$0xf]
        %v476 = vld [vmem:[%s4] sm:$0x1]
        %v478 = vlaneseq
        %v479 = vshrl.u32 %v478, 7
        %v480 = vsub.s32 0, %v479
        %v481 = vrot.slane %v476, %v480
        %v487 = vunpack.c.l.b16 %v472
        %v488 = vunpack.c.l.b16 %v473
        %v489 = vunpack.c.l.b16 %v474
        %v490 = vunpack.c.l.b16 %v475
        %v491 = vpack.c.b16 %v488, %v487
        %v492 = vpack.c.b16 %v490, %v489
        %v496 = vsel %vm442, %v471, 0
        %498 = vmatprep.subr.bf16.mxu0 0
        %499 = vmatpush1.bf16.msra.mxu0 %v491
        %500 = vmatprep.subr.bf16.mxu0 0
        %501 = vmatpush1.bf16.msra.mxu0 %v492
        %502 = vmatprep.subr.bf16.mxu0 0
        %503 = vmatpush1.bf16.msra.mxu0 0
        %504 = vmatprep.subr.bf16.mxu0 0
        %505 = vmatpush1.bf16.msra.mxu0 0
        %506 = vmatprep.subr.bf16.mxu0 0
        %507 = vmatpush1.bf16.msra.mxu0 0
        %508 = vmatprep.subr.bf16.mxu0 0
        %509 = vmatpush1.bf16.msra.mxu0 0
        %510 = vmatprep.subr.bf16.mxu0 0
        %511 = vmatpush1.bf16.msra.mxu0 0
        %512 = vmatprep.subr.bf16.mxu0 0
        %513 = vmatpush1.bf16.msra.mxu0 0
        %514 = vmatprep.subr.bf16.mxu0 0
        %515 = vmatpush1.bf16.msra.mxu0 0
        %516 = vmatprep.subr.bf16.mxu0 0
        %517 = vmatpush1.bf16.msra.mxu0 0
        %518 = vmatprep.subr.bf16.mxu0 0
        %519 = vmatpush1.bf16.msra.mxu0 0
        %520 = vmatprep.subr.bf16.mxu0 0
        %521 = vmatpush1.bf16.msra.mxu0 0
        %522 = vmatprep.subr.bf16.mxu0 0
        %523 = vmatpush1.bf16.msra.mxu0 0
        %524 = vmatprep.subr.bf16.mxu0 0
        %525 = vmatpush1.bf16.msra.mxu0 0
        %526 = vmatprep.subr.bf16.mxu0 0
        %527 = vmatpush1.bf16.msra.mxu0 0
        %528 = vmatprep.subr.bf16.mxu0 0
        %529 = vmatpush1.bf16.msra.mxu0 0
        %530 = vmatprep.mubr.bf16.mxu0 0
        %531 = vmatmul.mubr.bf16.gmra.mrb[0].mxu0 %v496
        %v532 = vpop.f32.mrb[0].mxu0
        %v533 = vadd.f32 %v481, %v532
        %v534 = vpop.f32.mrb[0].mxu0
        %v535 = vpop.f32.mrb[0].mxu0
        %v536 = vpop.f32.mrb[0].mxu0
        %537 = vdwg.mxu0
        %539 = vrot.lane.b32.xlu0 %v533, 120
        %v540 = vpop.permute.xlu0 %539
        %542 = vrot.lane.b32.xlu0 %v533, 112
        %v543 = vpop.permute.xlu0 %542
        %545 = vrot.lane.b32.xlu0 %v533, 104
        %v546 = vpop.permute.xlu0 %545
        %v548 = vcombine.low %v533, %v543
        %v549 = vcombine.high %v533, %v543
        %v551 = vunpack.c.l.s4 1983009808
        %v552 = vunpack.c.0.s8 %v551
        %v553 = vlaneseq
        %v554 = vshrl.u32 %v553, 7
        %v555 = vsub.s32 %v552, %v554
        %v556 = vrot.slane %v548, %v555
        %v558 = vunpack.c.l.s4 1983009808
        %v559 = vunpack.c.0.s8 %v558
        %v560 = vlaneseq
        %v561 = vshrl.u32 %v560, 7
        %v562 = vsub.s32 %v559, %v561
        %v563 = vrot.slane %v549, %v562
        %v564 = vcombine.low %v540, %v546
        %v565 = vcombine.high %v540, %v546
        %v567 = vunpack.c.l.s4 1983009808
        %v568 = vunpack.c.0.s8 %v567
        %v569 = vlaneseq
        %v570 = vshrl.u32 %v569, 7
        %v571 = vsub.s32 %v568, %v570
        %v572 = vrot.slane %v564, %v571
        %v574 = vunpack.c.l.s4 1983009808
        %v575 = vunpack.c.0.s8 %v574
        %v576 = vlaneseq
        %v577 = vshrl.u32 %v576, 7
        %v578 = vsub.s32 %v575, %v577
        %v579 = vrot.slane %v565, %v578
        %v580 = vcombine.low %v556, %v572
        %v581 = vcombine.high %v556, %v572
        %v583 = vunpack.c.l.s4 1934713408
        %v584 = vunpack.c.0.s8 %v583
        %v585 = vlaneseq
        %v586 = vshrl.u32 %v585, 7
        %v587 = vsub.s32 %v584, %v586
        %v588 = vrot.slane %v580, %v587
        %v590 = vunpack.c.l.s4 1934713408
        %v591 = vunpack.c.0.s8 %v590
        %v592 = vlaneseq
        %v593 = vshrl.u32 %v592, 7
        %v594 = vsub.s32 %v591, %v593
        %v595 = vrot.slane %v581, %v594
        %v596 = vcombine.low %v563, %v579
        %v597 = vcombine.high %v563, %v579
        %v599 = vunpack.c.l.s4 1934713408
        %v600 = vunpack.c.0.s8 %v599
        %v601 = vlaneseq
        %v602 = vshrl.u32 %v601, 7
        %v603 = vsub.s32 %v600, %v602
        %v604 = vrot.slane %v596, %v603
        %v606 = vunpack.c.l.s4 1934713408
        %v607 = vunpack.c.0.s8 %v606
        %v608 = vlaneseq
        %v609 = vshrl.u32 %v608, 7
        %v610 = vsub.s32 %v607, %v609
        %v611 = vrot.slane %v597, %v610
        %v612 = vcombine.high %v588, 0.0
        %v613 = vcombine.high %v595, 0.0
        %v614 = vcombine.high %v604, 0.0
        %v615 = vcombine.high %v611, 0.0
        %v616 = vcombine.low %v588, %v595
        %v618 = vunpack.c.l.s4 1983009808
        %v619 = vunpack.c.0.s8 %v618
        %v620 = vlaneseq
        %v621 = vshrl.u32 %v620, 7
        %v622 = vsub.s32 %v619, %v621
        %v623 = vrot.slane %v616, %v622
        %v624 = vcombine.low %v612, %v613
        %v626 = vunpack.c.l.s4 1983009808
        %v627 = vunpack.c.0.s8 %v626
        %v628 = vlaneseq
        %v629 = vshrl.u32 %v628, 7
        %v630 = vsub.s32 %v627, %v629
        %v631 = vrot.slane %v624, %v630
        %v632 = vcombine.low %v604, %v611
        %v634 = vunpack.c.l.s4 1983009808
        %v635 = vunpack.c.0.s8 %v634
        %v636 = vlaneseq
        %v637 = vshrl.u32 %v636, 7
        %v638 = vsub.s32 %v635, %v637
        %v639 = vrot.slane %v632, %v638
        %v640 = vcombine.low %v614, %v615
        %v642 = vunpack.c.l.s4 1983009808
        %v643 = vunpack.c.0.s8 %v642
        %v644 = vlaneseq
        %v645 = vshrl.u32 %v644, 7
        %v646 = vsub.s32 %v643, %v645
        %v647 = vrot.slane %v640, %v646
        %v648 = vcombine.low %v623, %v631
        %v649 = vcombine.high %v623, %v631
        %v651 = vunpack.c.l.s4 1934713408
        %v652 = vunpack.c.0.s8 %v651
        %v653 = vlaneseq
        %v654 = vshrl.u32 %v653, 7
        %v655 = vsub.s32 %v652, %v654
        %v656 = vrot.slane %v648, %v655
        %v658 = vunpack.c.l.s4 1934713408
        %v659 = vunpack.c.0.s8 %v658
        %v660 = vlaneseq
        %v661 = vshrl.u32 %v660, 7
        %v662 = vsub.s32 %v659, %v661
        %v663 = vrot.slane %v649, %v662
        %v664 = vcombine.low %v639, %v647
        %v665 = vcombine.high %v639, %v647
        %v667 = vunpack.c.l.s4 1934713408
        %v668 = vunpack.c.0.s8 %v667
        %v669 = vlaneseq
        %v670 = vshrl.u32 %v669, 7
        %v671 = vsub.s32 %v668, %v670
        %v672 = vrot.slane %v664, %v671
        %v674 = vunpack.c.l.s4 1934713408
        %v675 = vunpack.c.0.s8 %v674
        %v676 = vlaneseq
        %v677 = vshrl.u32 %v676, 7
        %v678 = vsub.s32 %v675, %v677
        %v679 = vrot.slane %v665, %v678
        %v680 = vcombine.low %v656, %v672
        %v681 = vcombine.high %v656, %v672
        %v682 = vcombine.low %v663, %v679
        %v683 = vcombine.high %v663, %v679
        %v684 = vpack.c.bf16 %v680, %v680
        %v685 = vpack.c.bf16 %v681, %v681
        %v686 = vpack.c.bf16 %v682, %v682
        %v687 = vpack.c.bf16 %v683, %v683
        %688 = vrot.lane.b32.xlu0 %v533, 96
        %v689 = vpop.permute.xlu0 %688
        %690 = vrot.lane.b32.xlu0 %v540, 96
        %v691 = vpop.permute.xlu0 %690
        %692 = vrot.lane.b32.xlu0 %v543, 96
        %v693 = vpop.permute.xlu0 %692
        %694 = vrot.lane.b32.xlu0 %v546, 96
        %v695 = vpop.permute.xlu0 %694
        %v700 = vcombine.low %v689, %v693
        %v701 = vcombine.high %v689, %v693
        %v703 = vunpack.c.l.s4 1983009808
        %v704 = vunpack.c.0.s8 %v703
        %v705 = vlaneseq
        %v706 = vshrl.u32 %v705, 7
        %v707 = vsub.s32 %v704, %v706
        %v708 = vrot.slane %v700, %v707
        %v710 = vunpack.c.l.s4 1983009808
        %v711 = vunpack.c.0.s8 %v710
        %v712 = vlaneseq
        %v713 = vshrl.u32 %v712, 7
        %v714 = vsub.s32 %v711, %v713
        %v715 = vrot.slane %v701, %v714
        %v716 = vcombine.low %v691, %v695
        %v717 = vcombine.high %v691, %v695
        %v719 = vunpack.c.l.s4 1983009808
        %v720 = vunpack.c.0.s8 %v719
        %v721 = vlaneseq
        %v722 = vshrl.u32 %v721, 7
        %v723 = vsub.s32 %v720, %v722
        %v724 = vrot.slane %v716, %v723
        %v726 = vunpack.c.l.s4 1983009808
        %v727 = vunpack.c.0.s8 %v726
        %v728 = vlaneseq
        %v729 = vshrl.u32 %v728, 7
        %v730 = vsub.s32 %v727, %v729
        %v731 = vrot.slane %v717, %v730
        %v732 = vcombine.low %v708, %v724
        %v733 = vcombine.high %v708, %v724
        %v735 = vunpack.c.l.s4 1934713408
        %v736 = vunpack.c.0.s8 %v735
        %v737 = vlaneseq
        %v738 = vshrl.u32 %v737, 7
        %v739 = vsub.s32 %v736, %v738
        %v740 = vrot.slane %v732, %v739
        %v742 = vunpack.c.l.s4 1934713408
        %v743 = vunpack.c.0.s8 %v742
        %v744 = vlaneseq
        %v745 = vshrl.u32 %v744, 7
        %v746 = vsub.s32 %v743, %v745
        %v747 = vrot.slane %v733, %v746
        %v748 = vcombine.low %v715, %v731
        %v749 = vcombine.high %v715, %v731
        %v751 = vunpack.c.l.s4 1934713408
        %v752 = vunpack.c.0.s8 %v751
        %v753 = vlaneseq
        %v754 = vshrl.u32 %v753, 7
        %v755 = vsub.s32 %v752, %v754
        %v756 = vrot.slane %v748, %v755
        %v758 = vunpack.c.l.s4 1934713408
        %v759 = vunpack.c.0.s8 %v758
        %v760 = vlaneseq
        %v761 = vshrl.u32 %v760, 7
        %v762 = vsub.s32 %v759, %v761
        %v763 = vrot.slane %v749, %v762
        %v764 = vcombine.high %v740, 0.0
        %v765 = vcombine.high %v747, 0.0
        %v766 = vcombine.high %v756, 0.0
        %v767 = vcombine.high %v763, 0.0
        %v768 = vcombine.low %v740, %v747
        %v770 = vunpack.c.l.s4 1983009808
        %v771 = vunpack.c.0.s8 %v770
        %v772 = vlaneseq
        %v773 = vshrl.u32 %v772, 7
        %v774 = vsub.s32 %v771, %v773
        %v775 = vrot.slane %v768, %v774
        %v776 = vcombine.low %v764, %v765
        %v778 = vunpack.c.l.s4 1983009808
        %v779 = vunpack.c.0.s8 %v778
        %v780 = vlaneseq
        %v781 = vshrl.u32 %v780, 7
        %v782 = vsub.s32 %v779, %v781
        %v783 = vrot.slane %v776, %v782
        %v784 = vcombine.low %v756, %v763
        %v786 = vunpack.c.l.s4 1983009808
        %v787 = vunpack.c.0.s8 %v786
        %v788 = vlaneseq
        %v789 = vshrl.u32 %v788, 7
        %v790 = vsub.s32 %v787, %v789
        %v791 = vrot.slane %v784, %v790
        %v792 = vcombine.low %v766, %v767
        %v794 = vunpack.c.l.s4 1983009808
        %v795 = vunpack.c.0.s8 %v794
        %v796 = vlaneseq
        %v797 = vshrl.u32 %v796, 7
        %v798 = vsub.s32 %v795, %v797
        %v799 = vrot.slane %v792, %v798
        %v800 = vcombine.low %v775, %v783
        %v801 = vcombine.high %v775, %v783
        %v803 = vunpack.c.l.s4 1934713408
        %v804 = vunpack.c.0.s8 %v803
        %v805 = vlaneseq
        %v806 = vshrl.u32 %v805, 7
        %v807 = vsub.s32 %v804, %v806
        %v808 = vrot.slane %v800, %v807
        %v810 = vunpack.c.l.s4 1934713408
        %v811 = vunpack.c.0.s8 %v810
        %v812 = vlaneseq
        %v813 = vshrl.u32 %v812, 7
        %v814 = vsub.s32 %v811, %v813
        %v815 = vrot.slane %v801, %v814
        %v816 = vcombine.low %v791, %v799
        %v817 = vcombine.high %v791, %v799
        %v819 = vunpack.c.l.s4 1934713408
        %v820 = vunpack.c.0.s8 %v819
        %v821 = vlaneseq
        %v822 = vshrl.u32 %v821, 7
        %v823 = vsub.s32 %v820, %v822
        %v824 = vrot.slane %v816, %v823
        %v826 = vunpack.c.l.s4 1934713408
        %v827 = vunpack.c.0.s8 %v826
        %v828 = vlaneseq
        %v829 = vshrl.u32 %v828, 7
        %v830 = vsub.s32 %v827, %v829
        %v831 = vrot.slane %v817, %v830
        %v832 = vcombine.low %v808, %v824
        %v833 = vcombine.high %v808, %v824
        %v834 = vcombine.low %v815, %v831
        %v835 = vcombine.high %v815, %v831
        %v836 = vpack.c.bf16 %v832, %v832
        %v837 = vpack.c.bf16 %v833, %v833
        %v838 = vpack.c.bf16 %v834, %v834
        %v839 = vpack.c.bf16 %v835, %v835
        %840 = vrot.lane.b32.xlu0 %v533, 64
        %v841 = vpop.permute.xlu0 %840
        %842 = vrot.lane.b32.xlu0 %v540, 64
        %v843 = vpop.permute.xlu0 %842
        %844 = vrot.lane.b32.xlu0 %v543, 64
        %v845 = vpop.permute.xlu0 %844
        %846 = vrot.lane.b32.xlu0 %v546, 64
        %v847 = vpop.permute.xlu0 %846
        %v852 = vcombine.low %v841, %v845
        %v853 = vcombine.high %v841, %v845
        %v855 = vunpack.c.l.s4 1983009808
        %v856 = vunpack.c.0.s8 %v855
        %v857 = vlaneseq
        %v858 = vshrl.u32 %v857, 7
        %v859 = vsub.s32 %v856, %v858
        %v860 = vrot.slane %v852, %v859
        %v862 = vunpack.c.l.s4 1983009808
        %v863 = vunpack.c.0.s8 %v862
        %v864 = vlaneseq
        %v865 = vshrl.u32 %v864, 7
        %v866 = vsub.s32 %v863, %v865
        %v867 = vrot.slane %v853, %v866
        %v868 = vcombine.low %v843, %v847
        %v869 = vcombine.high %v843, %v847
        %v871 = vunpack.c.l.s4 1983009808
        %v872 = vunpack.c.0.s8 %v871
        %v873 = vlaneseq
        %v874 = vshrl.u32 %v873, 7
        %v875 = vsub.s32 %v872, %v874
        %v876 = vrot.slane %v868, %v875
        %v878 = vunpack.c.l.s4 1983009808
        %v879 = vunpack.c.0.s8 %v878
        %v880 = vlaneseq
        %v881 = vshrl.u32 %v880, 7
        %v882 = vsub.s32 %v879, %v881
        %v883 = vrot.slane %v869, %v882
        %v884 = vcombine.low %v860, %v876
        %v885 = vcombine.high %v860, %v876
        %v887 = vunpack.c.l.s4 1934713408
        %v888 = vunpack.c.0.s8 %v887
        %v889 = vlaneseq
        %v890 = vshrl.u32 %v889, 7
        %v891 = vsub.s32 %v888, %v890
        %v892 = vrot.slane %v884, %v891
        %v894 = vunpack.c.l.s4 1934713408
        %v895 = vunpack.c.0.s8 %v894
        %v896 = vlaneseq
        %v897 = vshrl.u32 %v896, 7
        %v898 = vsub.s32 %v895, %v897
        %v899 = vrot.slane %v885, %v898
        %v900 = vcombine.low %v867, %v883
        %v901 = vcombine.high %v867, %v883
        %v903 = vunpack.c.l.s4 1934713408
        %v904 = vunpack.c.0.s8 %v903
        %v905 = vlaneseq
        %v906 = vshrl.u32 %v905, 7
        %v907 = vsub.s32 %v904, %v906
        %v908 = vrot.slane %v900, %v907
        %v910 = vunpack.c.l.s4 1934713408
        %v911 = vunpack.c.0.s8 %v910
        %v912 = vlaneseq
        %v913 = vshrl.u32 %v912, 7
        %v914 = vsub.s32 %v911, %v913
        %v915 = vrot.slane %v901, %v914
        %v916 = vcombine.high %v892, 0.0
        %v917 = vcombine.high %v899, 0.0
        %v918 = vcombine.high %v908, 0.0
        %v919 = vcombine.high %v915, 0.0
        %v920 = vcombine.low %v892, %v899
        %v922 = vunpack.c.l.s4 1983009808
        %v923 = vunpack.c.0.s8 %v922
        %v924 = vlaneseq
        %v925 = vshrl.u32 %v924, 7
        %v926 = vsub.s32 %v923, %v925
        %v927 = vrot.slane %v920, %v926
        %v928 = vcombine.low %v916, %v917
        %v930 = vunpack.c.l.s4 1983009808
        %v931 = vunpack.c.0.s8 %v930
        %v932 = vlaneseq
        %v933 = vshrl.u32 %v932, 7
        %v934 = vsub.s32 %v931, %v933
        %v935 = vrot.slane %v928, %v934
        %v936 = vcombine.low %v908, %v915
        %v938 = vunpack.c.l.s4 1983009808
        %v939 = vunpack.c.0.s8 %v938
        %v940 = vlaneseq
        %v941 = vshrl.u32 %v940, 7
        %v942 = vsub.s32 %v939, %v941
        %v943 = vrot.slane %v936, %v942
        %v944 = vcombine.low %v918, %v919
        %v946 = vunpack.c.l.s4 1983009808
        %v947 = vunpack.c.0.s8 %v946
        %v948 = vlaneseq
        %v949 = vshrl.u32 %v948, 7
        %v950 = vsub.s32 %v947, %v949
        %v951 = vrot.slane %v944, %v950
        %v952 = vcombine.low %v927, %v935
        %v953 = vcombine.high %v927, %v935
        %v955 = vunpack.c.l.s4 1934713408
        %v956 = vunpack.c.0.s8 %v955
        %v957 = vlaneseq
        %v958 = vshrl.u32 %v957, 7
        %v959 = vsub.s32 %v956, %v958
        %v960 = vrot.slane %v952, %v959
        %v962 = vunpack.c.l.s4 1934713408
        %v963 = vunpack.c.0.s8 %v962
        %v964 = vlaneseq
        %v965 = vshrl.u32 %v964, 7
        %v966 = vsub.s32 %v963, %v965
        %v967 = vrot.slane %v953, %v966
        %v968 = vcombine.low %v943, %v951
        %v969 = vcombine.high %v943, %v951
        %v971 = vunpack.c.l.s4 1934713408
        %v972 = vunpack.c.0.s8 %v971
        %v973 = vlaneseq
        %v974 = vshrl.u32 %v973, 7
        %v975 = vsub.s32 %v972, %v974
        %v976 = vrot.slane %v968, %v975
        %v978 = vunpack.c.l.s4 1934713408
        %v979 = vunpack.c.0.s8 %v978
        %v980 = vlaneseq
        %v981 = vshrl.u32 %v980, 7
        %v982 = vsub.s32 %v979, %v981
        %v983 = vrot.slane %v969, %v982
        %v984 = vcombine.low %v960, %v976
        %v985 = vcombine.high %v960, %v976
        %v986 = vcombine.low %v967, %v983
        %v987 = vcombine.high %v967, %v983
        %v988 = vpack.c.bf16 %v984, %v984
        %v989 = vpack.c.bf16 %v985, %v985
        %v990 = vpack.c.bf16 %v986, %v986
        %v991 = vpack.c.bf16 %v987, %v987
        %vm992 = vcmask 64512
        %v994 = vsel %vm992, %v684, 0
        %v997 = vsel %vm992, %v836, 0
        %999 = vmatprep.subr.bf16.mxu0 0
        %1000 = vmatpush1.bf16.xpose.msra.mxu0 %v997
        %1001 = vmatprep.subr.bf16.mxu0 0
        %1002 = vmatpush1.bf16.xpose.msra.mxu0 0
        %1003 = vmatprep.subr.bf16.mxu0 0
        %1004 = vmatpush1.bf16.xpose.msra.mxu0 0
        %1005 = vmatprep.subr.bf16.mxu0 0
        %1006 = vmatpush1.bf16.xpose.msra.mxu0 0
        %1007 = vmatprep.subr.bf16.mxu0 0
        %1008 = vmatpush1.bf16.xpose.msra.mxu0 0
        %1009 = vmatprep.subr.bf16.mxu0 0
        %1010 = vmatpush1.bf16.xpose.msra.mxu0 0
        %1011 = vmatprep.subr.bf16.mxu0 0
        %1012 = vmatpush1.bf16.xpose.msra.mxu0 0
        %1013 = vmatprep.subr.bf16.mxu0 0
        %1014 = vmatpush1.bf16.xpose.msra.mxu0 0
        %1015 = vmatprep.subr.bf16.mxu0 0
        %1016 = vmatpush1.bf16.xpose.msra.mxu0 0
        %1017 = vmatprep.subr.bf16.mxu0 0
        %1018 = vmatpush1.bf16.xpose.msra.mxu0 0
        %1019 = vmatprep.subr.bf16.mxu0 0
        %1020 = vmatpush1.bf16.xpose.msra.mxu0 0
        %1021 = vmatprep.subr.bf16.mxu0 0
        %1022 = vmatpush1.bf16.xpose.msra.mxu0 0
        %1023 = vmatprep.subr.bf16.mxu0 0
        %1024 = vmatpush1.bf16.xpose.msra.mxu0 0
        %1025 = vmatprep.subr.bf16.mxu0 0
        %1026 = vmatpush1.bf16.xpose.msra.mxu0 0
        %1027 = vmatprep.subr.bf16.mxu0 0
        %1028 = vmatpush1.bf16.xpose.msra.mxu0 0
        %1029 = vmatprep.subr.bf16.mxu0 0
        %1030 = vmatpush1.bf16.xpose.msra.mxu0 0
        %1031 = vmatprep.mubr.bf16.mxu0 0
        %1032 = vmatmul.mubr.bf16.gmra.mrb[0].mxu0 %v994
        %v1033 = vpop.f32.mrb[0].mxu0
        %v1034 = vadd.f32 0.0, %v1033
        %v1035 = vpop.f32.mrb[0].mxu0
        %v1036 = vpop.f32.mrb[0].mxu0
        %v1037 = vpop.f32.mrb[0].mxu0
        %1038 = vdwg.mxu0
        %v1040 = vsel %vm992, %v685, 0
        %v1043 = vsel %vm992, %v837, 0
        %1045 = vmatprep.subr.bf16.mxu0 0
        %1046 = vmatpush1.bf16.xpose.msra.mxu0 %v1043
        %1047 = vmatprep.subr.bf16.mxu0 0
        %1048 = vmatpush1.bf16.xpose.msra.mxu0 0
        %1049 = vmatprep.subr.bf16.mxu0 0
        %1050 = vmatpush1.bf16.xpose.msra.mxu0 0
        %1051 = vmatprep.subr.bf16.mxu0 0
        %1052 = vmatpush1.bf16.xpose.msra.mxu0 0
        %1053 = vmatprep.subr.bf16.mxu0 0
        %1054 = vmatpush1.bf16.xpose.msra.mxu0 0
        %1055 = vmatprep.subr.bf16.mxu0 0
        %1056 = vmatpush1.bf16.xpose.msra.mxu0 0
        %1057 = vmatprep.subr.bf16.mxu0 0
        %1058 = vmatpush1.bf16.xpose.msra.mxu0 0
        %1059 = vmatprep.subr.bf16.mxu0 0
        %1060 = vmatpush1.bf16.xpose.msra.mxu0 0
        %1061 = vmatprep.subr.bf16.mxu0 0
        %1062 = vmatpush1.bf16.xpose.msra.mxu0 0
        %1063 = vmatprep.subr.bf16.mxu0 0
        %1064 = vmatpush1.bf16.xpose.msra.mxu0 0
        %1065 = vmatprep.subr.bf16.mxu0 0
        %1066 = vmatpush1.bf16.xpose.msra.mxu0 0
        %1067 = vmatprep.subr.bf16.mxu0 0
        %1068 = vmatpush1.bf16.xpose.msra.mxu0 0
        %1069 = vmatprep.subr.bf16.mxu0 0
        %1070 = vmatpush1.bf16.xpose.msra.mxu0 0
        %1071 = vmatprep.subr.bf16.mxu0 0
        %1072 = vmatpush1.bf16.xpose.msra.mxu0 0
        %1073 = vmatprep.subr.bf16.mxu0 0
        %1074 = vmatpush1.bf16.xpose.msra.mxu0 0
        %1075 = vmatprep.subr.bf16.mxu0 0
        %1076 = vmatpush1.bf16.xpose.msra.mxu0 0
        %1077 = vmatprep.mubr.bf16.mxu0 0
        %1078 = vmatmul.mubr.bf16.gmra.mrb[0].mxu0 %v1040
        %v1079 = vpop.f32.mrb[0].mxu0
        %v1080 = vadd.f32 0.0, %v1079
        %v1081 = vpop.f32.mrb[0].mxu0
        %v1082 = vpop.f32.mrb[0].mxu0
        %v1083 = vpop.f32.mrb[0].mxu0
        %1084 = vdwg.mxu0
        %v1086 = vsel %vm992, %v686, 0
        %v1089 = vsel %vm992, %v838, 0
        %1091 = vmatprep.subr.bf16.mxu0 0
        %1092 = vmatpush1.bf16.xpose.msra.mxu0 %v1089
        %1093 = vmatprep.subr.bf16.mxu0 0
        %1094 = vmatpush1.bf16.xpose.msra.mxu0 0
        %1095 = vmatprep.subr.bf16.mxu0 0
        %1096 = vmatpush1.bf16.xpose.msra.mxu0 0
        %1097 = vmatprep.subr.bf16.mxu0 0
        %1098 = vmatpush1.bf16.xpose.msra.mxu0 0
        %1099 = vmatprep.subr.bf16.mxu0 0
        %1100 = vmatpush1.bf16.xpose.msra.mxu0 0
        %1101 = vmatprep.subr.bf16.mxu0 0
        %1102 = vmatpush1.bf16.xpose.msra.mxu0 0
        %1103 = vmatprep.subr.bf16.mxu0 0
        %1104 = vmatpush1.bf16.xpose.msra.mxu0 0
        %1105 = vmatprep.subr.bf16.mxu0 0
        %1106 = vmatpush1.bf16.xpose.msra.mxu0 0
        %1107 = vmatprep.subr.bf16.mxu0 0
        %1108 = vmatpush1.bf16.xpose.msra.mxu0 0
        %1109 = vmatprep.subr.bf16.mxu0 0
        %1110 = vmatpush1.bf16.xpose.msra.mxu0 0
        %1111 = vmatprep.subr.bf16.mxu0 0
        %1112 = vmatpush1.bf16.xpose.msra.mxu0 0
        %1113 = vmatprep.subr.bf16.mxu0 0
        %1114 = vmatpush1.bf16.xpose.msra.mxu0 0
        %1115 = vmatprep.subr.bf16.mxu0 0
        %1116 = vmatpush1.bf16.xpose.msra.mxu0 0
        %1117 = vmatprep.subr.bf16.mxu0 0
        %1118 = vmatpush1.bf16.xpose.msra.mxu0 0
        %1119 = vmatprep.subr.bf16.mxu0 0
        %1120 = vmatpush1.bf16.xpose.msra.mxu0 0
        %1121 = vmatprep.subr.bf16.mxu0 0
        %1122 = vmatpush1.bf16.xpose.msra.mxu0 0
        %1123 = vmatprep.mubr.bf16.mxu0 0
        %1124 = vmatmul.mubr.bf16.gmra.mrb[0].mxu0 %v1086
        %v1125 = vpop.f32.mrb[0].mxu0
        %v1126 = vadd.f32 0.0, %v1125
        %v1127 = vpop.f32.mrb[0].mxu0
        %v1128 = vpop.f32.mrb[0].mxu0
        %v1129 = vpop.f32.mrb[0].mxu0
        %1130 = vdwg.mxu0
        %v1132 = vsel %vm992, %v687, 0
        %v1135 = vsel %vm992, %v839, 0
        %1137 = vmatprep.subr.bf16.mxu0 0
        %1138 = vmatpush1.bf16.xpose.msra.mxu0 %v1135
        %1139 = vmatprep.subr.bf16.mxu0 0
        %1140 = vmatpush1.bf16.xpose.msra.mxu0 0
        %1141 = vmatprep.subr.bf16.mxu0 0
        %1142 = vmatpush1.bf16.xpose.msra.mxu0 0
        %1143 = vmatprep.subr.bf16.mxu0 0
        %1144 = vmatpush1.bf16.xpose.msra.mxu0 0
        %1145 = vmatprep.subr.bf16.mxu0 0
        %1146 = vmatpush1.bf16.xpose.msra.mxu0 0
        %1147 = vmatprep.subr.bf16.mxu0 0
        %1148 = vmatpush1.bf16.xpose.msra.mxu0 0
        %1149 = vmatprep.subr.bf16.mxu0 0
        %1150 = vmatpush1.bf16.xpose.msra.mxu0 0
        %1151 = vmatprep.subr.bf16.mxu0 0
        %1152 = vmatpush1.bf16.xpose.msra.mxu0 0
        %1153 = vmatprep.subr.bf16.mxu0 0
        %1154 = vmatpush1.bf16.xpose.msra.mxu0 0
        %1155 = vmatprep.subr.bf16.mxu0 0
        %1156 = vmatpush1.bf16.xpose.msra.mxu0 0
        %1157 = vmatprep.subr.bf16.mxu0 0
        %1158 = vmatpush1.bf16.xpose.msra.mxu0 0
        %1159 = vmatprep.subr.bf16.mxu0 0
        %1160 = vmatpush1.bf16.xpose.msra.mxu0 0
        %1161 = vmatprep.subr.bf16.mxu0 0
        %1162 = vmatpush1.bf16.xpose.msra.mxu0 0
        %1163 = vmatprep.subr.bf16.mxu0 0
        %1164 = vmatpush1.bf16.xpose.msra.mxu0 0
        %1165 = vmatprep.subr.bf16.mxu0 0
        %1166 = vmatpush1.bf16.xpose.msra.mxu0 0
        %1167 = vmatprep.subr.bf16.mxu0 0
        %1168 = vmatpush1.bf16.xpose.msra.mxu0 0
        %1169 = vmatprep.mubr.bf16.mxu0 0
        %1170 = vmatmul.mubr.bf16.gmra.mrb[0].mxu0 %v1132
        %v1171 = vpop.f32.mrb[0].mxu0
        %v1172 = vadd.f32 0.0, %v1171
        %v1173 = vpop.f32.mrb[0].mxu0
        %v1174 = vpop.f32.mrb[0].mxu0
        %v1175 = vpop.f32.mrb[0].mxu0
        %1176 = vdwg.mxu0
        %v1177 = vsel %vm992, %v1034, -inf
        %1178 = vmax.xlane.f32.xlu0 %v1177
        %v1179 = vpop.xlane.xlu0 %1178
        %v1180 = vsel %vm992, %v1080, -inf
        %1181 = vmax.xlane.f32.xlu0 %v1180
        %v1182 = vpop.xlane.xlu0 %1181
        %v1183 = vsel %vm992, %v1126, -inf
        %1184 = vmax.xlane.f32.xlu0 %v1183
        %v1185 = vpop.xlane.xlu0 %1184
        %v1186 = vsel %vm992, %v1172, -inf
        %1187 = vmax.xlane.f32.xlu0 %v1186
        %v1188 = vpop.xlane.xlu0 %1187
        %v1189 = vsub.f32 %v1034, %v1179
        %v1190 = vsub.f32 %v1080, %v1182
        %v1191 = vsub.f32 %v1126, %v1185
        %v1192 = vsub.f32 %v1172, %v1188
        %v1193 = vmul.f32 %v1189, 1.442695
        %v1194 = vpow.pop %v1193
        %v1195 = vmul.f32 %v1190, 1.442695
        %v1196 = vpow.pop %v1195
        %v1197 = vmul.f32 %v1191, 1.442695
        %v1198 = vpow.pop %v1197
        %v1199 = vmul.f32 %v1192, 1.442695
        %v1200 = vpow.pop %v1199
        %v1201 = vsel %vm992, %v1194, 0.0
        %1202 = vadd.xlane.f32.xlu0 %v1201
        %v1203 = vpop.xlane.xlu0 %1202
        %v1204 = vsel %vm992, %v1196, 0.0
        %1205 = vadd.xlane.f32.xlu0 %v1204
        %v1206 = vpop.xlane.xlu0 %1205
        %v1207 = vsel %vm992, %v1198, 0.0
        %1208 = vadd.xlane.f32.xlu0 %v1207
        %v1209 = vpop.xlane.xlu0 %1208
        %v1210 = vsel %vm992, %v1200, 0.0
        %1211 = vadd.xlane.f32.xlu0 %v1210
        %v1212 = vpop.xlane.xlu0 %1211
        %v1213 = vrcp.pop %v1203
        %v1214 = vrcp.pop %v1206
        %v1215 = vrcp.pop %v1209
        %v1216 = vrcp.pop %v1212
        %v1217 = vmul.f32 %v1194, %v1213
        %v1218 = vmul.f32 %v1196, %v1214
        %v1219 = vmul.f32 %v1198, %v1215
        %v1220 = vmul.f32 %v1200, %v1216
        %v1221 = vpack.c.bf16 %v1217, %v1217
        %v1222 = vpack.c.bf16 %v1218, %v1218
        %v1223 = vpack.c.bf16 %v1219, %v1219
        %v1224 = vpack.c.bf16 %v1220, %v1220
        %v1226 = vsel %vm992, %v1221, 0
        %vm1228 = vcmask 1043456
        %v1230 = vsel %vm1228, %v988, 0
        %1232 = vmatprep.subr.bf16.mxu0 0
        %1233 = vmatpush1.bf16.msra.mxu0 %v1230
        %1234 = vmatprep.subr.bf16.mxu0 0
        %1235 = vmatpush1.bf16.msra.mxu0 0
        %1236 = vmatprep.subr.bf16.mxu0 0
        %1237 = vmatpush1.bf16.msra.mxu0 0
        %1238 = vmatprep.subr.bf16.mxu0 0
        %1239 = vmatpush1.bf16.msra.mxu0 0
        %1240 = vmatprep.subr.bf16.mxu0 0
        %1241 = vmatpush1.bf16.msra.mxu0 0
        %1242 = vmatprep.subr.bf16.mxu0 0
        %1243 = vmatpush1.bf16.msra.mxu0 0
        %1244 = vmatprep.subr.bf16.mxu0 0
        %1245 = vmatpush1.bf16.msra.mxu0 0
        %1246 = vmatprep.subr.bf16.mxu0 0
        %1247 = vmatpush1.bf16.msra.mxu0 0
        %1248 = vmatprep.subr.bf16.mxu0 0
        %1249 = vmatpush1.bf16.msra.mxu0 0
        %1250 = vmatprep.subr.bf16.mxu0 0
        %1251 = vmatpush1.bf16.msra.mxu0 0
        %1252 = vmatprep.subr.bf16.mxu0 0
        %1253 = vmatpush1.bf16.msra.mxu0 0
        %1254 = vmatprep.subr.bf16.mxu0 0
        %1255 = vmatpush1.bf16.msra.mxu0 0
        %1256 = vmatprep.subr.bf16.mxu0 0
        %1257 = vmatpush1.bf16.msra.mxu0 0
        %1258 = vmatprep.subr.bf16.mxu0 0
        %1259 = vmatpush1.bf16.msra.mxu0 0
        %1260 = vmatprep.subr.bf16.mxu0 0
        %1261 = vmatpush1.bf16.msra.mxu0 0
        %1262 = vmatprep.subr.bf16.mxu0 0
        %1263 = vmatpush1.bf16.msra.mxu0 0
        %1264 = vmatprep.mubr.bf16.mxu0 0
        %1265 = vmatmul.mubr.bf16.gmra.mrb[0].mxu0 %v1226
        %v1266 = vpop.f32.mrb[0].mxu0
        %v1267 = vadd.f32 0.0, %v1266
        %v1268 = vpop.f32.mrb[0].mxu0
        %v1269 = vpop.f32.mrb[0].mxu0
        %v1270 = vpop.f32.mrb[0].mxu0
        %1271 = vdwg.mxu0
        %v1273 = vsel %vm992, %v1222, 0
        %v1276 = vsel %vm1228, %v989, 0
        %1278 = vmatprep.subr.bf16.mxu0 0
        %1279 = vmatpush1.bf16.msra.mxu0 %v1276
        %1280 = vmatprep.subr.bf16.mxu0 0
        %1281 = vmatpush1.bf16.msra.mxu0 0
        %1282 = vmatprep.subr.bf16.mxu0 0
        %1283 = vmatpush1.bf16.msra.mxu0 0
        %1284 = vmatprep.subr.bf16.mxu0 0
        %1285 = vmatpush1.bf16.msra.mxu0 0
        %1286 = vmatprep.subr.bf16.mxu0 0
        %1287 = vmatpush1.bf16.msra.mxu0 0
        %1288 = vmatprep.subr.bf16.mxu0 0
        %1289 = vmatpush1.bf16.msra.mxu0 0
        %1290 = vmatprep.subr.bf16.mxu0 0
        %1291 = vmatpush1.bf16.msra.mxu0 0
        %1292 = vmatprep.subr.bf16.mxu0 0
        %1293 = vmatpush1.bf16.msra.mxu0 0
        %1294 = vmatprep.subr.bf16.mxu0 0
        %1295 = vmatpush1.bf16.msra.mxu0 0
        %1296 = vmatprep.subr.bf16.mxu0 0
        %1297 = vmatpush1.bf16.msra.mxu0 0
        %1298 = vmatprep.subr.bf16.mxu0 0
        %1299 = vmatpush1.bf16.msra.mxu0 0
        %1300 = vmatprep.subr.bf16.mxu0 0
        %1301 = vmatpush1.bf16.msra.mxu0 0
        %1302 = vmatprep.subr.bf16.mxu0 0
        %1303 = vmatpush1.bf16.msra.mxu0 0
        %1304 = vmatprep.subr.bf16.mxu0 0
        %1305 = vmatpush1.bf16.msra.mxu0 0
        %1306 = vmatprep.subr.bf16.mxu0 0
        %1307 = vmatpush1.bf16.msra.mxu0 0
        %1308 = vmatprep.subr.bf16.mxu0 0
        %1309 = vmatpush1.bf16.msra.mxu0 0
        %1310 = vmatprep.mubr.bf16.mxu0 0
        %1311 = vmatmul.mubr.bf16.gmra.mrb[0].mxu0 %v1273
        %v1312 = vpop.f32.mrb[0].mxu0
        %v1313 = vadd.f32 0.0, %v1312
        %v1314 = vpop.f32.mrb[0].mxu0
        %v1315 = vpop.f32.mrb[0].mxu0
        %v1316 = vpop.f32.mrb[0].mxu0
        %1317 = vdwg.mxu0
        %v1319 = vsel %vm992, %v1223, 0
        %v1322 = vsel %vm1228, %v990, 0
        %1324 = vmatprep.subr.bf16.mxu0 0
        %1325 = vmatpush1.bf16.msra.mxu0 %v1322
        %1326 = vmatprep.subr.bf16.mxu0 0
        %1327 = vmatpush1.bf16.msra.mxu0 0
        %1328 = vmatprep.subr.bf16.mxu0 0
        %1329 = vmatpush1.bf16.msra.mxu0 0
        %1330 = vmatprep.subr.bf16.mxu0 0
        %1331 = vmatpush1.bf16.msra.mxu0 0
        %1332 = vmatprep.subr.bf16.mxu0 0
        %1333 = vmatpush1.bf16.msra.mxu0 0
        %1334 = vmatprep.subr.bf16.mxu0 0
        %1335 = vmatpush1.bf16.msra.mxu0 0
        %1336 = vmatprep.subr.bf16.mxu0 0
        %1337 = vmatpush1.bf16.msra.mxu0 0
        %1338 = vmatprep.subr.bf16.mxu0 0
        %1339 = vmatpush1.bf16.msra.mxu0 0
        %1340 = vmatprep.subr.bf16.mxu0 0
        %1341 = vmatpush1.bf16.msra.mxu0 0
        %1342 = vmatprep.subr.bf16.mxu0 0
        %1343 = vmatpush1.bf16.msra.mxu0 0
        %1344 = vmatprep.subr.bf16.mxu0 0
        %1345 = vmatpush1.bf16.msra.mxu0 0
        %1346 = vmatprep.subr.bf16.mxu0 0
        %1347 = vmatpush1.bf16.msra.mxu0 0
        %1348 = vmatprep.subr.bf16.mxu0 0
        %1349 = vmatpush1.bf16.msra.mxu0 0
        %1350 = vmatprep.subr.bf16.mxu0 0
        %1351 = vmatpush1.bf16.msra.mxu0 0
        %1352 = vmatprep.subr.bf16.mxu0 0
        %1353 = vmatpush1.bf16.msra.mxu0 0
        %1354 = vmatprep.subr.bf16.mxu0 0
        %1355 = vmatpush1.bf16.msra.mxu0 0
        %1356 = vmatprep.mubr.bf16.mxu0 0
        %1357 = vmatmul.mubr.bf16.gmra.mrb[0].mxu0 %v1319
        %v1358 = vpop.f32.mrb[0].mxu0
        %v1359 = vadd.f32 0.0, %v1358
        %v1360 = vpop.f32.mrb[0].mxu0
        %v1361 = vpop.f32.mrb[0].mxu0
        %v1362 = vpop.f32.mrb[0].mxu0
        %1363 = vdwg.mxu0
        %v1365 = vsel %vm992, %v1224, 0
        %v1368 = vsel %vm1228, %v991, 0
        %1370 = vmatprep.subr.bf16.mxu0 0
        %1371 = vmatpush1.bf16.msra.mxu0 %v1368
        %1372 = vmatprep.subr.bf16.mxu0 0
        %1373 = vmatpush1.bf16.msra.mxu0 0
        %1374 = vmatprep.subr.bf16.mxu0 0
        %1375 = vmatpush1.bf16.msra.mxu0 0
        %1376 = vmatprep.subr.bf16.mxu0 0
        %1377 = vmatpush1.bf16.msra.mxu0 0
        %1378 = vmatprep.subr.bf16.mxu0 0
        %1379 = vmatpush1.bf16.msra.mxu0 0
        %1380 = vmatprep.subr.bf16.mxu0 0
        %1381 = vmatpush1.bf16.msra.mxu0 0
        %1382 = vmatprep.subr.bf16.mxu0 0
        %1383 = vmatpush1.bf16.msra.mxu0 0
        %1384 = vmatprep.subr.bf16.mxu0 0
        %1385 = vmatpush1.bf16.msra.mxu0 0
        %1386 = vmatprep.subr.bf16.mxu0 0
        %1387 = vmatpush1.bf16.msra.mxu0 0
        %1388 = vmatprep.subr.bf16.mxu0 0
        %1389 = vmatpush1.bf16.msra.mxu0 0
        %1390 = vmatprep.subr.bf16.mxu0 0
        %1391 = vmatpush1.bf16.msra.mxu0 0
        %1392 = vmatprep.subr.bf16.mxu0 0
        %1393 = vmatpush1.bf16.msra.mxu0 0
        %1394 = vmatprep.subr.bf16.mxu0 0
        %1395 = vmatpush1.bf16.msra.mxu0 0
        %1396 = vmatprep.subr.bf16.mxu0 0
        %1397 = vmatpush1.bf16.msra.mxu0 0
        %1398 = vmatprep.subr.bf16.mxu0 0
        %1399 = vmatpush1.bf16.msra.mxu0 0
        %1400 = vmatprep.subr.bf16.mxu0 0
        %1401 = vmatpush1.bf16.msra.mxu0 0
        %1402 = vmatprep.mubr.bf16.mxu0 0
        %1403 = vmatmul.mubr.bf16.gmra.mrb[0].mxu0 %v1365
        %v1404 = vpop.f32.mrb[0].mxu0
        %v1405 = vadd.f32 0.0, %v1404
        %v1406 = vpop.f32.mrb[0].mxu0
        %v1407 = vpop.f32.mrb[0].mxu0
        %v1408 = vpop.f32.mrb[0].mxu0
        %1409 = vdwg.mxu0
        %v1410 = vcombine.low %v1267, %v1359
        %v1411 = vcombine.high %v1267, %v1359
        %v1413 = vunpack.c.l.s4 1983009808
        %v1414 = vunpack.c.0.s8 %v1413
        %v1415 = vlaneseq
        %v1416 = vshrl.u32 %v1415, 7
        %v1417 = vsub.s32 %v1414, %v1416
        %v1418 = vrot.slane %v1410, %v1417
        %v1420 = vunpack.c.l.s4 1983009808
        %v1421 = vunpack.c.0.s8 %v1420
        %v1422 = vlaneseq
        %v1423 = vshrl.u32 %v1422, 7
        %v1424 = vsub.s32 %v1421, %v1423
        %v1425 = vrot.slane %v1411, %v1424
        %v1426 = vcombine.low %v1313, %v1405
        %v1427 = vcombine.high %v1313, %v1405
        %v1429 = vunpack.c.l.s4 1983009808
        %v1430 = vunpack.c.0.s8 %v1429
        %v1431 = vlaneseq
        %v1432 = vshrl.u32 %v1431, 7
        %v1433 = vsub.s32 %v1430, %v1432
        %v1434 = vrot.slane %v1426, %v1433
        %v1436 = vunpack.c.l.s4 1983009808
        %v1437 = vunpack.c.0.s8 %v1436
        %v1438 = vlaneseq
        %v1439 = vshrl.u32 %v1438, 7
        %v1440 = vsub.s32 %v1437, %v1439
        %v1441 = vrot.slane %v1427, %v1440
        %v1442 = vcombine.low %v1418, %v1434
        %v1443 = vcombine.high %v1418, %v1434
        %v1445 = vunpack.c.l.s4 1934713408
        %v1446 = vunpack.c.0.s8 %v1445
        %v1447 = vlaneseq
        %v1448 = vshrl.u32 %v1447, 7
        %v1449 = vsub.s32 %v1446, %v1448
        %v1450 = vrot.slane %v1442, %v1449
        %v1452 = vunpack.c.l.s4 1934713408
        %v1453 = vunpack.c.0.s8 %v1452
        %v1454 = vlaneseq
        %v1455 = vshrl.u32 %v1454, 7
        %v1456 = vsub.s32 %v1453, %v1455
        %v1457 = vrot.slane %v1443, %v1456
        %v1458 = vcombine.low %v1425, %v1441
        %v1459 = vcombine.high %v1425, %v1441
        %v1461 = vunpack.c.l.s4 1934713408
        %v1462 = vunpack.c.0.s8 %v1461
        %v1463 = vlaneseq
        %v1464 = vshrl.u32 %v1463, 7
        %v1465 = vsub.s32 %v1462, %v1464
        %v1466 = vrot.slane %v1458, %v1465
        %v1468 = vunpack.c.l.s4 1934713408
        %v1469 = vunpack.c.0.s8 %v1468
        %v1470 = vlaneseq
        %v1471 = vshrl.u32 %v1470, 7
        %v1472 = vsub.s32 %v1469, %v1471
        %v1473 = vrot.slane %v1459, %v1472
        %v1474 = vcombine.high %v1450, 0.0
        %v1475 = vcombine.high %v1457, 0.0
        %v1476 = vcombine.high %v1466, 0.0
        %v1477 = vcombine.high %v1473, 0.0
        %v1478 = vcombine.low %v1450, %v1457
        %v1480 = vunpack.c.l.s4 1983009808
        %v1481 = vunpack.c.0.s8 %v1480
        %v1482 = vlaneseq
        %v1483 = vshrl.u32 %v1482, 7
        %v1484 = vsub.s32 %v1481, %v1483
        %v1485 = vrot.slane %v1478, %v1484
        %v1486 = vcombine.low %v1474, %v1475
        %v1488 = vunpack.c.l.s4 1983009808
        %v1489 = vunpack.c.0.s8 %v1488
        %v1490 = vlaneseq
        %v1491 = vshrl.u32 %v1490, 7
        %v1492 = vsub.s32 %v1489, %v1491
        %v1493 = vrot.slane %v1486, %v1492
        %v1494 = vcombine.low %v1466, %v1473
        %v1496 = vunpack.c.l.s4 1983009808
        %v1497 = vunpack.c.0.s8 %v1496
        %v1498 = vlaneseq
        %v1499 = vshrl.u32 %v1498, 7
        %v1500 = vsub.s32 %v1497, %v1499
        %v1501 = vrot.slane %v1494, %v1500
        %v1502 = vcombine.low %v1476, %v1477
        %v1504 = vunpack.c.l.s4 1983009808
        %v1505 = vunpack.c.0.s8 %v1504
        %v1506 = vlaneseq
        %v1507 = vshrl.u32 %v1506, 7
        %v1508 = vsub.s32 %v1505, %v1507
        %v1509 = vrot.slane %v1502, %v1508
        %v1510 = vcombine.low %v1485, %v1493
        %v1511 = vcombine.high %v1485, %v1493
        %v1513 = vunpack.c.l.s4 1934713408
        %v1514 = vunpack.c.0.s8 %v1513
        %v1515 = vlaneseq
        %v1516 = vshrl.u32 %v1515, 7
        %v1517 = vsub.s32 %v1514, %v1516
        %v1518 = vrot.slane %v1510, %v1517
        %v1520 = vunpack.c.l.s4 1934713408
        %v1521 = vunpack.c.0.s8 %v1520
        %v1522 = vlaneseq
        %v1523 = vshrl.u32 %v1522, 7
        %v1524 = vsub.s32 %v1521, %v1523
        %v1525 = vrot.slane %v1511, %v1524
        %v1526 = vcombine.low %v1501, %v1509
        %v1527 = vcombine.high %v1501, %v1509
        %v1529 = vunpack.c.l.s4 1934713408
        %v1530 = vunpack.c.0.s8 %v1529
        %v1531 = vlaneseq
        %v1532 = vshrl.u32 %v1531, 7
        %v1533 = vsub.s32 %v1530, %v1532
        %v1534 = vrot.slane %v1526, %v1533
        %v1536 = vunpack.c.l.s4 1934713408
        %v1537 = vunpack.c.0.s8 %v1536
        %v1538 = vlaneseq
        %v1539 = vshrl.u32 %v1538, 7
        %v1540 = vsub.s32 %v1537, %v1539
        %v1541 = vrot.slane %v1527, %v1540
        %v1542 = vcombine.low %v1518, %v1534
        %v1543 = vcombine.high %v1518, %v1534
        %v1544 = vcombine.low %v1525, %v1541
        %v1545 = vcombine.high %v1525, %v1541
        %1547 = vrot.lane.b32.xlu0 %v1543, 8
        %v1548 = vpop.permute.xlu0 %1547
        %1551 = vrot.lane.b32.xlu0 %v1544, 16
        %v1552 = vpop.permute.xlu0 %1551
        %1555 = vrot.lane.b32.xlu0 %v1545, 24
        %v1556 = vpop.permute.xlu0 %1555
        %v1558 = vsel %vm992, %v1542, %v1548
        %vm1559 = vcmask 130048
        %v1560 = vsel %vm1559, %v1558, %v1552
        %vm1561 = vcmask 195584
        %v1562 = vsel %vm1561, %v1560, %v1556
        %v1563 = vpack.c.bf16 %v1562, %v1562
        %v1564 = vld [vmem:[%s5] sm:$0xf]
        %v1565 = vld [vmem:[%s5 + $0x4] sm:$0xf]
        %v1566 = vld [vmem:[%s5 + $0x8] sm:$0xf]
        %v1567 = vld [vmem:[%s5 + $0xc] sm:$0xf]
        %v1568 = vld [vmem:[%s6] sm:$0x1]
        %v1570 = vlaneseq
        %v1571 = vshrl.u32 %v1570, 7
        %v1572 = vsub.s32 0, %v1571
        %v1573 = vrot.slane %v1568, %v1572
        %v1579 = vunpack.c.l.b16 %v1564
        %v1580 = vunpack.c.l.b16 %v1565
        %v1581 = vunpack.c.l.b16 %v1566
        %v1582 = vunpack.c.l.b16 %v1567
        %v1583 = vpack.c.b16 %v1580, %v1579
        %v1584 = vpack.c.b16 %v1582, %v1581
        %v1588 = vsel %vm442, %v1563, 0
        %1590 = vmatprep.subr.bf16.mxu0 0
        %1591 = vmatpush1.bf16.msra.mxu0 %v1583
        %1592 = vmatprep.subr.bf16.mxu0 0
        %1593 = vmatpush1.bf16.msra.mxu0 %v1584
        %1594 = vmatprep.subr.bf16.mxu0 0
        %1595 = vmatpush1.bf16.msra.mxu0 0
        %1596 = vmatprep.subr.bf16.mxu0 0
        %1597 = vmatpush1.bf16.msra.mxu0 0
        %1598 = vmatprep.subr.bf16.mxu0 0
        %1599 = vmatpush1.bf16.msra.mxu0 0
        %1600 = vmatprep.subr.bf16.mxu0 0
        %1601 = vmatpush1.bf16.msra.mxu0 0
        %1602 = vmatprep.subr.bf16.mxu0 0
        %1603 = vmatpush1.bf16.msra.mxu0 0
        %1604 = vmatprep.subr.bf16.mxu0 0
        %1605 = vmatpush1.bf16.msra.mxu0 0
        %1606 = vmatprep.subr.bf16.mxu0 0
        %1607 = vmatpush1.bf16.msra.mxu0 0
        %1608 = vmatprep.subr.bf16.mxu0 0
        %1609 = vmatpush1.bf16.msra.mxu0 0
        %1610 = vmatprep.subr.bf16.mxu0 0
        %1611 = vmatpush1.bf16.msra.mxu0 0
        %1612 = vmatprep.subr.bf16.mxu0 0
        %1613 = vmatpush1.bf16.msra.mxu0 0
        %1614 = vmatprep.subr.bf16.mxu0 0
        %1615 = vmatpush1.bf16.msra.mxu0 0
        %1616 = vmatprep.subr.bf16.mxu0 0
        %1617 = vmatpush1.bf16.msra.mxu0 0
        %1618 = vmatprep.subr.bf16.mxu0 0
        %1619 = vmatpush1.bf16.msra.mxu0 0
        %1620 = vmatprep.subr.bf16.mxu0 0
        %1621 = vmatpush1.bf16.msra.mxu0 0
        %1622 = vmatprep.mubr.bf16.mxu0 0
        %1623 = vmatmul.mubr.bf16.gmra.mrb[0].mxu0 %v1588
        %v1624 = vpop.f32.mrb[0].mxu0
        %v1625 = vadd.f32 %v1573, %v1624
        %v1626 = vpop.f32.mrb[0].mxu0
        %v1627 = vpop.f32.mrb[0].mxu0
        %v1628 = vpop.f32.mrb[0].mxu0
        %1629 = vdwg.mxu0
        %v1630 = vadd.f32 %v439, %v1625
        %v1631 = vld [vmem:[%s7] sm:$0x1]
        %v1632 = vld [vmem:[%s8] sm:$0x1]
        %v1633 = vsel %vm442, %v1630, 0.0
        %1634 = vadd.xlane.f32.xlu0 %v1633
        %v1635 = vpop.xlane.xlu0 %1634
        %v1636 = vmul.f32 %v1635, %v446
        %v1637 = vsub.f32 %v1630, %v1636
        %v1638 = vmul.f32 %v1637, %v1637
        %v1639 = vsel %vm442, %v1638, 0.0
        %1640 = vadd.xlane.f32.xlu0 %v1639
        %v1641 = vpop.xlane.xlu0 %1640
        %v1642 = vmul.f32 %v1641, %v446
        %v1643 = vadd.f32 %v1642, 1e-05
        %v1644 = vrsqrt.pop %v1643
        %v1645 = vmul.f32 %v1637, %v1644
        %v1647 = vlaneseq
        %v1648 = vshrl.u32 %v1647, 7
        %v1649 = vsub.s32 0, %v1648
        %v1650 = vrot.slane %v1631, %v1649
        %v1652 = vmul.f32 %v1645, %v1650
        %v1654 = vlaneseq
        %v1655 = vshrl.u32 %v1654, 7
        %v1656 = vsub.s32 0, %v1655
        %v1657 = vrot.slane %v1632, %v1656
        %v1659 = vadd.f32 %v1652, %v1657
        %v1660 = vpack.c.bf16 %v1659, %v1659
        %v1661 = vld [vmem:[%s9] sm:$0xf]
        %v1662 = vld [vmem:[%s9 + $0x4] sm:$0xf]
        %v1663 = vld [vmem:[%s9 + $0x8] sm:$0xf]
        %v1664 = vld [vmem:[%s9 + $0xc] sm:$0xf]
        %v1665 = vld [vmem:[%s10] sm:$0x1]
        %v1667 = vlaneseq
        %v1668 = vshrl.u32 %v1667, 7
        %v1669 = vsub.s32 0, %v1668
        %v1670 = vrot.slane %v1665, %v1669
        %v1676 = vunpack.c.l.b16 %v1661
        %v1677 = vunpack.c.l.b16 %v1662
        %v1678 = vunpack.c.l.b16 %v1663
        %v1679 = vunpack.c.l.b16 %v1664
        %v1680 = vpack.c.b16 %v1677, %v1676
        %v1681 = vpack.c.b16 %v1679, %v1678
        %v1685 = vsel %vm442, %v1660, 0
        %1687 = vmatprep.subr.bf16.mxu0 0
        %1688 = vmatpush1.bf16.msra.mxu0 %v1680
        %1689 = vmatprep.subr.bf16.mxu0 0
        %1690 = vmatpush1.bf16.msra.mxu0 %v1681
        %1691 = vmatprep.subr.bf16.mxu0 0
        %1692 = vmatpush1.bf16.msra.mxu0 0
        %1693 = vmatprep.subr.bf16.mxu0 0
        %1694 = vmatpush1.bf16.msra.mxu0 0
        %1695 = vmatprep.subr.bf16.mxu0 0
        %1696 = vmatpush1.bf16.msra.mxu0 0
        %1697 = vmatprep.subr.bf16.mxu0 0
        %1698 = vmatpush1.bf16.msra.mxu0 0
        %1699 = vmatprep.subr.bf16.mxu0 0
        %1700 = vmatpush1.bf16.msra.mxu0 0
        %1701 = vmatprep.subr.bf16.mxu0 0
        %1702 = vmatpush1.bf16.msra.mxu0 0
        %1703 = vmatprep.subr.bf16.mxu0 0
        %1704 = vmatpush1.bf16.msra.mxu0 0
        %1705 = vmatprep.subr.bf16.mxu0 0
        %1706 = vmatpush1.bf16.msra.mxu0 0
        %1707 = vmatprep.subr.bf16.mxu0 0
        %1708 = vmatpush1.bf16.msra.mxu0 0
        %1709 = vmatprep.subr.bf16.mxu0 0
        %1710 = vmatpush1.bf16.msra.mxu0 0
        %1711 = vmatprep.subr.bf16.mxu0 0
        %1712 = vmatpush1.bf16.msra.mxu0 0
        %1713 = vmatprep.subr.bf16.mxu0 0
        %1714 = vmatpush1.bf16.msra.mxu0 0
        %1715 = vmatprep.subr.bf16.mxu0 0
        %1716 = vmatpush1.bf16.msra.mxu0 0
        %1717 = vmatprep.subr.bf16.mxu0 0
        %1718 = vmatpush1.bf16.msra.mxu0 0
        %1719 = vmatprep.mubr.bf16.mxu0 0
        %1720 = vmatmul.mubr.bf16.gmra.mrb[0].mxu0 %v1685
        %v1721 = vpop.f32.mrb[0].mxu0
        %v1722 = vadd.f32 %v1670, %v1721
        %v1723 = vpop.f32.mrb[0].mxu0
        %v1724 = vpop.f32.mrb[0].mxu0
        %v1725 = vpop.f32.mrb[0].mxu0
        %1726 = vdwg.mxu0
        %v1727 = vpack.c.bf16 %v1722, %v1722
        %v1728 = vmul.bf16 %v1727, 1071267802
        %v1729 = vxor.u32 %v1728, 2147516416
        %v1731 = vmul.bf16 %v1729, 1069105081
        %v1732 = vpow.bf16.pop %v1731
        %v1733 = vadd.bf16 %v1732, 1065369472
        %v1734 = vrcp.bf16.pop %v1733
        %v1735 = vmul.bf16 1065369472, %v1734
        %v1736 = vmul.bf16 %v1727, %v1735
        %v1737 = vld [vmem:[%s11] sm:$0xf]
        %v1738 = vld [vmem:[%s11 + $0x4] sm:$0xf]
        %v1739 = vld [vmem:[%s11 + $0x8] sm:$0xf]
        %v1740 = vld [vmem:[%s11 + $0xc] sm:$0xf]
        %v1741 = vld [vmem:[%s11 + $0x10] sm:$0xf]
        %v1742 = vld [vmem:[%s11 + $0x14] sm:$0xf]
        %v1743 = vld [vmem:[%s11 + $0x18] sm:$0xf]
        %v1744 = vld [vmem:[%s11 + $0x1c] sm:$0xf]
        %v1745 = vld [vmem:[%s11 + $0x20] sm:$0xf]
        %v1746 = vld [vmem:[%s11 + $0x24] sm:$0xf]
        %v1747 = vld [vmem:[%s11 + $0x28] sm:$0xf]
        %v1748 = vld [vmem:[%s11 + $0x2c] sm:$0xf]
        %v1749 = vld [vmem:[%s11 + $0x30] sm:$0xf]
        %v1750 = vld [vmem:[%s11 + $0x34] sm:$0xf]
        %v1751 = vld [vmem:[%s11 + $0x38] sm:$0xf]
        %v1752 = vld [vmem:[%s11 + $0x3c] sm:$0xf]
        %v1753 = vld [vmem:[%s12] sm:$0x1]
        %v1755 = vlaneseq
        %v1756 = vshrl.u32 %v1755, 7
        %v1757 = vsub.s32 0, %v1756
        %v1758 = vrot.slane %v1753, %v1757
        %v1776 = vunpack.c.l.b16 %v1737
        %v1777 = vunpack.c.l.b16 %v1738
        %v1778 = vunpack.c.l.b16 %v1739
        %v1779 = vunpack.c.l.b16 %v1740
        %v1780 = vunpack.c.l.b16 %v1741
        %v1781 = vunpack.c.l.b16 %v1742
        %v1782 = vunpack.c.l.b16 %v1743
        %v1783 = vunpack.c.l.b16 %v1744
        %v1784 = vunpack.c.l.b16 %v1745
        %v1785 = vunpack.c.l.b16 %v1746
        %v1786 = vunpack.c.l.b16 %v1747
        %v1787 = vunpack.c.l.b16 %v1748
        %v1788 = vunpack.c.l.b16 %v1749
        %v1789 = vunpack.c.l.b16 %v1750
        %v1790 = vunpack.c.l.b16 %v1751
        %v1791 = vunpack.c.l.b16 %v1752
        %v1792 = vpack.c.b16 %v1777, %v1776
        %v1793 = vpack.c.b16 %v1779, %v1778
        %v1794 = vpack.c.b16 %v1781, %v1780
        %v1795 = vpack.c.b16 %v1783, %v1782
        %v1796 = vpack.c.b16 %v1785, %v1784
        %v1797 = vpack.c.b16 %v1787, %v1786
        %v1798 = vpack.c.b16 %v1789, %v1788
        %v1799 = vpack.c.b16 %v1791, %v1790
        %1808 = vmatprep.subr.bf16.mxu0 0
        %1809 = vmatpush1.bf16.msra.mxu0 %v1792
        %1810 = vmatprep.subr.bf16.mxu0 0
        %1811 = vmatpush1.bf16.msra.mxu0 %v1793
        %1812 = vmatprep.subr.bf16.mxu0 0
        %1813 = vmatpush1.bf16.msra.mxu0 %v1794
        %1814 = vmatprep.subr.bf16.mxu0 0
        %1815 = vmatpush1.bf16.msra.mxu0 %v1795
        %1816 = vmatprep.subr.bf16.mxu0 0
        %1817 = vmatpush1.bf16.msra.mxu0 %v1796
        %1818 = vmatprep.subr.bf16.mxu0 0
        %1819 = vmatpush1.bf16.msra.mxu0 %v1797
        %1820 = vmatprep.subr.bf16.mxu0 0
        %1821 = vmatpush1.bf16.msra.mxu0 %v1798
        %1822 = vmatprep.subr.bf16.mxu0 0
        %1823 = vmatpush1.bf16.msra.mxu0 %v1799
        %1824 = vmatprep.subr.bf16.mxu0 0
        %1825 = vmatpush1.bf16.msra.mxu0 0
        %1826 = vmatprep.subr.bf16.mxu0 0
        %1827 = vmatpush1.bf16.msra.mxu0 0
        %1828 = vmatprep.subr.bf16.mxu0 0
        %1829 = vmatpush1.bf16.msra.mxu0 0
        %1830 = vmatprep.subr.bf16.mxu0 0
        %1831 = vmatpush1.bf16.msra.mxu0 0
        %1832 = vmatprep.subr.bf16.mxu0 0
        %1833 = vmatpush1.bf16.msra.mxu0 0
        %1834 = vmatprep.subr.bf16.mxu0 0
        %1835 = vmatpush1.bf16.msra.mxu0 0
        %1836 = vmatprep.subr.bf16.mxu0 0
        %1837 = vmatpush1.bf16.msra.mxu0 0
        %1838 = vmatprep.subr.bf16.mxu0 0
        %1839 = vmatpush1.bf16.msra.mxu0 0
        %1840 = vmatprep.mubr.bf16.mxu0 0
        %1841 = vmatmul.mubr.bf16.gmra.mrb[0].mxu0 %v1736
        %v1842 = vpop.f32.mrb[0].mxu0
        %v1843 = vadd.f32 %v1758, %v1842
        %v1844 = vpop.f32.mrb[0].mxu0
        %v1845 = vpop.f32.mrb[0].mxu0
        %v1846 = vpop.f32.mrb[0].mxu0
        %1847 = vdwg.mxu0
        %v1848 = vadd.f32 %v1630, %v1843
        %1849 = vst.msk [vmem:[%s431] sm:$0xff] %vm442, %v1848
        %s1850 = sand.u32 %s313, 1
        %s1851 = scalar_lea.sflag [#allocation3], %s1850
        %s1852 = sand.u32 %s313, 1
        %s1853 = smul.addr %s1852, 8
        %s1854 = scalar_lea.vmem [#allocation2], %s1853
        // Predicated region
        $region73: #{tpu_custom_call.1} parent=71 // pred_check
          %p1855 = pneg %p323
        $region74: #{tpu_custom_call.1} parent=71 // pred_check_branch
          %1857 = sbr.rel (%p1855) target = $region76
        $region75: #{tpu_custom_call.1} parent=71 // pred_region
          %s1859 = ssub.s32 128, 128
          %1860 = vsyncadd %s1851, %s1859
          %s1861 = smul.addr %s27, 128
          %s1862 = scalar_lea.hbm %s13, %s1861
          %s1864 = sshll.u32 %s1854, 4
          %s1865 = int_to_ptr.vmem [resolvable:$true] %s1864
          %1867 = dma.vmem_to_hbm [thread:$0]  %s1865, 128, %s1862, %s1851
        $region76: #{tpu_custom_call.1} parent=71 // pred_fallthru
          _
      $region72: #{tpu_custom_call.1} parent=5 // pred_fallthru
        _
      %p1868 = scmp.le.s32.totalorder 2, %s22
      // Predicated region
      $region77: #{tpu_custom_call.1} parent=5 // pred_check
        %p1869 = pneg %p1868
      $region78: #{tpu_custom_call.1} parent=5 // pred_check_branch
        %1871 = sbr.rel (%p1869) target = $region80
      $region79: #{tpu_custom_call.1} parent=5 // pred_region
        %s1872 = ssub.s32 %s22, 2
        // Predicated region
        $region81: #{tpu_custom_call.1} parent=79 // pred_check
          %p1873 = pneg %p329
        $region82: #{tpu_custom_call.1} parent=79 // pred_check_branch
          %1875 = sbr.rel (%p1873) target = $region84
        $region83: #{tpu_custom_call.1} parent=79 // pred_region
          %s1876 = sand.u32 %s314, 1
          %s1877 = scalar_lea.sflag [#allocation3], %s1876
          %s1878 = sand.u32 %s314, 1
          %s1879 = smul.addr %s1878, 8
          %s1880 = scalar_lea.vmem [#allocation2], %s1879
          %1881 = dma.done %s1877, 128
        $region84: #{tpu_custom_call.1} parent=79 // pred_fallthru
          _
      $region80: #{tpu_custom_call.1} parent=5 // pred_fallthru
        _
    $region6: #{tpu_custom_call.1} parent=1 // loop_footer
      %s26 = sadd.s32 1, %s22
    $region7: #{tpu_custom_call.1} parent=1 // loop_footer_branch
      %21 = sbr.rel target = $region3
    $region8: #{tpu_custom_call.1} parent=1 // loop_exit
      _
    %1882 = vsyncpa [#allocation3], 1
    %s1883 = scalar_lea.sflag [#allocation3], 1
    %1884 = vsyncpa %s1883, 1

</llo_original>
